<compile_context>
chip_gen: v6e
topology: v6e:2x2x1
jax: 0.10.0
libtpu: 0.0.40
codegen_flags: <defaults>
</compile_context>

<pallas_src>
import functools

import jax
import jax.numpy as jnp
from jax.experimental import pallas as pl
from jax.experimental.pallas import tpu as pltpu

LANE = 128
VMEM_LIMIT = 48 * 1024 * 1024  # safe on v5e/v6e (128 MiB) and v7x (64 MiB physical)


def _rup(n, m):
    return -(-n // m) * m


# ----------------------------- Pallas kernels -----------------------------------

def _conv_bn_relu_kernel(p_ref, w_ref, s_ref, b_ref, o_ref):
    """One fused conv (taps folded into contraction) + BN + ReLU.
    p: (tm, K*Cin) bf16, w: (K*Cin, Cout) bf16, s/b: (1, Cout) f32, o: (tm, Cout)."""
    acc = jnp.dot(p_ref[...], w_ref[...], preferred_element_type=jnp.float32)
    y = jnp.maximum(acc * s_ref[...] + b_ref[...], 0.0)   # f32 epilogue
    o_ref[...] = y.astype(o_ref.dtype)


def _tail_kernel(p2_ref, w2_ref, s2_ref, b2_ref, w3_ref, s3_ref, b3_ref, xs_ref,
                 *rest, proj):
    """Fused conv2(3x3) -> BN -> ReLU -> conv3(1x1) -> BN -> +shortcut -> ReLU.

    p2: (tm, 9*Ci) bf16, w2: (9*Ci, Ci) bf16, w3: (Ci, Co) bf16,
    xs: (tm, Cin_or_Co) bf16 (strided input for the projection, or identity),
    optional w0: (Cin, Co) bf16 with s0/b0, out: (tm, Co) f32.
    The (tm, Ci) intermediate stays on-chip; no HBM round-trip.
    """
    if proj:
        w0_ref, s0_ref, b0_ref, o_ref = rest
    else:
        (o_ref,) = rest

    # conv2 (im2col taps folded into one MXU contraction) + BN + ReLU
    h = jnp.dot(p2_ref[...], w2_ref[...], preferred_element_type=jnp.float32)
    h = jnp.maximum(h * s2_ref[...] + b2_ref[...], 0.0)

    # conv3 (1x1) + BN
    y = jnp.dot(h.astype(w3_ref.dtype), w3_ref[...], preferred_element_type=jnp.float32)
    y = y * s3_ref[...] + b3_ref[...]

    # shortcut: projection conv0 (1x1, stride handled by the wrapper's slicing) + BN,
    # or identity
    if proj:
        r = jnp.dot(xs_ref[...], w0_ref[...], preferred_element_type=jnp.float32)
        r = r * s0_ref[...] + b0_ref[...]
    else:
        r = xs_ref[...].astype(jnp.float32)

    o_ref[...] = jnp.maximum(y + r, 0.0).astype(o_ref.dtype)


# ----------------------------- tiling / wrappers ---------------------------------

def _row_tiling(M, row_bytes, max_tm=2048, vmem_cap=16 << 20):
    """Pick a row-tile size: multiple of 8, as large as double-buffers within a
    conservative VMEM budget (sized for v7x's 64 MiB VMEM), capped at max_tm, and
    arranged to give >=2 grid steps whenever M allows (software pipelining on all
    chips and work for both v7x TensorCores)."""
    fit = max(8, (vmem_cap // (2 * max(row_bytes, 1))) // 8 * 8)
    tm = min(max_tm, fit)
    if M <= tm:
        if M >= 16:
            tm = (((M + 1) // 2) + 7) // 8 * 8   # split into two tiles
        else:
            tm = (M + 7) // 8 * 8
    Mp = _rup(M, tm)
    return tm, Mp


def conv_bn_act(patches, w, scale, bias, out_dtype=jnp.bfloat16):
    """Fused (im2col-conv @ w) * bn_scale + bn_bias + ReLU.
    patches: (M, K*Cin) bf16, w: (K*Cin, Cout) bf16, scale/bias: (1, Cout) f32."""
    M, KC = patches.shape
    Cout = w.shape[-1]
    row_bytes = KC * patches.dtype.itemsize + Cout * 4 + Cout * jnp.dtype(out_dtype).itemsize
    tm, Mp = _row_tiling(M, row_bytes)
    if Mp != M:
        patches = jnp.pad(patches, ((0, Mp - M), (0, 0)))
    grid = (Mp // tm,)

    flops = 2 * Mp * KC * Cout
    bytes_acc = int(Mp * KC * patches.dtype.itemsize
                    + KC * Cout * w.dtype.itemsize
                    + Mp * Cout * jnp.dtype(out_dtype).itemsize)

    out = pl.pallas_call(
        _conv_bn_relu_kernel,
        out_shape=jax.ShapeDtypeStruct((Mp, Cout), out_dtype),
        grid=grid,
        in_specs=[
            pl.BlockSpec((tm, KC), lambda i: (i, 0)),
            pl.BlockSpec((KC, Cout), lambda i: (0, 0)),
            pl.BlockSpec((1, Cout), lambda i: (0, 0)),
            pl.BlockSpec((1, Cout), lambda i: (0, 0)),
        ],
        out_specs=pl.BlockSpec((tm, Cout), lambda i: (i, 0)),
        compiler_params=pltpu.CompilerParams(
            dimension_semantics=("parallel",), vmem_limit_bytes=VMEM_LIMIT),
        cost_estimate=pl.CostEstimate(flops=flops, transcendentals=0,
                                      bytes_accessed=bytes_acc),
    )(patches, w, scale, bias)
    return out[:M] if Mp != M else out


def fused_tail(p2, w2, s2, b2, w3, s3, b3, xs, w0=None, s0=None, b0=None):
    """conv2 + BN + ReLU + conv3 + BN + shortcut(+conv0+BN or identity) + ReLU,
    all in one Pallas kernel. Returns (M, Cout) f32."""
    M, KC = p2.shape
    Ci = w2.shape[-1]
    Co = w3.shape[-1]
    Cs = xs.shape[-1]
    proj = w0 is not None

    row_bytes = (KC * p2.dtype.itemsize + Cs * xs.dtype.itemsize + Ci * 4 + Co * 4)
    tm, Mp = _row_tiling(M, row_bytes)
    if Mp != M:
        p2 = jnp.pad(p2, ((0, Mp - M), (0, 0)))
        xs = jnp.pad(xs, ((0, Mp - M), (0, 0)))
    grid = (Mp // tm,)

    in_specs = [
        pl.BlockSpec((tm, KC), lambda i: (i, 0)),
        pl.BlockSpec((KC, Ci), lambda i: (0, 0)),
        pl.BlockSpec((1, Ci), lambda i: (0, 0)),
        pl.BlockSpec((1, Ci), lambda i: (0, 0)),
        pl.BlockSpec((Ci, Co), lambda i: (0, 0)),
        pl.BlockSpec((1, Co), lambda i: (0, 0)),
        pl.BlockSpec((1, Co), lambda i: (0, 0)),
        pl.BlockSpec((tm, Cs), lambda i: (i, 0)),
    ]
    args = [p2, w2, s2, b2, w3, s3, b3, xs]
    if proj:
        in_specs += [
            pl.BlockSpec((Cs, Co), lambda i: (0, 0)),
            pl.BlockSpec((1, Co), lambda i: (0, 0)),
            pl.BlockSpec((1, Co), lambda i: (0, 0)),
        ]
        args += [w0, s0, b0]

    flops = 2 * Mp * (KC * Ci + Ci * Co + (Cs * Co if proj else 0))
    bytes_acc = int(p2.size * p2.dtype.itemsize + xs.size * xs.dtype.itemsize
                    + w2.size * 2 + w3.size * 2 + (w0.size * 2 if proj else 0)
                    + Mp * Co * 4)

    kernel = functools.partial(_tail_kernel, proj=proj)
    out = pl.pallas_call(
        kernel,
        out_shape=jax.ShapeDtypeStruct((Mp, Co), jnp.float32),
        grid=grid,
        in_specs=in_specs,
        out_specs=pl.BlockSpec((tm, Co), lambda i: (i, 0)),
        compiler_params=pltpu.CompilerParams(
            dimension_semantics=("parallel",), vmem_limit_bytes=VMEM_LIMIT),
        cost_estimate=pl.CostEstimate(flops=flops, transcendentals=0,
                                      bytes_accessed=bytes_acc),
    )(*args)
    return out[:M] if Mp != M else out


# ------------------------------ glue (JAX) --------------------------------------

def _pad_last(a, target):
    if a.shape[-1] == target:
        return a
    cfg = [(0, 0)] * (a.ndim - 1) + [(0, target - a.shape[-1])]
    return jnp.pad(a, cfg)


def _prep_weight(w_pt, cin_p, cout_p):
    """PyTorch Conv3d weight (Cout, Cin, kT, kH, kW) -> (K*cin_p, cout_p) bf16,
    taps folded into the contraction, channels zero-padded to lane width."""
    co, ci = w_pt.shape[0], w_pt.shape[1]
    k = w_pt.shape[2] * w_pt.shape[3] * w_pt.shape[4]
    w = jnp.transpose(w_pt, (2, 3, 4, 1, 0)).reshape(k, ci, co)
    w = jnp.pad(w, ((0, 0), (0, cin_p - ci), (0, cout_p - co)))
    return w.reshape(k * cin_p, cout_p).astype(jnp.bfloat16)


def fold_bn(bn, cpad, eps=1e-5):
    """Eval-mode BN folded into per-channel scale/bias, zero/one-padded to cpad."""
    gamma, beta, mean, var = bn
    scale = gamma / jnp.sqrt(var + eps)
    bias = beta - mean * scale
    scale = jnp.pad(scale, (0, cpad - scale.shape[0]), constant_values=1.0)
    bias = jnp.pad(bias, (0, cpad - bias.shape[0]))
    return (scale.reshape(1, -1).astype(jnp.float32),
            bias.reshape(1, -1).astype(jnp.float32))


def temporal_patches(x, kt):
    """x: (N,T,H,W,C) -> (N*T_out*H*W, kt*C) for a (kt,1,1) conv, pad=kt//2.
    Taps are folded into the last (lane) dimension, tap-major / channel-minor."""
    N, T, H, W, C = x.shape
    p = kt // 2
    xp = jnp.pad(x, ((0, 0), (p, p), (0, 0), (0, 0), (0, 0)))
    T_out = T + 2 * p - kt + 1
    views = [xp[:, k:k + T_out] for k in range(kt)]
    pats = jnp.stack(views, axis=-2)                 # (N, T_out, H, W, kt, C)
    return pats.reshape(N * T_out * H * W, kt * C), (N, T_out, H, W)


def spatial3x3_patches(x, s):
    """x: (N,T,H,W,C) -> (N*T*Ho*Wo, 9*C) for a (1,3,3) conv, pad=1, stride=s."""
    N, T, H, W, C = x.shape
    xp = jnp.pad(x, ((0, 0), (0, 0), (1, 1), (1, 1), (0, 0)))
    Ho = (H - 1) // s + 1
    Wo = (W - 1) // s + 1
    views = []
    for kh in range(3):
        for kw in range(3):
            views.append(xp[:, :, kh::s, kw::s][:, :, :Ho, :Wo])
    pats = jnp.stack(views, axis=-2)                 # (N, T, Ho, Wo, 9, C)
    return pats.reshape(N * T * Ho * Wo, 9 * C), (N, T, Ho, Wo)


def init_bn(key, c):
    k1, k2, k3, k4 = jax.random.split(key, 4)
    gamma = 1.0 + 0.1 * jax.random.normal(k1, (c,), jnp.float32)
    beta = 0.1 * jax.random.normal(k2, (c,), jnp.float32)
    mean = 0.1 * jax.random.normal(k3, (c,), jnp.float32)
    var = 0.5 + jnp.abs(jax.random.normal(k4, (c,), jnp.float32))
    return gamma, beta, mean, var


def init_params(key, dim_in, dim_inner, dim_out, kt, stride):
    ks = jax.random.split(key, 8)
    params = {
        # PyTorch Conv3d weight layout: (Cout, Cin, kT, kH, kW)
        "w1": 0.1 * jax.random.normal(ks[0], (dim_inner, dim_in, kt, 1, 1), jnp.float32),
        "bn1": init_bn(ks[1], dim_inner),
        "w2": 0.1 * jax.random.normal(ks[2], (dim_inner, dim_inner, 1, 3, 3), jnp.float32),
        "bn2": init_bn(ks[3], dim_inner),
        "w3": 0.1 * jax.random.normal(ks[4], (dim_out, dim_inner, 1, 1, 1), jnp.float32),
        "bn3": init_bn(ks[5], dim_out),
    }
    if dim_in != dim_out or stride > 1:
        params["w0"] = 0.1 * jax.random.normal(ks[6], (dim_out, dim_in, 1, 1, 1), jnp.float32)
        params["bn0"] = init_bn(ks[7], dim_out)
    return params


def res50_block_forward(x_ncthw, params, dim_in, dim_inner, dim_out, kt, stride):
    # Pad channel widths to multiples of the 128-lane width so every matmul operand
    # and (most importantly) every output slab is lane-dense; no-op for real
    # ResNet-50 channel counts.
    ci, cm, co = _rup(dim_in, LANE), _rup(dim_inner, LANE), _rup(dim_out, LANE)

    x = jnp.transpose(x_ncthw, (0, 2, 3, 4, 1))          # NCTHW -> NTHWC
    x = _pad_last(x, ci).astype(jnp.bfloat16)            # bf16 in HBM, f32 accumulation
    N, T, H, W, _ = x.shape

    # conv1: (kt,1,1), pad kt//2, + BN + ReLU  (one MXU contraction of depth kt*Cin)
    w1 = _prep_weight(params["w1"], ci, cm)
    s1, b1 = fold_bn(params["bn1"], cm)
    p1, (_, T1, H1, W1) = temporal_patches(x, kt)
    f = conv_bn_act(p1, w1, s1, b1).reshape(N, T1, H1, W1, cm)

    # conv2 patches: (1,3,3), pad 1, stride (1,s,s); taps folded into the contraction
    p2, (_, T2, Ho, Wo) = spatial3x3_patches(f, stride)

    w2 = _prep_weight(params["w2"], cm, cm)
    s2, b2 = fold_bn(params["bn2"], cm)
    w3 = _prep_weight(params["w3"], cm, co)
    s3, b3 = fold_bn(params["bn3"], co)

    # Fused tail: conv2 + BN + ReLU + conv3 + BN + shortcut + ReLU in one kernel.
    if "w0" in params:
        xs = x[:, :, ::stride, ::stride, :].reshape(-1, ci)
        w0 = _prep_weight(params["w0"], ci, co)
        s0, b0 = fold_bn(params["bn0"], co)
        out = fused_tail(p2, w2, s2, b2, w3, s3, b3, xs, w0, s0, b0)
    else:
        xs = x.reshape(-1, co)                            # identity: dim_in == dim_out
        out = fused_tail(p2, w2, s2, b2, w3, s3, b3, xs)

    out = out[:, :dim_out].reshape(N, T2, Ho, Wo, dim_out)
    return jnp.transpose(out, (0, 4, 1, 2, 3))            # back to NCTHW


# ------------------------- pure-JAX reference (for check) ------------------------

def reference_forward(x_ncthw, params, kt, stride, eps=1e-5):
    x = jnp.transpose(x_ncthw, (0, 2, 3, 4, 1))
    hi = jax.lax.Precision.HIGHEST

    def conv(z, w, strides, padding):
        wk = jnp.transpose(w, (2, 3, 4, 1, 0))  # -> DHWIO
        return jax.lax.conv_general_dilated(
            z, wk, strides, padding,
            dimension_numbers=("NDHWC", "DHWIO", "NDHWC"), precision=hi)

    def bn(z, prm):
        g, b, m, v = prm
        return (z - m) / jnp.sqrt(v + eps) * g + b

    p = kt // 2
    f = jax.nn.relu(bn(conv(x, params["w1"], (1, 1, 1), [(p, p), (0, 0), (0, 0)]), params["bn1"]))
    f = jax.nn.relu(bn(conv(f, params["w2"], (1, stride, stride), [(0, 0), (1, 1), (1, 1)]), params["bn2"]))
    f = bn(conv(f, params["w3"], (1, 1, 1), [(0, 0), (0, 0), (0, 0)]), params["bn3"])
    if "w0" in params:
        sc = bn(conv(x, params["w0"], (1, stride, stride), [(0, 0), (0, 0), (0, 0)]), params["bn0"])
    else:
        sc = x
    out = jax.nn.relu(sc + f)
    return jnp.transpose(out, (0, 4, 1, 2, 3))


# ------------------------------------ main ---------------------------------------

if __name__ == "__main__":
    dim_in, dim_inner, dim_out = 16, 8, 32
    temp_kernel_size, stride = 3, 2
    N, T, H, W = 2, 4, 8, 8

    key = jax.random.PRNGKey(0)
    kx, kp = jax.random.split(key)
    x = jax.random.normal(kx, (N, dim_in, T, H, W), jnp.float32)  # NCTHW like PyTorch
    params = init_params(kp, dim_in, dim_inner, dim_out, temp_kernel_size, stride)

    fwd = jax.jit(functools.partial(
        res50_block_forward, dim_in=dim_in, dim_inner=dim_inner, dim_out=dim_out,
        kt=temp_kernel_size, stride=stride))
    out = jax.block_until_ready(fwd(x, params))

    ref = jax.block_until_ready(reference_forward(x, params, temp_kernel_size, stride))
    assert out.shape == ref.shape, (out.shape, ref.shape)
    # bf16 matmul operands (f32 accumulation / epilogue) vs. an f32 reference.
    max_err = float(jnp.max(jnp.abs(out - ref)))
    assert max_err < 3e-2, f"max abs error too large: {max_err}"

    print("KERNEL_OK")
</pallas_src>

<mosaic_0001>
module attributes {stable_mosaic.version = 11 : i64} {
  func.func @_conv_bn_relu_kernel(%arg0: i32, %arg1: memref<256x384xbf16, #tpu.memory_space<vmem>>, %arg2: memref<384x128xbf16, #tpu.memory_space<vmem>>, %arg3: memref<1x128xf32, #tpu.memory_space<vmem>>, %arg4: memref<1x128xf32, #tpu.memory_space<vmem>>, %arg5: memref<256x128xbf16, #tpu.memory_space<vmem>>) attributes {dimension_semantics = [#tpu.dimension_semantics<parallel>], iteration_bounds = array<i64: 2>, scalar_prefetch = 0 : i64, scratch_operands = 0 : i64, tpu.core_type = #tpu.core_type<tc>, window_params = [{transform_indices = @transform_0, window_bounds = array<i64: 256, 384>}, {pipeline_mode = #tpu.pipeline_mode<synchronous>, transform_indices = @transform_1, window_bounds = array<i64: 384, 128>}, {pipeline_mode = #tpu.pipeline_mode<synchronous>, transform_indices = @transform_2, window_bounds = array<i64: 1, 128>}, {pipeline_mode = #tpu.pipeline_mode<synchronous>, transform_indices = @transform_3, window_bounds = array<i64: 1, 128>}, {transform_indices = @transform_4, window_bounds = array<i64: 256, 128>}]} {
    %c0 = arith.constant 0 : index
    %c0_0 = arith.constant 0 : index
    %0 = vector.load %arg1[%c0, %c0_0] : memref<256x384xbf16, #tpu.memory_space<vmem>>, vector<256x384xbf16>
    %c0_1 = arith.constant 0 : index
    %c0_2 = arith.constant 0 : index
    %1 = vector.load %arg2[%c0_1, %c0_2] : memref<384x128xbf16, #tpu.memory_space<vmem>>, vector<384x128xbf16>
    %cst = arith.constant dense<0.000000e+00> : vector<256x128xf32>
    %2 = tpu.matmul %0, %1, %cst {dimension_numbers = #tpu.dot_dimension_numbers<[1], [0], [0], [1], [0, 0, 1, 1], [], []>} : vector<256x384xbf16>, vector<384x128xbf16>, vector<256x128xf32> -> vector<256x128xf32>
    %c0_3 = arith.constant 0 : index
    %c0_4 = arith.constant 0 : index
    %3 = vector.load %arg3[%c0_3, %c0_4] : memref<1x128xf32, #tpu.memory_space<vmem>>, vector<1x128xf32>
    %4 = vector.broadcast %3 : vector<1x128xf32> to vector<256x128xf32>
    %5 = arith.mulf %2, %4 : vector<256x128xf32>
    %c0_5 = arith.constant 0 : index
    %c0_6 = arith.constant 0 : index
    %6 = vector.load %arg4[%c0_5, %c0_6] : memref<1x128xf32, #tpu.memory_space<vmem>>, vector<1x128xf32>
    %7 = vector.broadcast %6 : vector<1x128xf32> to vector<256x128xf32>
    %8 = arith.addf %5, %7 : vector<256x128xf32>
    %cst_7 = arith.constant 0.000000e+00 : f32
    %9 = vector.broadcast %cst_7 : f32 to vector<256x128xf32>
    %10 = arith.maximumf %8, %9 : vector<256x128xf32>
    %11 = arith.truncf %10 : vector<256x128xf32> to vector<256x128xbf16>
    %c0_8 = arith.constant 0 : index
    %c0_9 = arith.constant 0 : index
    %12 = vector.load %arg5[%c0_8, %c0_9] : memref<256x128xbf16, #tpu.memory_space<vmem>>, vector<256x128xbf16>
    tpu.vector_store %arg5[%c0_8, %c0_9], %11 {strides = array<i32>} : memref<256x128xbf16, #tpu.memory_space<vmem>>, vector<256x128xbf16>,
    return
  }
  func.func @transform_0(%arg0: i32) -> (i32, i32) {
    %c0_i32 = arith.constant 0 : i32
    %c0_i32_0 = arith.constant 0 : i32
    return %arg0, %c0_i32 : i32, i32
  }
  func.func @transform_1(%arg0: i32) -> (i32, i32) {
    %c0_i32 = arith.constant 0 : i32
    %c0_i32_0 = arith.constant 0 : i32
    %c0_i32_1 = arith.constant 0 : i32
    return %c0_i32, %c0_i32_0 : i32, i32
  }
  func.func @transform_2(%arg0: i32) -> (i32, i32) {
    %c0_i32 = arith.constant 0 : i32
    %c0_i32_0 = arith.constant 0 : i32
    %c0_i32_1 = arith.constant 0 : i32
    return %c0_i32, %c0_i32_0 : i32, i32
  }
  func.func @transform_3(%arg0: i32) -> (i32, i32) {
    %c0_i32 = arith.constant 0 : i32
    %c0_i32_0 = arith.constant 0 : i32
    %c0_i32_1 = arith.constant 0 : i32
    return %c0_i32, %c0_i32_0 : i32, i32
  }
  func.func @transform_4(%arg0: i32) -> (i32, i32) {
    %c0_i32 = arith.constant 0 : i32
    %c0_i32_0 = arith.constant 0 : i32
    return %arg0, %c0_i32 : i32, i32
  }
}

module attributes {stable_mosaic.version = 11 : i64} {
  func.func @_tail_kernel(%arg0: i32, %arg1: memref<64x1152xbf16, #tpu.memory_space<vmem>>, %arg2: memref<1152x128xbf16, #tpu.memory_space<vmem>>, %arg3: memref<1x128xf32, #tpu.memory_space<vmem>>, %arg4: memref<1x128xf32, #tpu.memory_space<vmem>>, %arg5: memref<128x128xbf16, #tpu.memory_space<vmem>>, %arg6: memref<1x128xf32, #tpu.memory_space<vmem>>, %arg7: memref<1x128xf32, #tpu.memory_space<vmem>>, %arg8: memref<64x128xbf16, #tpu.memory_space<vmem>>, %arg9: memref<128x128xbf16, #tpu.memory_space<vmem>>, %arg10: memref<1x128xf32, #tpu.memory_space<vmem>>, %arg11: memref<1x128xf32, #tpu.memory_space<vmem>>, %arg12: memref<64x128xf32, #tpu.memory_space<vmem>>) attributes {dimension_semantics = [#tpu.dimension_semantics<parallel>], iteration_bounds = array<i64: 2>, scalar_prefetch = 0 : i64, scratch_operands = 0 : i64, tpu.core_type = #tpu.core_type<tc>, window_params = [{transform_indices = @transform_0, window_bounds = array<i64: 64, 1152>}, {pipeline_mode = #tpu.pipeline_mode<synchronous>, transform_indices = @transform_1, window_bounds = array<i64: 1152, 128>}, {pipeline_mode = #tpu.pipeline_mode<synchronous>, transform_indices = @transform_2, window_bounds = array<i64: 1, 128>}, {pipeline_mode = #tpu.pipeline_mode<synchronous>, transform_indices = @transform_3, window_bounds = array<i64: 1, 128>}, {pipeline_mode = #tpu.pipeline_mode<synchronous>, transform_indices = @transform_4, window_bounds = array<i64: 128, 128>}, {pipeline_mode = #tpu.pipeline_mode<synchronous>, transform_indices = @transform_5, window_bounds = array<i64: 1, 128>}, {pipeline_mode = #tpu.pipeline_mode<synchronous>, transform_indices = @transform_6, window_bounds = array<i64: 1, 128>}, {transform_indices = @transform_7, window_bounds = array<i64: 64, 128>}, {pipeline_mode = #tpu.pipeline_mode<synchronous>, transform_indices = @transform_8, window_bounds = array<i64: 128, 128>}, {pipeline_mode = #tpu.pipeline_mode<synchronous>, transform_indices = @transform_9, window_bounds = array<i64: 1, 128>}, {pipeline_mode = #tpu.pipeline_mode<synchronous>, transform_indices = @transform_10, window_bounds = array<i64: 1, 128>}, {transform_indices = @transform_11, window_bounds = array<i64: 64, 128>}]} {
    %c0 = arith.constant 0 : index
    %c0_0 = arith.constant 0 : index
    %0 = vector.load %arg1[%c0, %c0_0] : memref<64x1152xbf16, #tpu.memory_space<vmem>>, vector<64x1152xbf16>
    %c0_1 = arith.constant 0 : index
    %c0_2 = arith.constant 0 : index
    %1 = vector.load %arg2[%c0_1, %c0_2] : memref<1152x128xbf16, #tpu.memory_space<vmem>>, vector<1152x128xbf16>
    %cst = arith.constant dense<0.000000e+00> : vector<64x128xf32>
    %2 = tpu.matmul %0, %1, %cst {dimension_numbers = #tpu.dot_dimension_numbers<[1], [0], [0], [1], [0, 0, 1, 1], [], []>} : vector<64x1152xbf16>, vector<1152x128xbf16>, vector<64x128xf32> -> vector<64x128xf32>
    %c0_3 = arith.constant 0 : index
    %c0_4 = arith.constant 0 : index
    %3 = vector.load %arg3[%c0_3, %c0_4] : memref<1x128xf32, #tpu.memory_space<vmem>>, vector<1x128xf32>
    %4 = vector.broadcast %3 : vector<1x128xf32> to vector<64x128xf32>
    %5 = arith.mulf %2, %4 : vector<64x128xf32>
    %c0_5 = arith.constant 0 : index
    %c0_6 = arith.constant 0 : index
    %6 = vector.load %arg4[%c0_5, %c0_6] : memref<1x128xf32, #tpu.memory_space<vmem>>, vector<1x128xf32>
    %7 = vector.broadcast %6 : vector<1x128xf32> to vector<64x128xf32>
    %8 = arith.addf %5, %7 : vector<64x128xf32>
    %cst_7 = arith.constant 0.000000e+00 : f32
    %9 = vector.broadcast %cst_7 : f32 to vector<64x128xf32>
    %10 = arith.maximumf %8, %9 : vector<64x128xf32>
    %11 = arith.truncf %10 : vector<64x128xf32> to vector<64x128xbf16>
    %c0_8 = arith.constant 0 : index
    %c0_9 = arith.constant 0 : index
    %12 = vector.load %arg5[%c0_8, %c0_9] : memref<128x128xbf16, #tpu.memory_space<vmem>>, vector<128x128xbf16>
    %cst_10 = arith.constant dense<0.000000e+00> : vector<64x128xf32>
    %13 = tpu.matmul %11, %12, %cst_10 {dimension_numbers = #tpu.dot_dimension_numbers<[1], [0], [0], [1], [0, 0, 1, 1], [], []>} : vector<64x128xbf16>, vector<128x128xbf16>, vector<64x128xf32> -> vector<64x128xf32>
    %c0_11 = arith.constant 0 : index
    %c0_12 = arith.constant 0 : index
    %14 = vector.load %arg6[%c0_11, %c0_12] : memref<1x128xf32, #tpu.memory_space<vmem>>, vector<1x128xf32>
    %15 = vector.broadcast %14 : vector<1x128xf32> to vector<64x128xf32>
    %16 = arith.mulf %13, %15 : vector<64x128xf32>
    %c0_13 = arith.constant 0 : index
    %c0_14 = arith.constant 0 : index
    %17 = vector.load %arg7[%c0_13, %c0_14] : memref<1x128xf32, #tpu.memory_space<vmem>>, vector<1x128xf32>
    %18 = vector.broadcast %17 : vector<1x128xf32> to vector<64x128xf32>
    %19 = arith.addf %16, %18 : vector<64x128xf32>
    %c0_15 = arith.constant 0 : index
    %c0_16 = arith.constant 0 : index
    %20 = vector.load %arg8[%c0_15, %c0_16] : memref<64x128xbf16, #tpu.memory_space<vmem>>, vector<64x128xbf16>
    %c0_17 = arith.constant 0 : index
    %c0_18 = arith.constant 0 : index
    %21 = vector.load %arg9[%c0_17, %c0_18] : memref<128x128xbf16, #tpu.memory_space<vmem>>, vector<128x128xbf16>
    %cst_19 = arith.constant dense<0.000000e+00> : vector<64x128xf32>
    %22 = tpu.matmul %20, %21, %cst_19 {dimension_numbers = #tpu.dot_dimension_numbers<[1], [0], [0], [1], [0, 0, 1, 1], [], []>} : vector<64x128xbf16>, vector<128x128xbf16>, vector<64x128xf32> -> vector<64x128xf32>
    %c0_20 = arith.constant 0 : index
    %c0_21 = arith.constant 0 : index
    %23 = vector.load %arg10[%c0_20, %c0_21] : memref<1x128xf32, #tpu.memory_space<vmem>>, vector<1x128xf32>
    %24 = vector.broadcast %23 : vector<1x128xf32> to vector<64x128xf32>
    %25 = arith.mulf %22, %24 : vector<64x128xf32>
    %c0_22 = arith.constant 0 : index
    %c0_23 = arith.constant 0 : index
    %26 = vector.load %arg11[%c0_22, %c0_23] : memref<1x128xf32, #tpu.memory_space<vmem>>, vector<1x128xf32>
    %27 = vector.broadcast %26 : vector<1x128xf32> to vector<64x128xf32>
    %28 = arith.addf %25, %27 : vector<64x128xf32>
    %29 = arith.addf %19, %28 : vector<64x128xf32>
    %cst_24 = arith.constant 0.000000e+00 : f32
    %30 = vector.broadcast %cst_24 : f32 to vector<64x128xf32>
    %31 = arith.maximumf %29, %30 : vector<64x128xf32>
    %c0_25 = arith.constant 0 : index
    %c0_26 = arith.constant 0 : index
    %32 = vector.load %arg12[%c0_25, %c0_26] : memref<64x128xf32, #tpu.memory_space<vmem>>, vector<64x128xf32>
    tpu.vector_store %arg12[%c0_25, %c0_26], %31 {strides = array<i32>} : memref<64x128xf32, #tpu.memory_space<vmem>>, vector<64x128xf32>,
    return
  }
  func.func @transform_0(%arg0: i32) -> (i32, i32) {
    %c0_i32 = arith.constant 0 : i32
    %c0_i32_0 = arith.constant 0 : i32
    return %arg0, %c0_i32 : i32, i32
  }
  func.func @transform_1(%arg0: i32) -> (i32, i32) {
    %c0_i32 = arith.constant 0 : i32
    %c0_i32_0 = arith.constant 0 : i32
    %c0_i32_1 = arith.constant 0 : i32
    return %c0_i32, %c0_i32_0 : i32, i32
  }
  func.func @transform_2(%arg0: i32) -> (i32, i32) {
    %c0_i32 = arith.constant 0 : i32
    %c0_i32_0 = arith.constant 0 : i32
    %c0_i32_1 = arith.constant 0 : i32
    return %c0_i32, %c0_i32_0 : i32, i32
  }
  func.func @transform_3(%arg0: i32) -> (i32, i32) {
    %c0_i32 = arith.constant 0 : i32
    %c0_i32_0 = arith.constant 0 : i32
    %c0_i32_1 = arith.constant 0 : i32
    return %c0_i32, %c0_i32_0 : i32, i32
  }
  func.func @transform_4(%arg0: i32) -> (i32, i32) {
    %c0_i32 = arith.constant 0 : i32
    %c0_i32_0 = arith.constant 0 : i32
    %c0_i32_1 = arith.constant 0 : i32
    return %c0_i32, %c0_i32_0 : i32, i32
  }
  func.func @transform_5(%arg0: i32) -> (i32, i32) {
    %c0_i32 = arith.constant 0 : i32
    %c0_i32_0 = arith.constant 0 : i32
    %c0_i32_1 = arith.constant 0 : i32
    return %c0_i32, %c0_i32_0 : i32, i32
  }
  func.func @transform_6(%arg0: i32) -> (i32, i32) {
    %c0_i32 = arith.constant 0 : i32
    %c0_i32_0 = arith.constant 0 : i32
    %c0_i32_1 = arith.constant 0 : i32
    return %c0_i32, %c0_i32_0 : i32, i32
  }
  func.func @transform_7(%arg0: i32) -> (i32, i32) {
    %c0_i32 = arith.constant 0 : i32
    %c0_i32_0 = arith.constant 0 : i32
    return %arg0, %c0_i32 : i32, i32
  }
  func.func @transform_8(%arg0: i32) -> (i32, i32) {
    %c0_i32 = arith.constant 0 : i32
    %c0_i32_0 = arith.constant 0 : i32
    %c0_i32_1 = arith.constant 0 : i32
    return %c0_i32, %c0_i32_0 : i32, i32
  }
  func.func @transform_9(%arg0: i32) -> (i32, i32) {
    %c0_i32 = arith.constant 0 : i32
    %c0_i32_0 = arith.constant 0 : i32
    %c0_i32_1 = arith.constant 0 : i32
    return %c0_i32, %c0_i32_0 : i32, i32
  }
  func.func @transform_10(%arg0: i32) -> (i32, i32) {
    %c0_i32 = arith.constant 0 : i32
    %c0_i32_0 = arith.constant 0 : i32
    %c0_i32_1 = arith.constant 0 : i32
    return %c0_i32, %c0_i32_0 : i32, i32
  }
  func.func @transform_11(%arg0: i32) -> (i32, i32) {
    %c0_i32 = arith.constant 0 : i32
    %c0_i32_0 = arith.constant 0 : i32
    return %arg0, %c0_i32 : i32, i32
  }
}

</mosaic_0001>

<llo_original>
// kernel: res50_block_forward.2
$region0: #{res50_block_forward.2}
  #allocation0 [shape = 'u32[]', space=smem, size = 0x4, offset = 0x4, fixed_abs, tag = 'smem constant byte address 0x4 - core index']
  #allocation1 [shape = 'u32[144,128]{1,0:T(1,128)}', space=vmem, size = 0x12000, scoped, tag = 'internal scratch']
  %s0 = inlined_call_operand.vmem [shape: bf16[512,384], index: 0, kind: input, shape index: {}]
  %s1 = inlined_call_operand.vmem [shape: bf16[384,128], index: 1, kind: input, shape index: {}]
  %s2 = inlined_call_operand.vmem [shape: f32[1,128], index: 2, kind: input, shape index: {}]
  %s3 = inlined_call_operand.vmem [shape: f32[1,128], index: 3, kind: input, shape index: {}]
  %s4 = inlined_call_operand.vmem [shape: bf16[512,128], index: 4, kind: output, shape index: {}]
  %s5 = sld [smem:[#allocation0]]
  $region49: #{res50_block_forward.2} parent=0
    _
  %s7 = ssub.s32 1, %s5
  %s8 = scalar_select 0, %s7, %s5
  loop: start=0, step=1, limit=4
  $region2: #{res50_block_forward.2} parent=0 // loop_pre_header
    _
  $region3: #{res50_block_forward.2} parent=0 // loop_header
    %s10 = sphi 0, %s14
    %p11 = scmp.ge.s32.totalorder %s10, 4
    %s20 = sphi 0, %s22
    %s23 = sphi 0, %s20
    %s24 = sphi 0, %s23
    %s40 = sphi 0, %s24
    %s44 = sphi 0, %s44
    %s46 = sphi 0, %s44
    %s47 = sphi 0, %s46
    %s61 = sphi 0, %s47
    %s65 = sphi 0, %s65
    %s67 = sphi 0, %s65
    %s68 = sphi 0, %s67
    %s82 = sphi 0, %s68
    %s86 = sphi 0, %s86
    %s88 = sphi 0, %s86
    %s89 = sphi 0, %s88
    %s103 = sphi 0, %s89
    %s109 = sphi 0, %s111
    %s112 = sphi 0, %s109
    %s113 = sphi 0, %s112
    %s129 = sphi 0, %s113
  $region4: #{res50_block_forward.2} parent=0 // loop_header_branch
    %13 = sbr.rel (%p11) target = $region8
  $region5: #{res50_block_forward.2} parent=0 // loop_body
    %s15 = ssub.s32 %s10, 1
    %s16 = ssub.s32 %s10, 2
    %s17 = sadd.s32 %s10, 1
    %s18 = ssub.s32 %s10, %s17
    %p19 = scmp.eq.s32.totalorder %s18, 0
    %s21 = sadd.s32 %s20, 1
    %s22 = scalar_select %p19, %s20, %s21
    %p25 = pneg %p19
    %p26 = scmp.eq.s32.totalorder %s10, 1
    %p27 = por %p25, %p26
    %p28 = scmp.ne.s32.totalorder %s20, %s23
    %p29 = scmp.eq.s32.totalorder %s10, 0
    %p30 = por %p28, %p29
    %p31 = scmp.ne.s32.totalorder %s20, %s23
    %p32 = scmp.eq.s32.totalorder %s15, 1
    %p33 = por %p31, %p32
    %p34 = scmp.ne.s32.totalorder %s23, %s24
    %p35 = scmp.eq.s32.totalorder %s15, 0
    %p36 = por %p34, %p35
    %p37 = scmp.ne.s32.totalorder %s23, %s24
    %p38 = scmp.eq.s32.totalorder %s16, 1
    %p39 = por %p37, %p38
    %p41 = scmp.ne.s32.totalorder %s24, %s40
    %p42 = scmp.eq.s32.totalorder %s16, 0
    %p43 = por %p41, %p42
    %s45 = sadd.s32 %s44, 1
    %p48 = scmp.eq.s32.totalorder %s10, 1
    %p49 = scmp.ne.s32.totalorder %s44, %s46
    %p50 = scmp.eq.s32.totalorder %s10, 0
    %p51 = por %p49, %p50
    %p52 = scmp.ne.s32.totalorder %s44, %s46
    %p53 = scmp.eq.s32.totalorder %s15, 1
    %p54 = por %p52, %p53
    %p55 = scmp.ne.s32.totalorder %s46, %s47
    %p56 = scmp.eq.s32.totalorder %s15, 0
    %p57 = por %p55, %p56
    %p58 = scmp.ne.s32.totalorder %s46, %s47
    %p59 = scmp.eq.s32.totalorder %s16, 1
    %p60 = por %p58, %p59
    %p62 = scmp.ne.s32.totalorder %s47, %s61
    %p63 = scmp.eq.s32.totalorder %s16, 0
    %p64 = por %p62, %p63
    %s66 = sadd.s32 %s65, 1
    %p69 = scmp.eq.s32.totalorder %s10, 1
    %p70 = scmp.ne.s32.totalorder %s65, %s67
    %p71 = scmp.eq.s32.totalorder %s10, 0
    %p72 = por %p70, %p71
    %p73 = scmp.ne.s32.totalorder %s65, %s67
    %p74 = scmp.eq.s32.totalorder %s15, 1
    %p75 = por %p73, %p74
    %p76 = scmp.ne.s32.totalorder %s67, %s68
    %p77 = scmp.eq.s32.totalorder %s15, 0
    %p78 = por %p76, %p77
    %p79 = scmp.ne.s32.totalorder %s67, %s68
    %p80 = scmp.eq.s32.totalorder %s16, 1
    %p81 = por %p79, %p80
    %p83 = scmp.ne.s32.totalorder %s68, %s82
    %p84 = scmp.eq.s32.totalorder %s16, 0
    %p85 = por %p83, %p84
    %s87 = sadd.s32 %s86, 1
    %p90 = scmp.eq.s32.totalorder %s10, 1
    %p91 = scmp.ne.s32.totalorder %s86, %s88
    %p92 = scmp.eq.s32.totalorder %s10, 0
    %p93 = por %p91, %p92
    %p94 = scmp.ne.s32.totalorder %s86, %s88
    %p95 = scmp.eq.s32.totalorder %s15, 1
    %p96 = por %p94, %p95
    %p97 = scmp.ne.s32.totalorder %s88, %s89
    %p98 = scmp.eq.s32.totalorder %s15, 0
    %p99 = por %p97, %p98
    %p100 = scmp.ne.s32.totalorder %s88, %s89
    %p101 = scmp.eq.s32.totalorder %s16, 1
    %p102 = por %p100, %p101
    %p104 = scmp.ne.s32.totalorder %s89, %s103
    %p105 = scmp.eq.s32.totalorder %s16, 0
    %p106 = por %p104, %p105
    %s107 = ssub.s32 %s10, %s17
    %p108 = scmp.eq.s32.totalorder %s107, 0
    %s110 = sadd.s32 %s109, 1
    %s111 = scalar_select %p108, %s109, %s110
    %p114 = pneg %p108
    %p115 = scmp.eq.s32.totalorder %s10, 1
    %p116 = por %p114, %p115
    %p117 = scmp.ne.s32.totalorder %s109, %s112
    %p118 = scmp.eq.s32.totalorder %s10, 0
    %p119 = por %p117, %p118
    %p120 = scmp.ne.s32.totalorder %s109, %s112
    %p121 = scmp.eq.s32.totalorder %s15, 1
    %p122 = por %p120, %p121
    %p123 = scmp.ne.s32.totalorder %s112, %s113
    %p124 = scmp.eq.s32.totalorder %s15, 0
    %p125 = por %p123, %p124
    %p126 = scmp.ne.s32.totalorder %s112, %s113
    %p127 = scmp.eq.s32.totalorder %s16, 1
    %p128 = por %p126, %p127
    %p130 = scmp.ne.s32.totalorder %s113, %s129
    %p131 = scmp.eq.s32.totalorder %s16, 0
    %p132 = por %p130, %p131
    %p133 = scmp.le.s32.totalorder 1, %s10
    %p134 = scmp.lt.s32.totalorder %s10, 3
    %p135 = pnand %p133, %p134
    %p136 = pneg %p135
    // Predicated region
    $region9: #{res50_block_forward.2} parent=5 // pred_check
      _
    $region10: #{res50_block_forward.2} parent=5 // pred_check_branch
      %138 = sbr.rel (%p135) target = $region12
    $region11: #{res50_block_forward.2} parent=5 // pred_region
      %s139 = ssub.s32 %s10, 1
      // Predicated region
      $region13: #{res50_block_forward.2} parent=11 // pred_check
        %p140 = pneg %p57
      $region14: #{res50_block_forward.2} parent=11 // pred_check_branch
        %142 = sbr.rel (%p140) target = $region16
      $region15: #{res50_block_forward.2} parent=11 // pred_region
        _
      $region16: #{res50_block_forward.2} parent=11 // pred_fallthru
        _
      // Predicated region
      $region17: #{res50_block_forward.2} parent=11 // pred_check
        %p143 = pneg %p78
      $region18: #{res50_block_forward.2} parent=11 // pred_check_branch
        %145 = sbr.rel (%p143) target = $region20
      $region19: #{res50_block_forward.2} parent=11 // pred_region
        _
      $region20: #{res50_block_forward.2} parent=11 // pred_fallthru
        _
      // Predicated region
      $region21: #{res50_block_forward.2} parent=11 // pred_check
        %p146 = pneg %p99
      $region22: #{res50_block_forward.2} parent=11 // pred_check_branch
        %148 = sbr.rel (%p146) target = $region24
      $region23: #{res50_block_forward.2} parent=11 // pred_region
        _
      $region24: #{res50_block_forward.2} parent=11 // pred_fallthru
        _
    $region12: #{res50_block_forward.2} parent=5 // pred_fallthru
      _
    %p149 = scmp.lt.s32.totalorder %s10, 2
    // Predicated region
    $region25: #{res50_block_forward.2} parent=5 // pred_check
      %p150 = pneg %p149
    $region26: #{res50_block_forward.2} parent=5 // pred_check_branch
      %152 = sbr.rel (%p150) target = $region28
    $region27: #{res50_block_forward.2} parent=5 // pred_region
      // Predicated region
      $region29: #{res50_block_forward.2} parent=27 // pred_check
        %p153 = pneg %p30
      $region30: #{res50_block_forward.2} parent=27 // pred_check_branch
        %155 = sbr.rel (%p153) target = $region32
      $region31: #{res50_block_forward.2} parent=27 // pred_region
        %s156 = smul.u32 32, %s10
        %p157 = scmp.lt.s32.totalorder %s156, 63
        %s158 = scalar_select %p157, %s156, 63
        %s159 = smul.addr %s158, 3
        %s160 = smul.addr %s159, 4
        %s161 = scalar_lea.vmem %s0, %s160
        %s162 = smul.u32 32, %s10
      $region32: #{res50_block_forward.2} parent=27 // pred_fallthru
        _
    $region28: #{res50_block_forward.2} parent=5 // pred_fallthru
      _
    %p163 = scmp.le.s32.totalorder 1, %s10
    %p164 = scmp.lt.s32.totalorder %s10, 3
    %p165 = pnand %p163, %p164
    %p166 = pneg %p165
    // Predicated region
    $region33: #{res50_block_forward.2} parent=5 // pred_check
      _
    $region34: #{res50_block_forward.2} parent=5 // pred_check_branch
      %168 = sbr.rel (%p165) target = $region36
    $region35: #{res50_block_forward.2} parent=5 // pred_region
      %s169 = ssub.s32 %s10, 1
      %s170 = smul.u32 32, %s15
      %p171 = scmp.lt.s32.totalorder %s170, 63
      %s172 = scalar_select %p171, %s170, 63
      %s173 = smul.addr %s172, 3
      %s174 = smul.addr %s173, 4
      %s175 = scalar_lea.vmem %s0, %s174
      %p176 = pneg %p36
      %p177 = pneg %p33
      %p178 = pneg %p57
      %p179 = pneg %p54
      %p180 = pneg %p78
      %p181 = pneg %p75
      %p182 = pneg %p99
      %p183 = pneg %p96
      %p184 = pneg %p125
      %p185 = pneg %p122
      %s186 = smul.u32 32, %s15
      %p187 = scmp.lt.s32.totalorder %s186, 63
      %s188 = scalar_select %p187, %s186, 63
      %s189 = smul.addr %s188, 4
      %s190 = scalar_lea.vmem %s4, %s189
      %s191 = smul.u32 32, %s15
      %p192 = scmp.lt.s32.totalorder %s191, 63
      %s193 = scalar_select %p192, %s191, 63
      %s194 = smul.addr %s193, 3
      %s195 = smul.addr %s194, 4
      %s196 = scalar_lea.vmem %s0, %s195
      %s197 = smul.u32 32, %s15
      %s198 = smul.u32 32, %s15
      %p199 = scmp.lt.s32.totalorder %s198, 63
      %s200 = scalar_select %p199, %s198, 63
      %s201 = smul.addr %s200, 4
      %s202 = scalar_lea.vmem %s4, %s201
      %s203 = smul.u32 32, %s15
      %v205 = vld [vmem:[%s196] sm:$0xff]
      %v206 = vld [vmem:[%s196 + $0x8] sm:$0xf]
      %v207 = vld [vmem:[%s196 + $0xc] sm:$0xff]
      %v208 = vld [vmem:[%s196 + $0x14] sm:$0xf]
      %v209 = vld [vmem:[%s196 + $0x18] sm:$0xff]
      %v210 = vld [vmem:[%s196 + $0x20] sm:$0xf]
      %v211 = vld [vmem:[%s196 + $0x24] sm:$0xff]
      %v212 = vld [vmem:[%s196 + $0x2c] sm:$0xf]
      %v213 = vld [vmem:[%s196 + $0x30] sm:$0xff]
      %v214 = vld [vmem:[%s196 + $0x38] sm:$0xf]
      %v215 = vld [vmem:[%s196 + $0x3c] sm:$0xff]
      %v216 = vld [vmem:[%s196 + $0x44] sm:$0xf]
      %v217 = vld [vmem:[%s196 + $0x48] sm:$0xff]
      %v218 = vld [vmem:[%s196 + $0x50] sm:$0xf]
      %v219 = vld [vmem:[%s196 + $0x54] sm:$0xff]
      %v220 = vld [vmem:[%s196 + $0x5c] sm:$0xf]
      %v221 = vld [vmem:[%s196 + $0x60] sm:$0xff]
      %v222 = vld [vmem:[%s196 + $0x68] sm:$0xf]
      %v223 = vld [vmem:[%s196 + $0x6c] sm:$0xff]
      %v224 = vld [vmem:[%s196 + $0x74] sm:$0xf]
      %v225 = vld [vmem:[%s196 + $0x78] sm:$0xff]
      %v226 = vld [vmem:[%s196 + $0x80] sm:$0xf]
      %v227 = vld [vmem:[%s196 + $0x84] sm:$0xff]
      %v228 = vld [vmem:[%s196 + $0x8c] sm:$0xf]
      %v229 = vld [vmem:[%s196 + $0x90] sm:$0xff]
      %v230 = vld [vmem:[%s196 + $0x98] sm:$0xf]
      %v231 = vld [vmem:[%s196 + $0x9c] sm:$0xff]
      %v232 = vld [vmem:[%s196 + $0xa4] sm:$0xf]
      %v233 = vld [vmem:[%s196 + $0xa8] sm:$0xff]
      %v234 = vld [vmem:[%s196 + $0xb0] sm:$0xf]
      %v235 = vld [vmem:[%s196 + $0xb4] sm:$0xff]
      %v236 = vld [vmem:[%s196 + $0xbc] sm:$0xf]
      %v237 = vld [vmem:[%s196 + $0xc0] sm:$0xff]
      %v238 = vld [vmem:[%s196 + $0xc8] sm:$0xf]
      %v239 = vld [vmem:[%s196 + $0xcc] sm:$0xff]
      %v240 = vld [vmem:[%s196 + $0xd4] sm:$0xf]
      %v241 = vld [vmem:[%s196 + $0xd8] sm:$0xff]
      %v242 = vld [vmem:[%s196 + $0xe0] sm:$0xf]
      %v243 = vld [vmem:[%s196 + $0xe4] sm:$0xff]
      %v244 = vld [vmem:[%s196 + $0xec] sm:$0xf]
      %v245 = vld [vmem:[%s196 + $0xf0] sm:$0xff]
      %v246 = vld [vmem:[%s196 + $0xf8] sm:$0xf]
      %v247 = vld [vmem:[%s196 + $0xfc] sm:$0xff]
      %v248 = vld [vmem:[%s196 + $0x104] sm:$0xf]
      %v249 = vld [vmem:[%s196 + $0x108] sm:$0xff]
      %v250 = vld [vmem:[%s196 + $0x110] sm:$0xf]
      %v251 = vld [vmem:[%s196 + $0x114] sm:$0xff]
      %v252 = vld [vmem:[%s196 + $0x11c] sm:$0xf]
      %v253 = vld [vmem:[%s196 + $0x120] sm:$0xff]
      %v254 = vld [vmem:[%s196 + $0x128] sm:$0xf]
      %v255 = vld [vmem:[%s196 + $0x12c] sm:$0xff]
      %v256 = vld [vmem:[%s196 + $0x134] sm:$0xf]
      %v257 = vld [vmem:[%s196 + $0x138] sm:$0xff]
      %v258 = vld [vmem:[%s196 + $0x140] sm:$0xf]
      %v259 = vld [vmem:[%s196 + $0x144] sm:$0xff]
      %v260 = vld [vmem:[%s196 + $0x14c] sm:$0xf]
      %v261 = vld [vmem:[%s196 + $0x150] sm:$0xff]
      %v262 = vld [vmem:[%s196 + $0x158] sm:$0xf]
      %v263 = vld [vmem:[%s196 + $0x15c] sm:$0xff]
      %v264 = vld [vmem:[%s196 + $0x164] sm:$0xf]
      %v265 = vld [vmem:[%s196 + $0x168] sm:$0xff]
      %v266 = vld [vmem:[%s196 + $0x170] sm:$0xf]
      %v267 = vld [vmem:[%s196 + $0x174] sm:$0xff]
      %v268 = vld [vmem:[%s196 + $0x17c] sm:$0xf]
      %v269 = vld [vmem:[%s1] sm:$0xf]
      %v270 = vld [vmem:[%s1 + $0x4] sm:$0xf]
      %v271 = vld [vmem:[%s1 + $0x8] sm:$0xf]
      %v272 = vld [vmem:[%s1 + $0xc] sm:$0xf]
      %v273 = vld [vmem:[%s1 + $0x10] sm:$0xf]
      %v274 = vld [vmem:[%s1 + $0x14] sm:$0xf]
      %v275 = vld [vmem:[%s1 + $0x18] sm:$0xf]
      %v276 = vld [vmem:[%s1 + $0x1c] sm:$0xf]
      %v277 = vld [vmem:[%s1 + $0x20] sm:$0xf]
      %v278 = vld [vmem:[%s1 + $0x24] sm:$0xf]
      %v279 = vld [vmem:[%s1 + $0x28] sm:$0xf]
      %v280 = vld [vmem:[%s1 + $0x2c] sm:$0xf]
      %v281 = vld [vmem:[%s1 + $0x30] sm:$0xf]
      %v282 = vld [vmem:[%s1 + $0x34] sm:$0xf]
      %v283 = vld [vmem:[%s1 + $0x38] sm:$0xf]
      %v284 = vld [vmem:[%s1 + $0x3c] sm:$0xf]
      %v285 = vld [vmem:[%s1 + $0x40] sm:$0xf]
      %v286 = vld [vmem:[%s1 + $0x44] sm:$0xf]
      %v287 = vld [vmem:[%s1 + $0x48] sm:$0xf]
      %v288 = vld [vmem:[%s1 + $0x4c] sm:$0xf]
      %v289 = vld [vmem:[%s1 + $0x50] sm:$0xf]
      %v290 = vld [vmem:[%s1 + $0x54] sm:$0xf]
      %v291 = vld [vmem:[%s1 + $0x58] sm:$0xf]
      %v292 = vld [vmem:[%s1 + $0x5c] sm:$0xf]
      %v293 = vld [vmem:[%s1 + $0x60] sm:$0xf]
      %v294 = vld [vmem:[%s1 + $0x64] sm:$0xf]
      %v295 = vld [vmem:[%s1 + $0x68] sm:$0xf]
      %v296 = vld [vmem:[%s1 + $0x6c] sm:$0xf]
      %v297 = vld [vmem:[%s1 + $0x70] sm:$0xf]
      %v298 = vld [vmem:[%s1 + $0x74] sm:$0xf]
      %v299 = vld [vmem:[%s1 + $0x78] sm:$0xf]
      %v300 = vld [vmem:[%s1 + $0x7c] sm:$0xf]
      %v301 = vld [vmem:[%s1 + $0x80] sm:$0xf]
      %v302 = vld [vmem:[%s1 + $0x84] sm:$0xf]
      %v303 = vld [vmem:[%s1 + $0x88] sm:$0xf]
      %v304 = vld [vmem:[%s1 + $0x8c] sm:$0xf]
      %v305 = vld [vmem:[%s1 + $0x90] sm:$0xf]
      %v306 = vld [vmem:[%s1 + $0x94] sm:$0xf]
      %v307 = vld [vmem:[%s1 + $0x98] sm:$0xf]
      %v308 = vld [vmem:[%s1 + $0x9c] sm:$0xf]
      %v309 = vld [vmem:[%s1 + $0xa0] sm:$0xf]
      %v310 = vld [vmem:[%s1 + $0xa4] sm:$0xf]
      %v311 = vld [vmem:[%s1 + $0xa8] sm:$0xf]
      %v312 = vld [vmem:[%s1 + $0xac] sm:$0xf]
      %v313 = vld [vmem:[%s1 + $0xb0] sm:$0xf]
      %v314 = vld [vmem:[%s1 + $0xb4] sm:$0xf]
      %v315 = vld [vmem:[%s1 + $0xb8] sm:$0xf]
      %v316 = vld [vmem:[%s1 + $0xbc] sm:$0xf]
      %v381 = vunpack.c.l.b16 %v205
      %v382 = vunpack.c.h.b16 %v205
      %v383 = vunpack.c.l.b16 %v206
      %v384 = vunpack.c.l.b16 %v207
      %v385 = vunpack.c.h.b16 %v207
      %v386 = vunpack.c.l.b16 %v208
      %v387 = vunpack.c.l.b16 %v209
      %v388 = vunpack.c.h.b16 %v209
      %v389 = vunpack.c.l.b16 %v210
      %v390 = vunpack.c.l.b16 %v211
      %v391 = vunpack.c.h.b16 %v211
      %v392 = vunpack.c.l.b16 %v212
      %v393 = vunpack.c.l.b16 %v213
      %v394 = vunpack.c.h.b16 %v213
      %v395 = vunpack.c.l.b16 %v214
      %v396 = vunpack.c.l.b16 %v215
      %v397 = vunpack.c.h.b16 %v215
      %v398 = vunpack.c.l.b16 %v216
      %v399 = vunpack.c.l.b16 %v217
      %v400 = vunpack.c.h.b16 %v217
      %v401 = vunpack.c.l.b16 %v218
      %v402 = vunpack.c.l.b16 %v219
      %v403 = vunpack.c.h.b16 %v219
      %v404 = vunpack.c.l.b16 %v220
      %v405 = vunpack.c.l.b16 %v221
      %v406 = vunpack.c.h.b16 %v221
      %v407 = vunpack.c.l.b16 %v222
      %v408 = vunpack.c.l.b16 %v223
      %v409 = vunpack.c.h.b16 %v223
      %v410 = vunpack.c.l.b16 %v224
      %v411 = vunpack.c.l.b16 %v225
      %v412 = vunpack.c.h.b16 %v225
      %v413 = vunpack.c.l.b16 %v226
      %v414 = vunpack.c.l.b16 %v227
      %v415 = vunpack.c.h.b16 %v227
      %v416 = vunpack.c.l.b16 %v228
      %v417 = vunpack.c.l.b16 %v229
      %v418 = vunpack.c.h.b16 %v229
      %v419 = vunpack.c.l.b16 %v230
      %v420 = vunpack.c.l.b16 %v231
      %v421 = vunpack.c.h.b16 %v231
      %v422 = vunpack.c.l.b16 %v232
      %v423 = vunpack.c.l.b16 %v233
      %v424 = vunpack.c.h.b16 %v233
      %v425 = vunpack.c.l.b16 %v234
      %v426 = vunpack.c.l.b16 %v235
      %v427 = vunpack.c.h.b16 %v235
      %v428 = vunpack.c.l.b16 %v236
      %v429 = vunpack.c.l.b16 %v237
      %v430 = vunpack.c.h.b16 %v237
      %v431 = vunpack.c.l.b16 %v238
      %v432 = vunpack.c.l.b16 %v239
      %v433 = vunpack.c.h.b16 %v239
      %v434 = vunpack.c.l.b16 %v240
      %v435 = vunpack.c.l.b16 %v241
      %v436 = vunpack.c.h.b16 %v241
      %v437 = vunpack.c.l.b16 %v242
      %v438 = vunpack.c.l.b16 %v243
      %v439 = vunpack.c.h.b16 %v243
      %v440 = vunpack.c.l.b16 %v244
      %v441 = vunpack.c.l.b16 %v245
      %v442 = vunpack.c.h.b16 %v245
      %v443 = vunpack.c.l.b16 %v246
      %v444 = vunpack.c.l.b16 %v247
      %v445 = vunpack.c.h.b16 %v247
      %v446 = vunpack.c.l.b16 %v248
      %v447 = vunpack.c.l.b16 %v249
      %v448 = vunpack.c.h.b16 %v249
      %v449 = vunpack.c.l.b16 %v250
      %v450 = vunpack.c.l.b16 %v251
      %v451 = vunpack.c.h.b16 %v251
      %v452 = vunpack.c.l.b16 %v252
      %v453 = vunpack.c.l.b16 %v253
      %v454 = vunpack.c.h.b16 %v253
      %v455 = vunpack.c.l.b16 %v254
      %v456 = vunpack.c.l.b16 %v255
      %v457 = vunpack.c.h.b16 %v255
      %v458 = vunpack.c.l.b16 %v256
      %v459 = vunpack.c.l.b16 %v257
      %v460 = vunpack.c.h.b16 %v257
      %v461 = vunpack.c.l.b16 %v258
      %v462 = vunpack.c.l.b16 %v259
      %v463 = vunpack.c.h.b16 %v259
      %v464 = vunpack.c.l.b16 %v260
      %v465 = vunpack.c.l.b16 %v261
      %v466 = vunpack.c.h.b16 %v261
      %v467 = vunpack.c.l.b16 %v262
      %v468 = vunpack.c.l.b16 %v263
      %v469 = vunpack.c.h.b16 %v263
      %v470 = vunpack.c.l.b16 %v264
      %v471 = vunpack.c.l.b16 %v265
      %v472 = vunpack.c.h.b16 %v265
      %v473 = vunpack.c.l.b16 %v266
      %v474 = vunpack.c.l.b16 %v267
      %v475 = vunpack.c.h.b16 %v267
      %v476 = vunpack.c.l.b16 %v268
      %v477 = vpack.c.b16 %v384, %v381
      %v478 = vpack.c.b16 %v385, %v382
      %v479 = vpack.c.b16 %v386, %v383
      %v480 = vpack.c.b16 %v390, %v387
      %v481 = vpack.c.b16 %v391, %v388
      %v482 = vpack.c.b16 %v392, %v389
      %v483 = vpack.c.b16 %v396, %v393
      %v484 = vpack.c.b16 %v397, %v394
      %v485 = vpack.c.b16 %v398, %v395
      %v486 = vpack.c.b16 %v402, %v399
      %v487 = vpack.c.b16 %v403, %v400
      %v488 = vpack.c.b16 %v404, %v401
      %v489 = vpack.c.b16 %v408, %v405
      %v490 = vpack.c.b16 %v409, %v406
      %v491 = vpack.c.b16 %v410, %v407
      %v492 = vpack.c.b16 %v414, %v411
      %v493 = vpack.c.b16 %v415, %v412
      %v494 = vpack.c.b16 %v416, %v413
      %v495 = vpack.c.b16 %v420, %v417
      %v496 = vpack.c.b16 %v421, %v418
      %v497 = vpack.c.b16 %v422, %v419
      %v498 = vpack.c.b16 %v426, %v423
      %v499 = vpack.c.b16 %v427, %v424
      %v500 = vpack.c.b16 %v428, %v425
      %v501 = vpack.c.b16 %v432, %v429
      %v502 = vpack.c.b16 %v433, %v430
      %v503 = vpack.c.b16 %v434, %v431
      %v504 = vpack.c.b16 %v438, %v435
      %v505 = vpack.c.b16 %v439, %v436
      %v506 = vpack.c.b16 %v440, %v437
      %v507 = vpack.c.b16 %v444, %v441
      %v508 = vpack.c.b16 %v445, %v442
      %v509 = vpack.c.b16 %v446, %v443
      %v510 = vpack.c.b16 %v450, %v447
      %v511 = vpack.c.b16 %v451, %v448
      %v512 = vpack.c.b16 %v452, %v449
      %v513 = vpack.c.b16 %v456, %v453
      %v514 = vpack.c.b16 %v457, %v454
      %v515 = vpack.c.b16 %v458, %v455
      %v516 = vpack.c.b16 %v462, %v459
      %v517 = vpack.c.b16 %v463, %v460
      %v518 = vpack.c.b16 %v464, %v461
      %v519 = vpack.c.b16 %v468, %v465
      %v520 = vpack.c.b16 %v469, %v466
      %v521 = vpack.c.b16 %v470, %v467
      %v522 = vpack.c.b16 %v474, %v471
      %v523 = vpack.c.b16 %v475, %v472
      %v524 = vpack.c.b16 %v476, %v473
      %v621 = vunpack.c.l.b16 %v269
      %v622 = vunpack.c.l.b16 %v270
      %v623 = vunpack.c.l.b16 %v271
      %v624 = vunpack.c.l.b16 %v272
      %v625 = vunpack.c.l.b16 %v273
      %v626 = vunpack.c.l.b16 %v274
      %v627 = vunpack.c.l.b16 %v275
      %v628 = vunpack.c.l.b16 %v276
      %v629 = vunpack.c.l.b16 %v277
      %v630 = vunpack.c.l.b16 %v278
      %v631 = vunpack.c.l.b16 %v279
      %v632 = vunpack.c.l.b16 %v280
      %v633 = vunpack.c.l.b16 %v281
      %v634 = vunpack.c.l.b16 %v282
      %v635 = vunpack.c.l.b16 %v283
      %v636 = vunpack.c.l.b16 %v284
      %v637 = vunpack.c.l.b16 %v285
      %v638 = vunpack.c.l.b16 %v286
      %v639 = vunpack.c.l.b16 %v287
      %v640 = vunpack.c.l.b16 %v288
      %v641 = vunpack.c.l.b16 %v289
      %v642 = vunpack.c.l.b16 %v290
      %v643 = vunpack.c.l.b16 %v291
      %v644 = vunpack.c.l.b16 %v292
      %v645 = vunpack.c.l.b16 %v293
      %v646 = vunpack.c.l.b16 %v294
      %v647 = vunpack.c.l.b16 %v295
      %v648 = vunpack.c.l.b16 %v296
      %v649 = vunpack.c.l.b16 %v297
      %v650 = vunpack.c.l.b16 %v298
      %v651 = vunpack.c.l.b16 %v299
      %v652 = vunpack.c.l.b16 %v300
      %v653 = vunpack.c.l.b16 %v301
      %v654 = vunpack.c.l.b16 %v302
      %v655 = vunpack.c.l.b16 %v303
      %v656 = vunpack.c.l.b16 %v304
      %v657 = vunpack.c.l.b16 %v305
      %v658 = vunpack.c.l.b16 %v306
      %v659 = vunpack.c.l.b16 %v307
      %v660 = vunpack.c.l.b16 %v308
      %v661 = vunpack.c.l.b16 %v309
      %v662 = vunpack.c.l.b16 %v310
      %v663 = vunpack.c.l.b16 %v311
      %v664 = vunpack.c.l.b16 %v312
      %v665 = vunpack.c.l.b16 %v313
      %v666 = vunpack.c.l.b16 %v314
      %v667 = vunpack.c.l.b16 %v315
      %v668 = vunpack.c.l.b16 %v316
      %v669 = vpack.c.b16 %v622, %v621
      %v670 = vpack.c.b16 %v624, %v623
      %v671 = vpack.c.b16 %v626, %v625
      %v672 = vpack.c.b16 %v628, %v627
      %v673 = vpack.c.b16 %v630, %v629
      %v674 = vpack.c.b16 %v632, %v631
      %v675 = vpack.c.b16 %v634, %v633
      %v676 = vpack.c.b16 %v636, %v635
      %v677 = vpack.c.b16 %v638, %v637
      %v678 = vpack.c.b16 %v640, %v639
      %v679 = vpack.c.b16 %v642, %v641
      %v680 = vpack.c.b16 %v644, %v643
      %v681 = vpack.c.b16 %v646, %v645
      %v682 = vpack.c.b16 %v648, %v647
      %v683 = vpack.c.b16 %v650, %v649
      %v684 = vpack.c.b16 %v652, %v651
      %v685 = vpack.c.b16 %v654, %v653
      %v686 = vpack.c.b16 %v656, %v655
      %v687 = vpack.c.b16 %v658, %v657
      %v688 = vpack.c.b16 %v660, %v659
      %v689 = vpack.c.b16 %v662, %v661
      %v690 = vpack.c.b16 %v664, %v663
      %v691 = vpack.c.b16 %v666, %v665
      %v692 = vpack.c.b16 %v668, %v667
      %717 = vmatprep.subr.bf16.mxu0 0
      %718 = vmatpush1.bf16.msra.mxu0 %v676
      %719 = vmatprep.subr.bf16.mxu0 0
      %720 = vmatpush1.bf16.msra.mxu0 %v675
      %721 = vmatprep.subr.bf16.mxu0 0
      %722 = vmatpush1.bf16.msra.mxu0 %v674
      %723 = vmatprep.subr.bf16.mxu0 0
      %724 = vmatpush1.bf16.msra.mxu0 %v673
      %725 = vmatprep.subr.bf16.mxu0 0
      %726 = vmatpush1.bf16.msra.mxu0 %v672
      %727 = vmatprep.subr.bf16.mxu0 0
      %728 = vmatpush1.bf16.msra.mxu0 %v671
      %729 = vmatprep.subr.bf16.mxu0 0
      %730 = vmatpush1.bf16.msra.mxu0 %v670
      %731 = vmatprep.subr.bf16.mxu0 0
      %732 = vmatpush1.bf16.msra.mxu0 %v669
      %733 = vmatprep.subr.bf16.mxu0 0
      %734 = vmatpush2.bf16.msra.mxu0 %v684
      %735 = vmatprep.subr.bf16.mxu0 0
      %736 = vmatpush2.bf16.msra.mxu0 %v683
      %737 = vmatprep.subr.bf16.mxu0 0
      %738 = vmatpush2.bf16.msra.mxu0 %v682
      %739 = vmatprep.subr.bf16.mxu0 0
      %740 = vmatpush2.bf16.msra.mxu0 %v681
      %741 = vmatprep.subr.bf16.mxu0 0
      %742 = vmatpush2.bf16.msra.mxu0 %v680
      %743 = vmatprep.subr.bf16.mxu0 0
      %744 = vmatpush2.bf16.msra.mxu0 %v679
      %745 = vmatprep.subr.bf16.mxu0 0
      %746 = vmatpush2.bf16.msra.mxu0 %v678
      %747 = vmatprep.subr.bf16.mxu0 0
      %748 = vmatpush2.bf16.msra.mxu0 %v677
      %749 = vmatprep.mubr.bf16.mxu0 %v478
      %750 = vmatmul.mubr.bf16.gmra.mxu0 %v477
      %v751 = vpop.f32.mrf.mxu0
      %v752 = vadd.f32 0.0, %v751
      %v753 = vpop.f32.mrf.mxu0
      %v754 = vpop.f32.mrf.mxu0
      %v755 = vadd.f32 0.0, %v754
      %v756 = vpop.f32.mrf.mxu0
      %757 = vmatprep.mubr.bf16.mxu0 %v481
      %758 = vmatmul.mubr.bf16.gmra.mxu0 %v480
      %v759 = vpop.f32.mrf.mxu0
      %v760 = vadd.f32 0.0, %v759
      %v761 = vpop.f32.mrf.mxu0
      %v762 = vpop.f32.mrf.mxu0
      %v763 = vadd.f32 0.0, %v762
      %v764 = vpop.f32.mrf.mxu0
      %765 = vmatprep.mubr.bf16.mxu0 %v484
      %766 = vmatmul.mubr.bf16.gmra.mxu0 %v483
      %v767 = vpop.f32.mrf.mxu0
      %v768 = vadd.f32 0.0, %v767
      %v769 = vpop.f32.mrf.mxu0
      %v770 = vpop.f32.mrf.mxu0
      %v771 = vadd.f32 0.0, %v770
      %v772 = vpop.f32.mrf.mxu0
      %773 = vmatprep.mubr.bf16.mxu0 %v487
      %774 = vmatmul.mubr.bf16.gmra.mxu0 %v486
      %v775 = vpop.f32.mrf.mxu0
      %v776 = vadd.f32 0.0, %v775
      %v777 = vpop.f32.mrf.mxu0
      %v778 = vpop.f32.mrf.mxu0
      %v779 = vadd.f32 0.0, %v778
      %v780 = vpop.f32.mrf.mxu0
      %781 = vmatprep.mubr.bf16.mxu0 %v490
      %782 = vmatmul.mubr.bf16.gmra.mxu0 %v489
      %v783 = vpop.f32.mrf.mxu0
      %v784 = vadd.f32 0.0, %v783
      %v785 = vpop.f32.mrf.mxu0
      %v786 = vpop.f32.mrf.mxu0
      %v787 = vadd.f32 0.0, %v786
      %v788 = vpop.f32.mrf.mxu0
      %789 = vmatprep.mubr.bf16.mxu0 %v493
      %790 = vmatmul.mubr.bf16.gmra.mxu0 %v492
      %v791 = vpop.f32.mrf.mxu0
      %v792 = vadd.f32 0.0, %v791
      %v793 = vpop.f32.mrf.mxu0
      %v794 = vpop.f32.mrf.mxu0
      %v795 = vadd.f32 0.0, %v794
      %v796 = vpop.f32.mrf.mxu0
      %797 = vmatprep.mubr.bf16.mxu0 %v496
      %798 = vmatmul.mubr.bf16.gmra.mxu0 %v495
      %v799 = vpop.f32.mrf.mxu0
      %v800 = vadd.f32 0.0, %v799
      %v801 = vpop.f32.mrf.mxu0
      %v802 = vpop.f32.mrf.mxu0
      %v803 = vadd.f32 0.0, %v802
      %v804 = vpop.f32.mrf.mxu0
      %805 = vmatprep.mubr.bf16.mxu0 %v499
      %806 = vmatmul.mubr.bf16.gmra.mxu0 %v498
      %v807 = vpop.f32.mrf.mxu0
      %v808 = vadd.f32 0.0, %v807
      %v809 = vpop.f32.mrf.mxu0
      %v810 = vpop.f32.mrf.mxu0
      %v811 = vadd.f32 0.0, %v810
      %v812 = vpop.f32.mrf.mxu0
      %813 = vmatprep.mubr.bf16.mxu0 %v502
      %814 = vmatmul.mubr.bf16.gmra.mxu0 %v501
      %v815 = vpop.f32.mrf.mxu0
      %v816 = vadd.f32 0.0, %v815
      %v817 = vpop.f32.mrf.mxu0
      %v818 = vpop.f32.mrf.mxu0
      %v819 = vadd.f32 0.0, %v818
      %v820 = vpop.f32.mrf.mxu0
      %821 = vmatprep.mubr.bf16.mxu0 %v505
      %822 = vmatmul.mubr.bf16.gmra.mxu0 %v504
      %v823 = vpop.f32.mrf.mxu0
      %v824 = vadd.f32 0.0, %v823
      %v825 = vpop.f32.mrf.mxu0
      %v826 = vpop.f32.mrf.mxu0
      %v827 = vadd.f32 0.0, %v826
      %v828 = vpop.f32.mrf.mxu0
      %829 = vmatprep.mubr.bf16.mxu0 %v508
      %830 = vmatmul.mubr.bf16.gmra.mxu0 %v507
      %v831 = vpop.f32.mrf.mxu0
      %v832 = vadd.f32 0.0, %v831
      %v833 = vpop.f32.mrf.mxu0
      %v834 = vpop.f32.mrf.mxu0
      %v835 = vadd.f32 0.0, %v834
      %v836 = vpop.f32.mrf.mxu0
      %837 = vmatprep.mubr.bf16.mxu0 %v511
      %838 = vmatmul.mubr.bf16.gmra.mxu0 %v510
      %v839 = vpop.f32.mrf.mxu0
      %v840 = vadd.f32 0.0, %v839
      %v841 = vpop.f32.mrf.mxu0
      %v842 = vpop.f32.mrf.mxu0
      %v843 = vadd.f32 0.0, %v842
      %v844 = vpop.f32.mrf.mxu0
      %845 = vmatprep.mubr.bf16.mxu0 %v514
      %846 = vmatmul.mubr.bf16.gmra.mxu0 %v513
      %v847 = vpop.f32.mrf.mxu0
      %v848 = vadd.f32 0.0, %v847
      %v849 = vpop.f32.mrf.mxu0
      %v850 = vpop.f32.mrf.mxu0
      %v851 = vadd.f32 0.0, %v850
      %v852 = vpop.f32.mrf.mxu0
      %853 = vmatprep.mubr.bf16.mxu0 %v517
      %854 = vmatmul.mubr.bf16.gmra.mxu0 %v516
      %v855 = vpop.f32.mrf.mxu0
      %v856 = vadd.f32 0.0, %v855
      %v857 = vpop.f32.mrf.mxu0
      %v858 = vpop.f32.mrf.mxu0
      %v859 = vadd.f32 0.0, %v858
      %v860 = vpop.f32.mrf.mxu0
      %861 = vmatprep.mubr.bf16.mxu0 %v520
      %862 = vmatmul.mubr.bf16.gmra.mxu0 %v519
      %v863 = vpop.f32.mrf.mxu0
      %v864 = vadd.f32 0.0, %v863
      %v865 = vpop.f32.mrf.mxu0
      %v866 = vpop.f32.mrf.mxu0
      %v867 = vadd.f32 0.0, %v866
      %v868 = vpop.f32.mrf.mxu0
      %869 = vmatprep.mubr.bf16.mxu0 %v523
      %870 = vmatmul.mubr.bf16.gmra.mxu0 %v522
      %v871 = vpop.f32.mrf.mxu0
      %v872 = vadd.f32 0.0, %v871
      %v873 = vpop.f32.mrf.mxu0
      %v874 = vpop.f32.mrf.mxu0
      %v875 = vadd.f32 0.0, %v874
      %v876 = vpop.f32.mrf.mxu0
      %877 = vdwg.mxu0
      %878 = vmatprep.subr.bf16.mxu0 0
      %879 = vmatpush1.bf16.msra.mxu0 %v692
      %880 = vmatprep.subr.bf16.mxu0 0
      %881 = vmatpush1.bf16.msra.mxu0 %v691
      %882 = vmatprep.subr.bf16.mxu0 0
      %883 = vmatpush1.bf16.msra.mxu0 %v690
      %884 = vmatprep.subr.bf16.mxu0 0
      %885 = vmatpush1.bf16.msra.mxu0 %v689
      %886 = vmatprep.subr.bf16.mxu0 0
      %887 = vmatpush1.bf16.msra.mxu0 %v688
      %888 = vmatprep.subr.bf16.mxu0 0
      %889 = vmatpush1.bf16.msra.mxu0 %v687
      %890 = vmatprep.subr.bf16.mxu0 0
      %891 = vmatpush1.bf16.msra.mxu0 %v686
      %892 = vmatprep.subr.bf16.mxu0 0
      %893 = vmatpush1.bf16.msra.mxu0 %v685
      %894 = vmatprep.subr.bf16.mxu0 0
      %895 = vmatpush2.bf16.msra.mxu0 0
      %896 = vmatprep.subr.bf16.mxu0 0
      %897 = vmatpush2.bf16.msra.mxu0 0
      %898 = vmatprep.subr.bf16.mxu0 0
      %899 = vmatpush2.bf16.msra.mxu0 0
      %900 = vmatprep.subr.bf16.mxu0 0
      %901 = vmatpush2.bf16.msra.mxu0 0
      %902 = vmatprep.subr.bf16.mxu0 0
      %903 = vmatpush2.bf16.msra.mxu0 0
      %904 = vmatprep.subr.bf16.mxu0 0
      %905 = vmatpush2.bf16.msra.mxu0 0
      %906 = vmatprep.subr.bf16.mxu0 0
      %907 = vmatpush2.bf16.msra.mxu0 0
      %908 = vmatprep.subr.bf16.mxu0 0
      %909 = vmatpush2.bf16.msra.mxu0 0
      %910 = vmatprep.mubr.bf16.mxu0 0
      %911 = vmatmul.mubr.bf16.gmra.mxu0 %v479
      %v912 = vpop.f32.mrf.mxu0
      %v913 = vadd.f32 %v752, %v912
      %v914 = vpop.f32.mrf.mxu0
      %v915 = vpop.f32.mrf.mxu0
      %v916 = vadd.f32 %v755, %v915
      %v917 = vpop.f32.mrf.mxu0
      %918 = vmatprep.mubr.bf16.mxu0 0
      %919 = vmatmul.mubr.bf16.gmra.mxu0 %v482
      %v920 = vpop.f32.mrf.mxu0
      %v921 = vadd.f32 %v760, %v920
      %v922 = vpop.f32.mrf.mxu0
      %v923 = vpop.f32.mrf.mxu0
      %v924 = vadd.f32 %v763, %v923
      %v925 = vpop.f32.mrf.mxu0
      %926 = vmatprep.mubr.bf16.mxu0 0
      %927 = vmatmul.mubr.bf16.gmra.mxu0 %v485
      %v928 = vpop.f32.mrf.mxu0
      %v929 = vadd.f32 %v768, %v928
      %v930 = vpop.f32.mrf.mxu0
      %v931 = vpop.f32.mrf.mxu0
      %v932 = vadd.f32 %v771, %v931
      %v933 = vpop.f32.mrf.mxu0
      %934 = vmatprep.mubr.bf16.mxu0 0
      %935 = vmatmul.mubr.bf16.gmra.mxu0 %v488
      %v936 = vpop.f32.mrf.mxu0
      %v937 = vadd.f32 %v776, %v936
      %v938 = vpop.f32.mrf.mxu0
      %v939 = vpop.f32.mrf.mxu0
      %v940 = vadd.f32 %v779, %v939
      %v941 = vpop.f32.mrf.mxu0
      %942 = vmatprep.mubr.bf16.mxu0 0
      %943 = vmatmul.mubr.bf16.gmra.mxu0 %v491
      %v944 = vpop.f32.mrf.mxu0
      %v945 = vadd.f32 %v784, %v944
      %v946 = vpop.f32.mrf.mxu0
      %v947 = vpop.f32.mrf.mxu0
      %v948 = vadd.f32 %v787, %v947
      %v949 = vpop.f32.mrf.mxu0
      %950 = vmatprep.mubr.bf16.mxu0 0
      %951 = vmatmul.mubr.bf16.gmra.mxu0 %v494
      %v952 = vpop.f32.mrf.mxu0
      %v953 = vadd.f32 %v792, %v952
      %v954 = vpop.f32.mrf.mxu0
      %v955 = vpop.f32.mrf.mxu0
      %v956 = vadd.f32 %v795, %v955
      %v957 = vpop.f32.mrf.mxu0
      %958 = vmatprep.mubr.bf16.mxu0 0
      %959 = vmatmul.mubr.bf16.gmra.mxu0 %v497
      %v960 = vpop.f32.mrf.mxu0
      %v961 = vadd.f32 %v800, %v960
      %v962 = vpop.f32.mrf.mxu0
      %v963 = vpop.f32.mrf.mxu0
      %v964 = vadd.f32 %v803, %v963
      %v965 = vpop.f32.mrf.mxu0
      %966 = vmatprep.mubr.bf16.mxu0 0
      %967 = vmatmul.mubr.bf16.gmra.mxu0 %v500
      %v968 = vpop.f32.mrf.mxu0
      %v969 = vadd.f32 %v808, %v968
      %v970 = vpop.f32.mrf.mxu0
      %v971 = vpop.f32.mrf.mxu0
      %v972 = vadd.f32 %v811, %v971
      %v973 = vpop.f32.mrf.mxu0
      %974 = vmatprep.mubr.bf16.mxu0 0
      %975 = vmatmul.mubr.bf16.gmra.mxu0 %v503
      %v976 = vpop.f32.mrf.mxu0
      %v977 = vadd.f32 %v816, %v976
      %v978 = vpop.f32.mrf.mxu0
      %v979 = vpop.f32.mrf.mxu0
      %v980 = vadd.f32 %v819, %v979
      %v981 = vpop.f32.mrf.mxu0
      %982 = vmatprep.mubr.bf16.mxu0 0
      %983 = vmatmul.mubr.bf16.gmra.mxu0 %v506
      %v984 = vpop.f32.mrf.mxu0
      %v985 = vadd.f32 %v824, %v984
      %v986 = vpop.f32.mrf.mxu0
      %v987 = vpop.f32.mrf.mxu0
      %v988 = vadd.f32 %v827, %v987
      %v989 = vpop.f32.mrf.mxu0
      %990 = vmatprep.mubr.bf16.mxu0 0
      %991 = vmatmul.mubr.bf16.gmra.mxu0 %v509
      %v992 = vpop.f32.mrf.mxu0
      %v993 = vadd.f32 %v832, %v992
      %v994 = vpop.f32.mrf.mxu0
      %v995 = vpop.f32.mrf.mxu0
      %v996 = vadd.f32 %v835, %v995
      %v997 = vpop.f32.mrf.mxu0
      %998 = vmatprep.mubr.bf16.mxu0 0
      %999 = vmatmul.mubr.bf16.gmra.mxu0 %v512
      %v1000 = vpop.f32.mrf.mxu0
      %v1001 = vadd.f32 %v840, %v1000
      %v1002 = vpop.f32.mrf.mxu0
      %v1003 = vpop.f32.mrf.mxu0
      %v1004 = vadd.f32 %v843, %v1003
      %v1005 = vpop.f32.mrf.mxu0
      %1006 = vmatprep.mubr.bf16.mxu0 0
      %1007 = vmatmul.mubr.bf16.gmra.mxu0 %v515
      %v1008 = vpop.f32.mrf.mxu0
      %v1009 = vadd.f32 %v848, %v1008
      %v1010 = vpop.f32.mrf.mxu0
      %v1011 = vpop.f32.mrf.mxu0
      %v1012 = vadd.f32 %v851, %v1011
      %v1013 = vpop.f32.mrf.mxu0
      %1014 = vmatprep.mubr.bf16.mxu0 0
      %1015 = vmatmul.mubr.bf16.gmra.mxu0 %v518
      %v1016 = vpop.f32.mrf.mxu0
      %v1017 = vadd.f32 %v856, %v1016
      %v1018 = vpop.f32.mrf.mxu0
      %v1019 = vpop.f32.mrf.mxu0
      %v1020 = vadd.f32 %v859, %v1019
      %v1021 = vpop.f32.mrf.mxu0
      %1022 = vmatprep.mubr.bf16.mxu0 0
      %1023 = vmatmul.mubr.bf16.gmra.mxu0 %v521
      %v1024 = vpop.f32.mrf.mxu0
      %v1025 = vadd.f32 %v864, %v1024
      %v1026 = vpop.f32.mrf.mxu0
      %v1027 = vpop.f32.mrf.mxu0
      %v1028 = vadd.f32 %v867, %v1027
      %v1029 = vpop.f32.mrf.mxu0
      %1030 = vmatprep.mubr.bf16.mxu0 0
      %1031 = vmatmul.mubr.bf16.gmra.mxu0 %v524
      %v1032 = vpop.f32.mrf.mxu0
      %v1033 = vadd.f32 %v872, %v1032
      %v1034 = vpop.f32.mrf.mxu0
      %v1035 = vpop.f32.mrf.mxu0
      %v1036 = vadd.f32 %v875, %v1035
      %v1037 = vpop.f32.mrf.mxu0
      %1038 = vdwg.mxu0
      %v1039 = vld [vmem:[%s2] sm:$0x1]
      %v1041 = vlaneseq
      %v1042 = vshrl.u32 %v1041, 7
      %v1043 = vsub.s32 0, %v1042
      %v1044 = vrot.slane %v1039, %v1043
      %v1046 = vmul.f32 %v913, %v1044
      %v1047 = vmul.f32 %v916, %v1044
      %v1048 = vmul.f32 %v921, %v1044
      %v1049 = vmul.f32 %v924, %v1044
      %v1050 = vmul.f32 %v929, %v1044
      %v1051 = vmul.f32 %v932, %v1044
      %v1052 = vmul.f32 %v937, %v1044
      %v1053 = vmul.f32 %v940, %v1044
      %v1054 = vmul.f32 %v945, %v1044
      %v1055 = vmul.f32 %v948, %v1044
      %v1056 = vmul.f32 %v953, %v1044
      %v1057 = vmul.f32 %v956, %v1044
      %v1058 = vmul.f32 %v961, %v1044
      %v1059 = vmul.f32 %v964, %v1044
      %v1060 = vmul.f32 %v969, %v1044
      %v1061 = vmul.f32 %v972, %v1044
      %v1062 = vmul.f32 %v977, %v1044
      %v1063 = vmul.f32 %v980, %v1044
      %v1064 = vmul.f32 %v985, %v1044
      %v1065 = vmul.f32 %v988, %v1044
      %v1066 = vmul.f32 %v993, %v1044
      %v1067 = vmul.f32 %v996, %v1044
      %v1068 = vmul.f32 %v1001, %v1044
      %v1069 = vmul.f32 %v1004, %v1044
      %v1070 = vmul.f32 %v1009, %v1044
      %v1071 = vmul.f32 %v1012, %v1044
      %v1072 = vmul.f32 %v1017, %v1044
      %v1073 = vmul.f32 %v1020, %v1044
      %v1074 = vmul.f32 %v1025, %v1044
      %v1075 = vmul.f32 %v1028, %v1044
      %v1076 = vmul.f32 %v1033, %v1044
      %v1077 = vmul.f32 %v1036, %v1044
      %v1078 = vld [vmem:[%s3] sm:$0x1]
      %v1080 = vlaneseq
      %v1081 = vshrl.u32 %v1080, 7
      %v1082 = vsub.s32 0, %v1081
      %v1083 = vrot.slane %v1078, %v1082
      %v1085 = vadd.f32 %v1046, %v1083
      %v1086 = vadd.f32 %v1047, %v1083
      %v1087 = vadd.f32 %v1048, %v1083
      %v1088 = vadd.f32 %v1049, %v1083
      %v1089 = vadd.f32 %v1050, %v1083
      %v1090 = vadd.f32 %v1051, %v1083
      %v1091 = vadd.f32 %v1052, %v1083
      %v1092 = vadd.f32 %v1053, %v1083
      %v1093 = vadd.f32 %v1054, %v1083
      %v1094 = vadd.f32 %v1055, %v1083
      %v1095 = vadd.f32 %v1056, %v1083
      %v1096 = vadd.f32 %v1057, %v1083
      %v1097 = vadd.f32 %v1058, %v1083
      %v1098 = vadd.f32 %v1059, %v1083
      %v1099 = vadd.f32 %v1060, %v1083
      %v1100 = vadd.f32 %v1061, %v1083
      %v1101 = vadd.f32 %v1062, %v1083
      %v1102 = vadd.f32 %v1063, %v1083
      %v1103 = vadd.f32 %v1064, %v1083
      %v1104 = vadd.f32 %v1065, %v1083
      %v1105 = vadd.f32 %v1066, %v1083
      %v1106 = vadd.f32 %v1067, %v1083
      %v1107 = vadd.f32 %v1068, %v1083
      %v1108 = vadd.f32 %v1069, %v1083
      %v1109 = vadd.f32 %v1070, %v1083
      %v1110 = vadd.f32 %v1071, %v1083
      %v1111 = vadd.f32 %v1072, %v1083
      %v1112 = vadd.f32 %v1073, %v1083
      %v1113 = vadd.f32 %v1074, %v1083
      %v1114 = vadd.f32 %v1075, %v1083
      %v1115 = vadd.f32 %v1076, %v1083
      %v1116 = vadd.f32 %v1077, %v1083
      %v1117 = vmax.f32 %v1085, 0.0
      %v1118 = vmax.f32 %v1086, 0.0
      %v1119 = vmax.f32 %v1087, 0.0
      %v1120 = vmax.f32 %v1088, 0.0
      %v1121 = vmax.f32 %v1089, 0.0
      %v1122 = vmax.f32 %v1090, 0.0
      %v1123 = vmax.f32 %v1091, 0.0
      %v1124 = vmax.f32 %v1092, 0.0
      %v1125 = vmax.f32 %v1093, 0.0
      %v1126 = vmax.f32 %v1094, 0.0
      %v1127 = vmax.f32 %v1095, 0.0
      %v1128 = vmax.f32 %v1096, 0.0
      %v1129 = vmax.f32 %v1097, 0.0
      %v1130 = vmax.f32 %v1098, 0.0
      %v1131 = vmax.f32 %v1099, 0.0
      %v1132 = vmax.f32 %v1100, 0.0
      %v1133 = vmax.f32 %v1101, 0.0
      %v1134 = vmax.f32 %v1102, 0.0
      %v1135 = vmax.f32 %v1103, 0.0
      %v1136 = vmax.f32 %v1104, 0.0
      %v1137 = vmax.f32 %v1105, 0.0
      %v1138 = vmax.f32 %v1106, 0.0
      %v1139 = vmax.f32 %v1107, 0.0
      %v1140 = vmax.f32 %v1108, 0.0
      %v1141 = vmax.f32 %v1109, 0.0
      %v1142 = vmax.f32 %v1110, 0.0
      %v1143 = vmax.f32 %v1111, 0.0
      %v1144 = vmax.f32 %v1112, 0.0
      %v1145 = vmax.f32 %v1113, 0.0
      %v1146 = vmax.f32 %v1114, 0.0
      %v1147 = vmax.f32 %v1115, 0.0
      %v1148 = vmax.f32 %v1116, 0.0
      %v1149 = vpack.c.bf16 %v1118, %v1117
      %v1150 = vpack.c.bf16 %v1120, %v1119
      %v1151 = vpack.c.bf16 %v1122, %v1121
      %v1152 = vpack.c.bf16 %v1124, %v1123
      %v1153 = vpack.c.bf16 %v1126, %v1125
      %v1154 = vpack.c.bf16 %v1128, %v1127
      %v1155 = vpack.c.bf16 %v1130, %v1129
      %v1156 = vpack.c.bf16 %v1132, %v1131
      %v1157 = vpack.c.bf16 %v1134, %v1133
      %v1158 = vpack.c.bf16 %v1136, %v1135
      %v1159 = vpack.c.bf16 %v1138, %v1137
      %v1160 = vpack.c.bf16 %v1140, %v1139
      %v1161 = vpack.c.bf16 %v1142, %v1141
      %v1162 = vpack.c.bf16 %v1144, %v1143
      %v1163 = vpack.c.bf16 %v1146, %v1145
      %v1164 = vpack.c.bf16 %v1148, %v1147
      %v1181 = vunpack.c.l.b16 %v1149
      %v1182 = vunpack.c.h.b16 %v1149
      %v1183 = vunpack.c.l.b16 %v1150
      %v1184 = vunpack.c.h.b16 %v1150
      %v1185 = vunpack.c.l.b16 %v1151
      %v1186 = vunpack.c.h.b16 %v1151
      %v1187 = vunpack.c.l.b16 %v1152
      %v1188 = vunpack.c.h.b16 %v1152
      %v1189 = vunpack.c.l.b16 %v1153
      %v1190 = vunpack.c.h.b16 %v1153
      %v1191 = vunpack.c.l.b16 %v1154
      %v1192 = vunpack.c.h.b16 %v1154
      %v1193 = vunpack.c.l.b16 %v1155
      %v1194 = vunpack.c.h.b16 %v1155
      %v1195 = vunpack.c.l.b16 %v1156
      %v1196 = vunpack.c.h.b16 %v1156
      %v1197 = vunpack.c.l.b16 %v1157
      %v1198 = vunpack.c.h.b16 %v1157
      %v1199 = vunpack.c.l.b16 %v1158
      %v1200 = vunpack.c.h.b16 %v1158
      %v1201 = vunpack.c.l.b16 %v1159
      %v1202 = vunpack.c.h.b16 %v1159
      %v1203 = vunpack.c.l.b16 %v1160
      %v1204 = vunpack.c.h.b16 %v1160
      %v1205 = vunpack.c.l.b16 %v1161
      %v1206 = vunpack.c.h.b16 %v1161
      %v1207 = vunpack.c.l.b16 %v1162
      %v1208 = vunpack.c.h.b16 %v1162
      %v1209 = vunpack.c.l.b16 %v1163
      %v1210 = vunpack.c.h.b16 %v1163
      %v1211 = vunpack.c.l.b16 %v1164
      %v1212 = vunpack.c.h.b16 %v1164
      %v1213 = vpack.c.b16 %v1181, %v1181
      %v1214 = vpack.c.b16 %v1182, %v1182
      %v1215 = vpack.c.b16 %v1183, %v1183
      %v1216 = vpack.c.b16 %v1184, %v1184
      %v1217 = vpack.c.b16 %v1185, %v1185
      %v1218 = vpack.c.b16 %v1186, %v1186
      %v1219 = vpack.c.b16 %v1187, %v1187
      %v1220 = vpack.c.b16 %v1188, %v1188
      %v1221 = vpack.c.b16 %v1189, %v1189
      %v1222 = vpack.c.b16 %v1190, %v1190
      %v1223 = vpack.c.b16 %v1191, %v1191
      %v1224 = vpack.c.b16 %v1192, %v1192
      %v1225 = vpack.c.b16 %v1193, %v1193
      %v1226 = vpack.c.b16 %v1194, %v1194
      %v1227 = vpack.c.b16 %v1195, %v1195
      %v1228 = vpack.c.b16 %v1196, %v1196
      %v1229 = vpack.c.b16 %v1197, %v1197
      %v1230 = vpack.c.b16 %v1198, %v1198
      %v1231 = vpack.c.b16 %v1199, %v1199
      %v1232 = vpack.c.b16 %v1200, %v1200
      %v1233 = vpack.c.b16 %v1201, %v1201
      %v1234 = vpack.c.b16 %v1202, %v1202
      %v1235 = vpack.c.b16 %v1203, %v1203
      %v1236 = vpack.c.b16 %v1204, %v1204
      %v1237 = vpack.c.b16 %v1205, %v1205
      %v1238 = vpack.c.b16 %v1206, %v1206
      %v1239 = vpack.c.b16 %v1207, %v1207
      %v1240 = vpack.c.b16 %v1208, %v1208
      %v1241 = vpack.c.b16 %v1209, %v1209
      %v1242 = vpack.c.b16 %v1210, %v1210
      %v1243 = vpack.c.b16 %v1211, %v1211
      %v1244 = vpack.c.b16 %v1212, %v1212
      %1277 = vst [vmem:[%s202] sm:$0xf] %v1213
      %1278 = vst [vmem:[%s202 + $0x4] sm:$0xf] %v1214
      %1279 = vst [vmem:[%s202 + $0x8] sm:$0xf] %v1215
      %1280 = vst [vmem:[%s202 + $0xc] sm:$0xf] %v1216
      %1281 = vst [vmem:[%s202 + $0x10] sm:$0xf] %v1217
      %1282 = vst [vmem:[%s202 + $0x14] sm:$0xf] %v1218
      %1283 = vst [vmem:[%s202 + $0x18] sm:$0xf] %v1219
      %1284 = vst [vmem:[%s202 + $0x1c] sm:$0xf] %v1220
      %1285 = vst [vmem:[%s202 + $0x20] sm:$0xf] %v1221
      %1286 = vst [vmem:[%s202 + $0x24] sm:$0xf] %v1222
      %1287 = vst [vmem:[%s202 + $0x28] sm:$0xf] %v1223
      %1288 = vst [vmem:[%s202 + $0x2c] sm:$0xf] %v1224
      %1289 = vst [vmem:[%s202 + $0x30] sm:$0xf] %v1225
      %1290 = vst [vmem:[%s202 + $0x34] sm:$0xf] %v1226
      %1291 = vst [vmem:[%s202 + $0x38] sm:$0xf] %v1227
      %1292 = vst [vmem:[%s202 + $0x3c] sm:$0xf] %v1228
      %1293 = vst [vmem:[%s202 + $0x40] sm:$0xf] %v1229
      %1294 = vst [vmem:[%s202 + $0x44] sm:$0xf] %v1230
      %1295 = vst [vmem:[%s202 + $0x48] sm:$0xf] %v1231
      %1296 = vst [vmem:[%s202 + $0x4c] sm:$0xf] %v1232
      %1297 = vst [vmem:[%s202 + $0x50] sm:$0xf] %v1233
      %1298 = vst [vmem:[%s202 + $0x54] sm:$0xf] %v1234
      %1299 = vst [vmem:[%s202 + $0x58] sm:$0xf] %v1235
      %1300 = vst [vmem:[%s202 + $0x5c] sm:$0xf] %v1236
      %1301 = vst [vmem:[%s202 + $0x60] sm:$0xf] %v1237
      %1302 = vst [vmem:[%s202 + $0x64] sm:$0xf] %v1238
      %1303 = vst [vmem:[%s202 + $0x68] sm:$0xf] %v1239
      %1304 = vst [vmem:[%s202 + $0x6c] sm:$0xf] %v1240
      %1305 = vst [vmem:[%s202 + $0x70] sm:$0xf] %v1241
      %1306 = vst [vmem:[%s202 + $0x74] sm:$0xf] %v1242
      %1307 = vst [vmem:[%s202 + $0x78] sm:$0xf] %v1243
      %1308 = vst [vmem:[%s202 + $0x7c] sm:$0xf] %v1244
      %s1309 = smul.u32 32, %s15
      %p1310 = scmp.lt.s32.totalorder %s1309, 63
      %s1311 = scalar_select %p1310, %s1309, 63
      %s1312 = smul.addr %s1311, 4
      %s1313 = scalar_lea.vmem %s4, %s1312
      // Predicated region
      $region37: #{res50_block_forward.2} parent=35 // pred_check
        %p1314 = pneg %p122
      $region38: #{res50_block_forward.2} parent=35 // pred_check_branch
        %1316 = sbr.rel (%p1314) target = $region40
      $region39: #{res50_block_forward.2} parent=35 // pred_region
        %s1317 = smul.u32 32, %s15
      $region40: #{res50_block_forward.2} parent=35 // pred_fallthru
        _
    $region36: #{res50_block_forward.2} parent=5 // pred_fallthru
      _
    %p1318 = scmp.le.s32.totalorder 2, %s10
    // Predicated region
    $region41: #{res50_block_forward.2} parent=5 // pred_check
      %p1319 = pneg %p1318
    $region42: #{res50_block_forward.2} parent=5 // pred_check_branch
      %1321 = sbr.rel (%p1319) target = $region44
    $region43: #{res50_block_forward.2} parent=5 // pred_region
      %s1322 = ssub.s32 %s10, 2
      // Predicated region
      $region45: #{res50_block_forward.2} parent=43 // pred_check
        %p1323 = pneg %p128
      $region46: #{res50_block_forward.2} parent=43 // pred_check_branch
        %1325 = sbr.rel (%p1323) target = $region48
      $region47: #{res50_block_forward.2} parent=43 // pred_region
        %s1326 = smul.u32 32, %s16
        %p1327 = scmp.lt.s32.totalorder %s1326, 63
        %s1328 = scalar_select %p1327, %s1326, 63
        %s1329 = smul.addr %s1328, 4
        %s1330 = scalar_lea.vmem %s4, %s1329
      $region48: #{res50_block_forward.2} parent=43 // pred_fallthru
        _
    $region44: #{res50_block_forward.2} parent=5 // pred_fallthru
      _
  $region6: #{res50_block_forward.2} parent=0 // loop_footer
    %s14 = sadd.s32 1, %s10
  $region7: #{res50_block_forward.2} parent=0 // loop_footer_branch
    %9 = sbr.rel target = $region3
  $region8: #{res50_block_forward.2} parent=0 // loop_exit
    _

// kernel: res50_block_forward.3
$region0: #{res50_block_forward.3}
  #allocation0 [shape = 'u32[]', space=smem, size = 0x4, offset = 0x4, fixed_abs, tag = 'smem constant byte address 0x4 - core index']
  #allocation1 [shape = 'u32[144,128]{1,0:T(1,128)}', space=vmem, size = 0x12000, scoped, tag = 'internal scratch']
  %s0 = inlined_call_operand.vmem [shape: bf16[128,1152], index: 0, kind: input, shape index: {}]
  %s1 = inlined_call_operand.vmem [shape: bf16[1152,128], index: 1, kind: input, shape index: {}]
  %s2 = inlined_call_operand.vmem [shape: f32[1,128], index: 2, kind: input, shape index: {}]
  %s3 = inlined_call_operand.vmem [shape: f32[1,128], index: 3, kind: input, shape index: {}]
  %s4 = inlined_call_operand.vmem [shape: bf16[128,128], index: 4, kind: input, shape index: {}]
  %s5 = inlined_call_operand.vmem [shape: f32[1,128], index: 5, kind: input, shape index: {}]
  %s6 = inlined_call_operand.vmem [shape: f32[1,128], index: 6, kind: input, shape index: {}]
  %s7 = inlined_call_operand.vmem [shape: bf16[128,128], index: 7, kind: input, shape index: {}]
  %s8 = inlined_call_operand.vmem [shape: bf16[128,128], index: 8, kind: input, shape index: {}]
  %s9 = inlined_call_operand.vmem [shape: f32[1,128], index: 9, kind: input, shape index: {}]
  %s10 = inlined_call_operand.vmem [shape: f32[1,128], index: 10, kind: input, shape index: {}]
  %s11 = inlined_call_operand.hbm [shape: f32[128,128], index: 11, kind: output, shape index: {}]
  %s12 = sld [smem:[#allocation0]]
  $region77: #{res50_block_forward.3} parent=0
    _
  %s14 = ssub.s32 1, %s12
  %s15 = scalar_select 0, %s14, %s12
  $region1: #{res50_block_forward.3} parent=0
    #allocation2 [shape = 'u8[65536]{0}', space=vmem, size = 0x10000, scoped, tag = 'output window, operand 0']
    #allocation3 [shape = 's32[2]{0}', space=sflag, size = 0x8, scoped, tag = 'scoped memory for res50_block_forward.3']
    %16 = vsyncpa [#allocation3], 0
    %s17 = scalar_lea.sflag [#allocation3], 1
    %18 = vsyncpa %s17, 0
    loop: start=0, step=1, limit=4
    $region2: #{res50_block_forward.3} parent=1 // loop_pre_header
      _
    $region3: #{res50_block_forward.3} parent=1 // loop_header
      %s20 = sphi 0, %s24
      %p21 = scmp.ge.s32.totalorder %s20, 4
      %s30 = sphi 0, %s32
      %s33 = sphi 0, %s30
      %s34 = sphi 0, %s33
      %s50 = sphi 0, %s34
      %s54 = sphi 0, %s54
      %s56 = sphi 0, %s54
      %s57 = sphi 0, %s56
      %s71 = sphi 0, %s57
      %s75 = sphi 0, %s75
      %s77 = sphi 0, %s75
      %s78 = sphi 0, %s77
      %s92 = sphi 0, %s78
      %s96 = sphi 0, %s96
      %s98 = sphi 0, %s96
      %s99 = sphi 0, %s98
      %s113 = sphi 0, %s99
      %s117 = sphi 0, %s117
      %s119 = sphi 0, %s117
      %s120 = sphi 0, %s119
      %s134 = sphi 0, %s120
      %s138 = sphi 0, %s138
      %s140 = sphi 0, %s138
      %s141 = sphi 0, %s140
      %s155 = sphi 0, %s141
      %s159 = sphi 0, %s159
      %s161 = sphi 0, %s159
      %s162 = sphi 0, %s161
      %s176 = sphi 0, %s162
      %s182 = sphi 0, %s184
      %s185 = sphi 0, %s182
      %s186 = sphi 0, %s185
      %s202 = sphi 0, %s186
      %s206 = sphi 0, %s206
      %s208 = sphi 0, %s206
      %s209 = sphi 0, %s208
      %s223 = sphi 0, %s209
      %s227 = sphi 0, %s227
      %s229 = sphi 0, %s227
      %s230 = sphi 0, %s229
      %s244 = sphi 0, %s230
      %s248 = sphi 0, %s248
      %s250 = sphi 0, %s248
      %s251 = sphi 0, %s250
      %s265 = sphi 0, %s251
      %s271 = sphi 0, %s273
      %s274 = sphi 0, %s271
      %s275 = sphi 0, %s274
      %s291 = sphi 0, %s275
    $region4: #{res50_block_forward.3} parent=1 // loop_header_branch
      %23 = sbr.rel (%p21) target = $region8
    $region5: #{res50_block_forward.3} parent=1 // loop_body
      %s25 = ssub.s32 %s20, 1
      %s26 = ssub.s32 %s20, 2
      %s27 = sadd.s32 %s20, 1
      %s28 = ssub.s32 %s20, %s27
      %p29 = scmp.eq.s32.totalorder %s28, 0
      %s31 = sadd.s32 %s30, 1
      %s32 = scalar_select %p29, %s30, %s31
      %p35 = pneg %p29
      %p36 = scmp.eq.s32.totalorder %s20, 1
      %p37 = por %p35, %p36
      %p38 = scmp.ne.s32.totalorder %s30, %s33
      %p39 = scmp.eq.s32.totalorder %s20, 0
      %p40 = por %p38, %p39
      %p41 = scmp.ne.s32.totalorder %s30, %s33
      %p42 = scmp.eq.s32.totalorder %s25, 1
      %p43 = por %p41, %p42
      %p44 = scmp.ne.s32.totalorder %s33, %s34
      %p45 = scmp.eq.s32.totalorder %s25, 0
      %p46 = por %p44, %p45
      %p47 = scmp.ne.s32.totalorder %s33, %s34
      %p48 = scmp.eq.s32.totalorder %s26, 1
      %p49 = por %p47, %p48
      %p51 = scmp.ne.s32.totalorder %s34, %s50
      %p52 = scmp.eq.s32.totalorder %s26, 0
      %p53 = por %p51, %p52
      %s55 = sadd.s32 %s54, 1
      %p58 = scmp.eq.s32.totalorder %s20, 1
      %p59 = scmp.ne.s32.totalorder %s54, %s56
      %p60 = scmp.eq.s32.totalorder %s20, 0
      %p61 = por %p59, %p60
      %p62 = scmp.ne.s32.totalorder %s54, %s56
      %p63 = scmp.eq.s32.totalorder %s25, 1
      %p64 = por %p62, %p63
      %p65 = scmp.ne.s32.totalorder %s56, %s57
      %p66 = scmp.eq.s32.totalorder %s25, 0
      %p67 = por %p65, %p66
      %p68 = scmp.ne.s32.totalorder %s56, %s57
      %p69 = scmp.eq.s32.totalorder %s26, 1
      %p70 = por %p68, %p69
      %p72 = scmp.ne.s32.totalorder %s57, %s71
      %p73 = scmp.eq.s32.totalorder %s26, 0
      %p74 = por %p72, %p73
      %s76 = sadd.s32 %s75, 1
      %p79 = scmp.eq.s32.totalorder %s20, 1
      %p80 = scmp.ne.s32.totalorder %s75, %s77
      %p81 = scmp.eq.s32.totalorder %s20, 0
      %p82 = por %p80, %p81
      %p83 = scmp.ne.s32.totalorder %s75, %s77
      %p84 = scmp.eq.s32.totalorder %s25, 1
      %p85 = por %p83, %p84
      %p86 = scmp.ne.s32.totalorder %s77, %s78
      %p87 = scmp.eq.s32.totalorder %s25, 0
      %p88 = por %p86, %p87
      %p89 = scmp.ne.s32.totalorder %s77, %s78
      %p90 = scmp.eq.s32.totalorder %s26, 1
      %p91 = por %p89, %p90
      %p93 = scmp.ne.s32.totalorder %s78, %s92
      %p94 = scmp.eq.s32.totalorder %s26, 0
      %p95 = por %p93, %p94
      %s97 = sadd.s32 %s96, 1
      %p100 = scmp.eq.s32.totalorder %s20, 1
      %p101 = scmp.ne.s32.totalorder %s96, %s98
      %p102 = scmp.eq.s32.totalorder %s20, 0
      %p103 = por %p101, %p102
      %p104 = scmp.ne.s32.totalorder %s96, %s98
      %p105 = scmp.eq.s32.totalorder %s25, 1
      %p106 = por %p104, %p105
      %p107 = scmp.ne.s32.totalorder %s98, %s99
      %p108 = scmp.eq.s32.totalorder %s25, 0
      %p109 = por %p107, %p108
      %p110 = scmp.ne.s32.totalorder %s98, %s99
      %p111 = scmp.eq.s32.totalorder %s26, 1
      %p112 = por %p110, %p111
      %p114 = scmp.ne.s32.totalorder %s99, %s113
      %p115 = scmp.eq.s32.totalorder %s26, 0
      %p116 = por %p114, %p115
      %s118 = sadd.s32 %s117, 1
      %p121 = scmp.eq.s32.totalorder %s20, 1
      %p122 = scmp.ne.s32.totalorder %s117, %s119
      %p123 = scmp.eq.s32.totalorder %s20, 0
      %p124 = por %p122, %p123
      %p125 = scmp.ne.s32.totalorder %s117, %s119
      %p126 = scmp.eq.s32.totalorder %s25, 1
      %p127 = por %p125, %p126
      %p128 = scmp.ne.s32.totalorder %s119, %s120
      %p129 = scmp.eq.s32.totalorder %s25, 0
      %p130 = por %p128, %p129
      %p131 = scmp.ne.s32.totalorder %s119, %s120
      %p132 = scmp.eq.s32.totalorder %s26, 1
      %p133 = por %p131, %p132
      %p135 = scmp.ne.s32.totalorder %s120, %s134
      %p136 = scmp.eq.s32.totalorder %s26, 0
      %p137 = por %p135, %p136
      %s139 = sadd.s32 %s138, 1
      %p142 = scmp.eq.s32.totalorder %s20, 1
      %p143 = scmp.ne.s32.totalorder %s138, %s140
      %p144 = scmp.eq.s32.totalorder %s20, 0
      %p145 = por %p143, %p144
      %p146 = scmp.ne.s32.totalorder %s138, %s140
      %p147 = scmp.eq.s32.totalorder %s25, 1
      %p148 = por %p146, %p147
      %p149 = scmp.ne.s32.totalorder %s140, %s141
      %p150 = scmp.eq.s32.totalorder %s25, 0
      %p151 = por %p149, %p150
      %p152 = scmp.ne.s32.totalorder %s140, %s141
      %p153 = scmp.eq.s32.totalorder %s26, 1
      %p154 = por %p152, %p153
      %p156 = scmp.ne.s32.totalorder %s141, %s155
      %p157 = scmp.eq.s32.totalorder %s26, 0
      %p158 = por %p156, %p157
      %s160 = sadd.s32 %s159, 1
      %p163 = scmp.eq.s32.totalorder %s20, 1
      %p164 = scmp.ne.s32.totalorder %s159, %s161
      %p165 = scmp.eq.s32.totalorder %s20, 0
      %p166 = por %p164, %p165
      %p167 = scmp.ne.s32.totalorder %s159, %s161
      %p168 = scmp.eq.s32.totalorder %s25, 1
      %p169 = por %p167, %p168
      %p170 = scmp.ne.s32.totalorder %s161, %s162
      %p171 = scmp.eq.s32.totalorder %s25, 0
      %p172 = por %p170, %p171
      %p173 = scmp.ne.s32.totalorder %s161, %s162
      %p174 = scmp.eq.s32.totalorder %s26, 1
      %p175 = por %p173, %p174
      %p177 = scmp.ne.s32.totalorder %s162, %s176
      %p178 = scmp.eq.s32.totalorder %s26, 0
      %p179 = por %p177, %p178
      %s180 = ssub.s32 %s20, %s27
      %p181 = scmp.eq.s32.totalorder %s180, 0
      %s183 = sadd.s32 %s182, 1
      %s184 = scalar_select %p181, %s182, %s183
      %p187 = pneg %p181
      %p188 = scmp.eq.s32.totalorder %s20, 1
      %p189 = por %p187, %p188
      %p190 = scmp.ne.s32.totalorder %s182, %s185
      %p191 = scmp.eq.s32.totalorder %s20, 0
      %p192 = por %p190, %p191
      %p193 = scmp.ne.s32.totalorder %s182, %s185
      %p194 = scmp.eq.s32.totalorder %s25, 1
      %p195 = por %p193, %p194
      %p196 = scmp.ne.s32.totalorder %s185, %s186
      %p197 = scmp.eq.s32.totalorder %s25, 0
      %p198 = por %p196, %p197
      %p199 = scmp.ne.s32.totalorder %s185, %s186
      %p200 = scmp.eq.s32.totalorder %s26, 1
      %p201 = por %p199, %p200
      %p203 = scmp.ne.s32.totalorder %s186, %s202
      %p204 = scmp.eq.s32.totalorder %s26, 0
      %p205 = por %p203, %p204
      %s207 = sadd.s32 %s206, 1
      %p210 = scmp.eq.s32.totalorder %s20, 1
      %p211 = scmp.ne.s32.totalorder %s206, %s208
      %p212 = scmp.eq.s32.totalorder %s20, 0
      %p213 = por %p211, %p212
      %p214 = scmp.ne.s32.totalorder %s206, %s208
      %p215 = scmp.eq.s32.totalorder %s25, 1
      %p216 = por %p214, %p215
      %p217 = scmp.ne.s32.totalorder %s208, %s209
      %p218 = scmp.eq.s32.totalorder %s25, 0
      %p219 = por %p217, %p218
      %p220 = scmp.ne.s32.totalorder %s208, %s209
      %p221 = scmp.eq.s32.totalorder %s26, 1
      %p222 = por %p220, %p221
      %p224 = scmp.ne.s32.totalorder %s209, %s223
      %p225 = scmp.eq.s32.totalorder %s26, 0
      %p226 = por %p224, %p225
      %s228 = sadd.s32 %s227, 1
      %p231 = scmp.eq.s32.totalorder %s20, 1
      %p232 = scmp.ne.s32.totalorder %s227, %s229
      %p233 = scmp.eq.s32.totalorder %s20, 0
      %p234 = por %p232, %p233
      %p235 = scmp.ne.s32.totalorder %s227, %s229
      %p236 = scmp.eq.s32.totalorder %s25, 1
      %p237 = por %p235, %p236
      %p238 = scmp.ne.s32.totalorder %s229, %s230
      %p239 = scmp.eq.s32.totalorder %s25, 0
      %p240 = por %p238, %p239
      %p241 = scmp.ne.s32.totalorder %s229, %s230
      %p242 = scmp.eq.s32.totalorder %s26, 1
      %p243 = por %p241, %p242
      %p245 = scmp.ne.s32.totalorder %s230, %s244
      %p246 = scmp.eq.s32.totalorder %s26, 0
      %p247 = por %p245, %p246
      %s249 = sadd.s32 %s248, 1
      %p252 = scmp.eq.s32.totalorder %s20, 1
      %p253 = scmp.ne.s32.totalorder %s248, %s250
      %p254 = scmp.eq.s32.totalorder %s20, 0
      %p255 = por %p253, %p254
      %p256 = scmp.ne.s32.totalorder %s248, %s250
      %p257 = scmp.eq.s32.totalorder %s25, 1
      %p258 = por %p256, %p257
      %p259 = scmp.ne.s32.totalorder %s250, %s251
      %p260 = scmp.eq.s32.totalorder %s25, 0
      %p261 = por %p259, %p260
      %p262 = scmp.ne.s32.totalorder %s250, %s251
      %p263 = scmp.eq.s32.totalorder %s26, 1
      %p264 = por %p262, %p263
      %p266 = scmp.ne.s32.totalorder %s251, %s265
      %p267 = scmp.eq.s32.totalorder %s26, 0
      %p268 = por %p266, %p267
      %s269 = ssub.s32 %s20, %s27
      %p270 = scmp.eq.s32.totalorder %s269, 0
      %s272 = sadd.s32 %s271, 1
      %s273 = scalar_select %p270, %s271, %s272
      %p276 = pneg %p270
      %p277 = scmp.eq.s32.totalorder %s20, 1
      %p278 = por %p276, %p277
      %p279 = scmp.ne.s32.totalorder %s271, %s274
      %p280 = scmp.eq.s32.totalorder %s20, 0
      %p281 = por %p279, %p280
      %p282 = scmp.ne.s32.totalorder %s271, %s274
      %p283 = scmp.eq.s32.totalorder %s25, 1
      %p284 = por %p282, %p283
      %p285 = scmp.ne.s32.totalorder %s274, %s275
      %p286 = scmp.eq.s32.totalorder %s25, 0
      %p287 = por %p285, %p286
      %p288 = scmp.ne.s32.totalorder %s274, %s275
      %p289 = scmp.eq.s32.totalorder %s26, 1
      %p290 = por %p288, %p289
      %p292 = scmp.ne.s32.totalorder %s275, %s291
      %p293 = scmp.eq.s32.totalorder %s26, 0
      %p294 = por %p292, %p293
      %p295 = scmp.le.s32.totalorder 1, %s20
      %p296 = scmp.lt.s32.totalorder %s20, 3
      %p297 = pnand %p295, %p296
      %p298 = pneg %p297
      // Predicated region
      $region9: #{res50_block_forward.3} parent=5 // pred_check
        _
      $region10: #{res50_block_forward.3} parent=5 // pred_check_branch
        %300 = sbr.rel (%p297) target = $region12
      $region11: #{res50_block_forward.3} parent=5 // pred_region
        %s301 = ssub.s32 %s20, 1
        // Predicated region
        $region13: #{res50_block_forward.3} parent=11 // pred_check
          %p302 = pneg %p67
        $region14: #{res50_block_forward.3} parent=11 // pred_check_branch
          %304 = sbr.rel (%p302) target = $region16
        $region15: #{res50_block_forward.3} parent=11 // pred_region
          _
        $region16: #{res50_block_forward.3} parent=11 // pred_fallthru
          _
        // Predicated region
        $region17: #{res50_block_forward.3} parent=11 // pred_check
          %p305 = pneg %p88
        $region18: #{res50_block_forward.3} parent=11 // pred_check_branch
          %307 = sbr.rel (%p305) target = $region20
        $region19: #{res50_block_forward.3} parent=11 // pred_region
          _
        $region20: #{res50_block_forward.3} parent=11 // pred_fallthru
          _
        // Predicated region
        $region21: #{res50_block_forward.3} parent=11 // pred_check
          %p308 = pneg %p109
        $region22: #{res50_block_forward.3} parent=11 // pred_check_branch
          %310 = sbr.rel (%p308) target = $region24
        $region23: #{res50_block_forward.3} parent=11 // pred_region
          _
        $region24: #{res50_block_forward.3} parent=11 // pred_fallthru
          _
        // Predicated region
        $region25: #{res50_block_forward.3} parent=11 // pred_check
          %p311 = pneg %p130
        $region26: #{res50_block_forward.3} parent=11 // pred_check_branch
          %313 = sbr.rel (%p311) target = $region28
        $region27: #{res50_block_forward.3} parent=11 // pred_region
          _
        $region28: #{res50_block_forward.3} parent=11 // pred_fallthru
          _
        // Predicated region
        $region29: #{res50_block_forward.3} parent=11 // pred_check
          %p314 = pneg %p151
        $region30: #{res50_block_forward.3} parent=11 // pred_check_branch
          %316 = sbr.rel (%p314) target = $region32
        $region31: #{res50_block_forward.3} parent=11 // pred_region
          _
        $region32: #{res50_block_forward.3} parent=11 // pred_fallthru
          _
        // Predicated region
        $region33: #{res50_block_forward.3} parent=11 // pred_check
          %p317 = pneg %p172
        $region34: #{res50_block_forward.3} parent=11 // pred_check_branch
          %319 = sbr.rel (%p317) target = $region36
        $region35: #{res50_block_forward.3} parent=11 // pred_region
          _
        $region36: #{res50_block_forward.3} parent=11 // pred_fallthru
          _
        // Predicated region
        $region37: #{res50_block_forward.3} parent=11 // pred_check
          %p320 = pneg %p219
        $region38: #{res50_block_forward.3} parent=11 // pred_check_branch
          %322 = sbr.rel (%p320) target = $region40
        $region39: #{res50_block_forward.3} parent=11 // pred_region
          _
        $region40: #{res50_block_forward.3} parent=11 // pred_fallthru
          _
        // Predicated region
        $region41: #{res50_block_forward.3} parent=11 // pred_check
          %p323 = pneg %p240
        $region42: #{res50_block_forward.3} parent=11 // pred_check_branch
          %325 = sbr.rel (%p323) target = $region44
        $region43: #{res50_block_forward.3} parent=11 // pred_region
          _
        $region44: #{res50_block_forward.3} parent=11 // pred_fallthru
          _
        // Predicated region
        $region45: #{res50_block_forward.3} parent=11 // pred_check
          %p326 = pneg %p261
        $region46: #{res50_block_forward.3} parent=11 // pred_check_branch
          %328 = sbr.rel (%p326) target = $region48
        $region47: #{res50_block_forward.3} parent=11 // pred_region
          _
        $region48: #{res50_block_forward.3} parent=11 // pred_fallthru
          _
      $region12: #{res50_block_forward.3} parent=5 // pred_fallthru
        _
      %p329 = scmp.lt.s32.totalorder %s20, 2
      // Predicated region
      $region49: #{res50_block_forward.3} parent=5 // pred_check
        %p330 = pneg %p329
      $region50: #{res50_block_forward.3} parent=5 // pred_check_branch
        %332 = sbr.rel (%p330) target = $region52
      $region51: #{res50_block_forward.3} parent=5 // pred_region
        // Predicated region
        $region53: #{res50_block_forward.3} parent=51 // pred_check
          %p333 = pneg %p40
        $region54: #{res50_block_forward.3} parent=51 // pred_check_branch
          %335 = sbr.rel (%p333) target = $region56
        $region55: #{res50_block_forward.3} parent=51 // pred_region
          %s336 = smul.u32 8, %s20
          %p337 = scmp.lt.s32.totalorder %s336, 15
          %s338 = scalar_select %p337, %s336, 15
          %s339 = smul.addr %s338, 9
          %s340 = smul.addr %s339, 4
          %s341 = scalar_lea.vmem %s0, %s340
          %s342 = smul.u32 8, %s20
        $region56: #{res50_block_forward.3} parent=51 // pred_fallthru
          _
        // Predicated region
        $region57: #{res50_block_forward.3} parent=51 // pred_check
          %p343 = pneg %p192
        $region58: #{res50_block_forward.3} parent=51 // pred_check_branch
          %345 = sbr.rel (%p343) target = $region60
        $region59: #{res50_block_forward.3} parent=51 // pred_region
          %s346 = smul.u32 8, %s20
          %p347 = scmp.lt.s32.totalorder %s346, 15
          %s348 = scalar_select %p347, %s346, 15
          %s349 = smul.addr %s348, 4
          %s350 = scalar_lea.vmem %s7, %s349
          %s351 = smul.u32 8, %s20
        $region60: #{res50_block_forward.3} parent=51 // pred_fallthru
          _
      $region52: #{res50_block_forward.3} parent=5 // pred_fallthru
        _
      %p352 = scmp.le.s32.totalorder 1, %s20
      %p353 = scmp.lt.s32.totalorder %s20, 3
      %p354 = pnand %p352, %p353
      %p355 = pneg %p354
      // Predicated region
      $region61: #{res50_block_forward.3} parent=5 // pred_check
        _
      $region62: #{res50_block_forward.3} parent=5 // pred_check_branch
        %357 = sbr.rel (%p354) target = $region64
      $region63: #{res50_block_forward.3} parent=5 // pred_region
        %s358 = ssub.s32 %s20, 1
        %s359 = smul.u32 8, %s25
        %p360 = scmp.lt.s32.totalorder %s359, 15
        %s361 = scalar_select %p360, %s359, 15
        %s362 = smul.addr %s361, 9
        %s363 = smul.addr %s362, 4
        %s364 = scalar_lea.vmem %s0, %s363
        %p365 = pneg %p46
        %p366 = pneg %p43
        %p367 = pneg %p67
        %p368 = pneg %p64
        %p369 = pneg %p88
        %p370 = pneg %p85
        %p371 = pneg %p109
        %p372 = pneg %p106
        %p373 = pneg %p130
        %p374 = pneg %p127
        %p375 = pneg %p151
        %p376 = pneg %p148
        %p377 = pneg %p172
        %p378 = pneg %p169
        %s379 = smul.u32 8, %s25
        %p380 = scmp.lt.s32.totalorder %s379, 15
        %s381 = scalar_select %p380, %s379, 15
        %s382 = smul.addr %s381, 4
        %s383 = scalar_lea.vmem %s7, %s382
        %p384 = pneg %p198
        %p385 = pneg %p195
        %p386 = pneg %p219
        %p387 = pneg %p216
        %p388 = pneg %p240
        %p389 = pneg %p237
        %p390 = pneg %p261
        %p391 = pneg %p258
        %p392 = pneg %p287
        %p393 = pneg %p284
        %s394 = sand.u32 %s274, 1
        %s395 = scalar_lea.sflag [#allocation3], %s394
        %s396 = sand.u32 %s274, 1
        %s397 = smul.addr %s396, 64
        %s398 = scalar_lea.vmem [#allocation2], %s397
        %s399 = smul.u32 8, %s25
        %p400 = scmp.lt.s32.totalorder %s399, 15
        %s401 = scalar_select %p400, %s399, 15
        %s402 = smul.addr %s401, 9
        %s403 = smul.addr %s402, 4
        %s404 = scalar_lea.vmem %s0, %s403
        %s405 = smul.u32 8, %s25
        %s406 = smul.u32 8, %s25
        %p407 = scmp.lt.s32.totalorder %s406, 15
        %s408 = scalar_select %p407, %s406, 15
        %s409 = smul.addr %s408, 4
        %s410 = scalar_lea.vmem %s7, %s409
        %s411 = smul.u32 8, %s25
        %s412 = smul.u32 8, %s25
        %v414 = vld [vmem:[%s404] sm:$0xff]
        %v415 = vld [vmem:[%s404 + $0x8] sm:$0xff]
        %v416 = vld [vmem:[%s404 + $0x10] sm:$0xff]
        %v417 = vld [vmem:[%s404 + $0x18] sm:$0xff]
        %v418 = vld [vmem:[%s404 + $0x20] sm:$0xf]
        %v419 = vld [vmem:[%s404 + $0x24] sm:$0xff]
        %v420 = vld [vmem:[%s404 + $0x2c] sm:$0xff]
        %v421 = vld [vmem:[%s404 + $0x34] sm:$0xff]
        %v422 = vld [vmem:[%s404 + $0x3c] sm:$0xff]
        %v423 = vld [vmem:[%s404 + $0x44] sm:$0xf]
        %v424 = vld [vmem:[%s404 + $0x48] sm:$0xff]
        %v425 = vld [vmem:[%s404 + $0x50] sm:$0xff]
        %v426 = vld [vmem:[%s404 + $0x58] sm:$0xff]
        %v427 = vld [vmem:[%s404 + $0x60] sm:$0xff]
        %v428 = vld [vmem:[%s404 + $0x68] sm:$0xf]
        %v429 = vld [vmem:[%s404 + $0x6c] sm:$0xff]
        %v430 = vld [vmem:[%s404 + $0x74] sm:$0xff]
        %v431 = vld [vmem:[%s404 + $0x7c] sm:$0xff]
        %v432 = vld [vmem:[%s404 + $0x84] sm:$0xff]
        %v433 = vld [vmem:[%s404 + $0x8c] sm:$0xf]
        %v434 = vld [vmem:[%s404 + $0x90] sm:$0xff]
        %v435 = vld [vmem:[%s404 + $0x98] sm:$0xff]
        %v436 = vld [vmem:[%s404 + $0xa0] sm:$0xff]
        %v437 = vld [vmem:[%s404 + $0xa8] sm:$0xff]
        %v438 = vld [vmem:[%s404 + $0xb0] sm:$0xf]
        %v439 = vld [vmem:[%s404 + $0xb4] sm:$0xff]
        %v440 = vld [vmem:[%s404 + $0xbc] sm:$0xff]
        %v441 = vld [vmem:[%s404 + $0xc4] sm:$0xff]
        %v442 = vld [vmem:[%s404 + $0xcc] sm:$0xff]
        %v443 = vld [vmem:[%s404 + $0xd4] sm:$0xf]
        %v444 = vld [vmem:[%s404 + $0xd8] sm:$0xff]
        %v445 = vld [vmem:[%s404 + $0xe0] sm:$0xff]
        %v446 = vld [vmem:[%s404 + $0xe8] sm:$0xff]
        %v447 = vld [vmem:[%s404 + $0xf0] sm:$0xff]
        %v448 = vld [vmem:[%s404 + $0xf8] sm:$0xf]
        %v449 = vld [vmem:[%s404 + $0xfc] sm:$0xff]
        %v450 = vld [vmem:[%s404 + $0x104] sm:$0xff]
        %v451 = vld [vmem:[%s404 + $0x10c] sm:$0xff]
        %v452 = vld [vmem:[%s404 + $0x114] sm:$0xff]
        %v453 = vld [vmem:[%s404 + $0x11c] sm:$0xf]
        %v454 = vld [vmem:[%s1] sm:$0xf]
        %v455 = vld [vmem:[%s1 + $0x4] sm:$0xf]
        %v456 = vld [vmem:[%s1 + $0x8] sm:$0xf]
        %v457 = vld [vmem:[%s1 + $0xc] sm:$0xf]
        %v458 = vld [vmem:[%s1 + $0x10] sm:$0xf]
        %v459 = vld [vmem:[%s1 + $0x14] sm:$0xf]
        %v460 = vld [vmem:[%s1 + $0x18] sm:$0xf]
        %v461 = vld [vmem:[%s1 + $0x1c] sm:$0xf]
        %v462 = vld [vmem:[%s1 + $0x20] sm:$0xf]
        %v463 = vld [vmem:[%s1 + $0x24] sm:$0xf]
        %v464 = vld [vmem:[%s1 + $0x28] sm:$0xf]
        %v465 = vld [vmem:[%s1 + $0x2c] sm:$0xf]
        %v466 = vld [vmem:[%s1 + $0x30] sm:$0xf]
        %v467 = vld [vmem:[%s1 + $0x34] sm:$0xf]
        %v468 = vld [vmem:[%s1 + $0x38] sm:$0xf]
        %v469 = vld [vmem:[%s1 + $0x3c] sm:$0xf]
        %v470 = vld [vmem:[%s1 + $0x40] sm:$0xf]
        %v471 = vld [vmem:[%s1 + $0x44] sm:$0xf]
        %v472 = vld [vmem:[%s1 + $0x48] sm:$0xf]
        %v473 = vld [vmem:[%s1 + $0x4c] sm:$0xf]
        %v474 = vld [vmem:[%s1 + $0x50] sm:$0xf]
        %v475 = vld [vmem:[%s1 + $0x54] sm:$0xf]
        %v476 = vld [vmem:[%s1 + $0x58] sm:$0xf]
        %v477 = vld [vmem:[%s1 + $0x5c] sm:$0xf]
        %v478 = vld [vmem:[%s1 + $0x60] sm:$0xf]
        %v479 = vld [vmem:[%s1 + $0x64] sm:$0xf]
        %v480 = vld [vmem:[%s1 + $0x68] sm:$0xf]
        %v481 = vld [vmem:[%s1 + $0x6c] sm:$0xf]
        %v482 = vld [vmem:[%s1 + $0x70] sm:$0xf]
        %v483 = vld [vmem:[%s1 + $0x74] sm:$0xf]
        %v484 = vld [vmem:[%s1 + $0x78] sm:$0xf]
        %v485 = vld [vmem:[%s1 + $0x7c] sm:$0xf]
        %v486 = vld [vmem:[%s1 + $0x80] sm:$0xf]
        %v487 = vld [vmem:[%s1 + $0x84] sm:$0xf]
        %v488 = vld [vmem:[%s1 + $0x88] sm:$0xf]
        %v489 = vld [vmem:[%s1 + $0x8c] sm:$0xf]
        %v490 = vld [vmem:[%s1 + $0x90] sm:$0xf]
        %v491 = vld [vmem:[%s1 + $0x94] sm:$0xf]
        %v492 = vld [vmem:[%s1 + $0x98] sm:$0xf]
        %v493 = vld [vmem:[%s1 + $0x9c] sm:$0xf]
        %v494 = vld [vmem:[%s1 + $0xa0] sm:$0xf]
        %v495 = vld [vmem:[%s1 + $0xa4] sm:$0xf]
        %v496 = vld [vmem:[%s1 + $0xa8] sm:$0xf]
        %v497 = vld [vmem:[%s1 + $0xac] sm:$0xf]
        %v498 = vld [vmem:[%s1 + $0xb0] sm:$0xf]
        %v499 = vld [vmem:[%s1 + $0xb4] sm:$0xf]
        %v500 = vld [vmem:[%s1 + $0xb8] sm:$0xf]
        %v501 = vld [vmem:[%s1 + $0xbc] sm:$0xf]
        %v502 = vld [vmem:[%s1 + $0xc0] sm:$0xf]
        %v503 = vld [vmem:[%s1 + $0xc4] sm:$0xf]
        %v504 = vld [vmem:[%s1 + $0xc8] sm:$0xf]
        %v505 = vld [vmem:[%s1 + $0xcc] sm:$0xf]
        %v506 = vld [vmem:[%s1 + $0xd0] sm:$0xf]
        %v507 = vld [vmem:[%s1 + $0xd4] sm:$0xf]
        %v508 = vld [vmem:[%s1 + $0xd8] sm:$0xf]
        %v509 = vld [vmem:[%s1 + $0xdc] sm:$0xf]
        %v510 = vld [vmem:[%s1 + $0xe0] sm:$0xf]
        %v511 = vld [vmem:[%s1 + $0xe4] sm:$0xf]
        %v512 = vld [vmem:[%s1 + $0xe8] sm:$0xf]
        %v513 = vld [vmem:[%s1 + $0xec] sm:$0xf]
        %v514 = vld [vmem:[%s1 + $0xf0] sm:$0xf]
        %v515 = vld [vmem:[%s1 + $0xf4] sm:$0xf]
        %v516 = vld [vmem:[%s1 + $0xf8] sm:$0xf]
        %v517 = vld [vmem:[%s1 + $0xfc] sm:$0xf]
        %v518 = vld [vmem:[%s1 + $0x100] sm:$0xf]
        %v519 = vld [vmem:[%s1 + $0x104] sm:$0xf]
        %v520 = vld [vmem:[%s1 + $0x108] sm:$0xf]
        %v521 = vld [vmem:[%s1 + $0x10c] sm:$0xf]
        %v522 = vld [vmem:[%s1 + $0x110] sm:$0xf]
        %v523 = vld [vmem:[%s1 + $0x114] sm:$0xf]
        %v524 = vld [vmem:[%s1 + $0x118] sm:$0xf]
        %v525 = vld [vmem:[%s1 + $0x11c] sm:$0xf]
        %v526 = vld [vmem:[%s1 + $0x120] sm:$0xf]
        %v527 = vld [vmem:[%s1 + $0x124] sm:$0xf]
        %v528 = vld [vmem:[%s1 + $0x128] sm:$0xf]
        %v529 = vld [vmem:[%s1 + $0x12c] sm:$0xf]
        %v530 = vld [vmem:[%s1 + $0x130] sm:$0xf]
        %v531 = vld [vmem:[%s1 + $0x134] sm:$0xf]
        %v532 = vld [vmem:[%s1 + $0x138] sm:$0xf]
        %v533 = vld [vmem:[%s1 + $0x13c] sm:$0xf]
        %v534 = vld [vmem:[%s1 + $0x140] sm:$0xf]
        %v535 = vld [vmem:[%s1 + $0x144] sm:$0xf]
        %v536 = vld [vmem:[%s1 + $0x148] sm:$0xf]
        %v537 = vld [vmem:[%s1 + $0x14c] sm:$0xf]
        %v538 = vld [vmem:[%s1 + $0x150] sm:$0xf]
        %v539 = vld [vmem:[%s1 + $0x154] sm:$0xf]
        %v540 = vld [vmem:[%s1 + $0x158] sm:$0xf]
        %v541 = vld [vmem:[%s1 + $0x15c] sm:$0xf]
        %v542 = vld [vmem:[%s1 + $0x160] sm:$0xf]
        %v543 = vld [vmem:[%s1 + $0x164] sm:$0xf]
        %v544 = vld [vmem:[%s1 + $0x168] sm:$0xf]
        %v545 = vld [vmem:[%s1 + $0x16c] sm:$0xf]
        %v546 = vld [vmem:[%s1 + $0x170] sm:$0xf]
        %v547 = vld [vmem:[%s1 + $0x174] sm:$0xf]
        %v548 = vld [vmem:[%s1 + $0x178] sm:$0xf]
        %v549 = vld [vmem:[%s1 + $0x17c] sm:$0xf]
        %v550 = vld [vmem:[%s1 + $0x180] sm:$0xf]
        %v551 = vld [vmem:[%s1 + $0x184] sm:$0xf]
        %v552 = vld [vmem:[%s1 + $0x188] sm:$0xf]
        %v553 = vld [vmem:[%s1 + $0x18c] sm:$0xf]
        %v554 = vld [vmem:[%s1 + $0x190] sm:$0xf]
        %v555 = vld [vmem:[%s1 + $0x194] sm:$0xf]
        %v556 = vld [vmem:[%s1 + $0x198] sm:$0xf]
        %v557 = vld [vmem:[%s1 + $0x19c] sm:$0xf]
        %v558 = vld [vmem:[%s1 + $0x1a0] sm:$0xf]
        %v559 = vld [vmem:[%s1 + $0x1a4] sm:$0xf]
        %v560 = vld [vmem:[%s1 + $0x1a8] sm:$0xf]
        %v561 = vld [vmem:[%s1 + $0x1ac] sm:$0xf]
        %v562 = vld [vmem:[%s1 + $0x1b0] sm:$0xf]
        %v563 = vld [vmem:[%s1 + $0x1b4] sm:$0xf]
        %v564 = vld [vmem:[%s1 + $0x1b8] sm:$0xf]
        %v565 = vld [vmem:[%s1 + $0x1bc] sm:$0xf]
        %v566 = vld [vmem:[%s1 + $0x1c0] sm:$0xf]
        %v567 = vld [vmem:[%s1 + $0x1c4] sm:$0xf]
        %v568 = vld [vmem:[%s1 + $0x1c8] sm:$0xf]
        %v569 = vld [vmem:[%s1 + $0x1cc] sm:$0xf]
        %v570 = vld [vmem:[%s1 + $0x1d0] sm:$0xf]
        %v571 = vld [vmem:[%s1 + $0x1d4] sm:$0xf]
        %v572 = vld [vmem:[%s1 + $0x1d8] sm:$0xf]
        %v573 = vld [vmem:[%s1 + $0x1dc] sm:$0xf]
        %v574 = vld [vmem:[%s1 + $0x1e0] sm:$0xf]
        %v575 = vld [vmem:[%s1 + $0x1e4] sm:$0xf]
        %v576 = vld [vmem:[%s1 + $0x1e8] sm:$0xf]
        %v577 = vld [vmem:[%s1 + $0x1ec] sm:$0xf]
        %v578 = vld [vmem:[%s1 + $0x1f0] sm:$0xf]
        %v579 = vld [vmem:[%s1 + $0x1f4] sm:$0xf]
        %v580 = vld [vmem:[%s1 + $0x1f8] sm:$0xf]
        %v581 = vld [vmem:[%s1 + $0x1fc] sm:$0xf]
        %v582 = vld [vmem:[%s1 + $0x200] sm:$0xf]
        %v583 = vld [vmem:[%s1 + $0x204] sm:$0xf]
        %v584 = vld [vmem:[%s1 + $0x208] sm:$0xf]
        %v585 = vld [vmem:[%s1 + $0x20c] sm:$0xf]
        %v586 = vld [vmem:[%s1 + $0x210] sm:$0xf]
        %v587 = vld [vmem:[%s1 + $0x214] sm:$0xf]
        %v588 = vld [vmem:[%s1 + $0x218] sm:$0xf]
        %v589 = vld [vmem:[%s1 + $0x21c] sm:$0xf]
        %v590 = vld [vmem:[%s1 + $0x220] sm:$0xf]
        %v591 = vld [vmem:[%s1 + $0x224] sm:$0xf]
        %v592 = vld [vmem:[%s1 + $0x228] sm:$0xf]
        %v593 = vld [vmem:[%s1 + $0x22c] sm:$0xf]
        %v594 = vld [vmem:[%s1 + $0x230] sm:$0xf]
        %v595 = vld [vmem:[%s1 + $0x234] sm:$0xf]
        %v596 = vld [vmem:[%s1 + $0x238] sm:$0xf]
        %v597 = vld [vmem:[%s1 + $0x23c] sm:$0xf]
        %v638 = vunpack.c.l.b16 %v414
        %v639 = vunpack.c.h.b16 %v414
        %v640 = vunpack.c.l.b16 %v415
        %v641 = vunpack.c.h.b16 %v415
        %v642 = vunpack.c.l.b16 %v416
        %v643 = vunpack.c.h.b16 %v416
        %v644 = vunpack.c.l.b16 %v417
        %v645 = vunpack.c.h.b16 %v417
        %v646 = vunpack.c.l.b16 %v418
        %v647 = vunpack.c.l.b16 %v419
        %v648 = vunpack.c.h.b16 %v419
        %v649 = vunpack.c.l.b16 %v420
        %v650 = vunpack.c.h.b16 %v420
        %v651 = vunpack.c.l.b16 %v421
        %v652 = vunpack.c.h.b16 %v421
        %v653 = vunpack.c.l.b16 %v422
        %v654 = vunpack.c.h.b16 %v422
        %v655 = vunpack.c.l.b16 %v423
        %v656 = vunpack.c.l.b16 %v424
        %v657 = vunpack.c.h.b16 %v424
        %v658 = vunpack.c.l.b16 %v425
        %v659 = vunpack.c.h.b16 %v425
        %v660 = vunpack.c.l.b16 %v426
        %v661 = vunpack.c.h.b16 %v426
        %v662 = vunpack.c.l.b16 %v427
        %v663 = vunpack.c.h.b16 %v427
        %v664 = vunpack.c.l.b16 %v428
        %v665 = vunpack.c.l.b16 %v429
        %v666 = vunpack.c.h.b16 %v429
        %v667 = vunpack.c.l.b16 %v430
        %v668 = vunpack.c.h.b16 %v430
        %v669 = vunpack.c.l.b16 %v431
        %v670 = vunpack.c.h.b16 %v431
        %v671 = vunpack.c.l.b16 %v432
        %v672 = vunpack.c.h.b16 %v432
        %v673 = vunpack.c.l.b16 %v433
        %v674 = vunpack.c.l.b16 %v434
        %v675 = vunpack.c.h.b16 %v434
        %v676 = vunpack.c.l.b16 %v435
        %v677 = vunpack.c.h.b16 %v435
        %v678 = vunpack.c.l.b16 %v436
        %v679 = vunpack.c.h.b16 %v436
        %v680 = vunpack.c.l.b16 %v437
        %v681 = vunpack.c.h.b16 %v437
        %v682 = vunpack.c.l.b16 %v438
        %v683 = vunpack.c.l.b16 %v439
        %v684 = vunpack.c.h.b16 %v439
        %v685 = vunpack.c.l.b16 %v440
        %v686 = vunpack.c.h.b16 %v440
        %v687 = vunpack.c.l.b16 %v441
        %v688 = vunpack.c.h.b16 %v441
        %v689 = vunpack.c.l.b16 %v442
        %v690 = vunpack.c.h.b16 %v442
        %v691 = vunpack.c.l.b16 %v443
        %v692 = vunpack.c.l.b16 %v444
        %v693 = vunpack.c.h.b16 %v444
        %v694 = vunpack.c.l.b16 %v445
        %v695 = vunpack.c.h.b16 %v445
        %v696 = vunpack.c.l.b16 %v446
        %v697 = vunpack.c.h.b16 %v446
        %v698 = vunpack.c.l.b16 %v447
        %v699 = vunpack.c.h.b16 %v447
        %v700 = vunpack.c.l.b16 %v448
        %v701 = vunpack.c.l.b16 %v449
        %v702 = vunpack.c.h.b16 %v449
        %v703 = vunpack.c.l.b16 %v450
        %v704 = vunpack.c.h.b16 %v450
        %v705 = vunpack.c.l.b16 %v451
        %v706 = vunpack.c.h.b16 %v451
        %v707 = vunpack.c.l.b16 %v452
        %v708 = vunpack.c.h.b16 %v452
        %v709 = vunpack.c.l.b16 %v453
        %v710 = vpack.c.b16 %v647, %v638
        %v711 = vpack.c.b16 %v648, %v639
        %v712 = vpack.c.b16 %v649, %v640
        %v713 = vpack.c.b16 %v650, %v641
        %v714 = vpack.c.b16 %v651, %v642
        %v715 = vpack.c.b16 %v652, %v643
        %v716 = vpack.c.b16 %v653, %v644
        %v717 = vpack.c.b16 %v654, %v645
        %v718 = vpack.c.b16 %v655, %v646
        %v719 = vpack.c.b16 %v665, %v656
        %v720 = vpack.c.b16 %v666, %v657
        %v721 = vpack.c.b16 %v667, %v658
        %v722 = vpack.c.b16 %v668, %v659
        %v723 = vpack.c.b16 %v669, %v660
        %v724 = vpack.c.b16 %v670, %v661
        %v725 = vpack.c.b16 %v671, %v662
        %v726 = vpack.c.b16 %v672, %v663
        %v727 = vpack.c.b16 %v673, %v664
        %v728 = vpack.c.b16 %v683, %v674
        %v729 = vpack.c.b16 %v684, %v675
        %v730 = vpack.c.b16 %v685, %v676
        %v731 = vpack.c.b16 %v686, %v677
        %v732 = vpack.c.b16 %v687, %v678
        %v733 = vpack.c.b16 %v688, %v679
        %v734 = vpack.c.b16 %v689, %v680
        %v735 = vpack.c.b16 %v690, %v681
        %v736 = vpack.c.b16 %v691, %v682
        %v737 = vpack.c.b16 %v701, %v692
        %v738 = vpack.c.b16 %v702, %v693
        %v739 = vpack.c.b16 %v703, %v694
        %v740 = vpack.c.b16 %v704, %v695
        %v741 = vpack.c.b16 %v705, %v696
        %v742 = vpack.c.b16 %v706, %v697
        %v743 = vpack.c.b16 %v707, %v698
        %v744 = vpack.c.b16 %v708, %v699
        %v745 = vpack.c.b16 %v709, %v700
        %v926 = vunpack.c.l.b16 %v454
        %v927 = vunpack.c.l.b16 %v455
        %v928 = vunpack.c.l.b16 %v456
        %v929 = vunpack.c.l.b16 %v457
        %v930 = vunpack.c.l.b16 %v458
        %v931 = vunpack.c.l.b16 %v459
        %v932 = vunpack.c.l.b16 %v460
        %v933 = vunpack.c.l.b16 %v461
        %v934 = vunpack.c.l.b16 %v462
        %v935 = vunpack.c.l.b16 %v463
        %v936 = vunpack.c.l.b16 %v464
        %v937 = vunpack.c.l.b16 %v465
        %v938 = vunpack.c.l.b16 %v466
        %v939 = vunpack.c.l.b16 %v467
        %v940 = vunpack.c.l.b16 %v468
        %v941 = vunpack.c.l.b16 %v469
        %v942 = vunpack.c.l.b16 %v470
        %v943 = vunpack.c.l.b16 %v471
        %v944 = vunpack.c.l.b16 %v472
        %v945 = vunpack.c.l.b16 %v473
        %v946 = vunpack.c.l.b16 %v474
        %v947 = vunpack.c.l.b16 %v475
        %v948 = vunpack.c.l.b16 %v476
        %v949 = vunpack.c.l.b16 %v477
        %v950 = vunpack.c.l.b16 %v478
        %v951 = vunpack.c.l.b16 %v479
        %v952 = vunpack.c.l.b16 %v480
        %v953 = vunpack.c.l.b16 %v481
        %v954 = vunpack.c.l.b16 %v482
        %v955 = vunpack.c.l.b16 %v483
        %v956 = vunpack.c.l.b16 %v484
        %v957 = vunpack.c.l.b16 %v485
        %v958 = vunpack.c.l.b16 %v486
        %v959 = vunpack.c.l.b16 %v487
        %v960 = vunpack.c.l.b16 %v488
        %v961 = vunpack.c.l.b16 %v489
        %v962 = vunpack.c.l.b16 %v490
        %v963 = vunpack.c.l.b16 %v491
        %v964 = vunpack.c.l.b16 %v492
        %v965 = vunpack.c.l.b16 %v493
        %v966 = vunpack.c.l.b16 %v494
        %v967 = vunpack.c.l.b16 %v495
        %v968 = vunpack.c.l.b16 %v496
        %v969 = vunpack.c.l.b16 %v497
        %v970 = vunpack.c.l.b16 %v498
        %v971 = vunpack.c.l.b16 %v499
        %v972 = vunpack.c.l.b16 %v500
        %v973 = vunpack.c.l.b16 %v501
        %v974 = vunpack.c.l.b16 %v502
        %v975 = vunpack.c.l.b16 %v503
        %v976 = vunpack.c.l.b16 %v504
        %v977 = vunpack.c.l.b16 %v505
        %v978 = vunpack.c.l.b16 %v506
        %v979 = vunpack.c.l.b16 %v507
        %v980 = vunpack.c.l.b16 %v508
        %v981 = vunpack.c.l.b16 %v509
        %v982 = vunpack.c.l.b16 %v510
        %v983 = vunpack.c.l.b16 %v511
        %v984 = vunpack.c.l.b16 %v512
        %v985 = vunpack.c.l.b16 %v513
        %v986 = vunpack.c.l.b16 %v514
        %v987 = vunpack.c.l.b16 %v515
        %v988 = vunpack.c.l.b16 %v516
        %v989 = vunpack.c.l.b16 %v517
        %v990 = vunpack.c.l.b16 %v518
        %v991 = vunpack.c.l.b16 %v519
        %v992 = vunpack.c.l.b16 %v520
        %v993 = vunpack.c.l.b16 %v521
        %v994 = vunpack.c.l.b16 %v522
        %v995 = vunpack.c.l.b16 %v523
        %v996 = vunpack.c.l.b16 %v524
        %v997 = vunpack.c.l.b16 %v525
        %v998 = vunpack.c.l.b16 %v526
        %v999 = vunpack.c.l.b16 %v527
        %v1000 = vunpack.c.l.b16 %v528
        %v1001 = vunpack.c.l.b16 %v529
        %v1002 = vunpack.c.l.b16 %v530
        %v1003 = vunpack.c.l.b16 %v531
        %v1004 = vunpack.c.l.b16 %v532
        %v1005 = vunpack.c.l.b16 %v533
        %v1006 = vunpack.c.l.b16 %v534
        %v1007 = vunpack.c.l.b16 %v535
        %v1008 = vunpack.c.l.b16 %v536
        %v1009 = vunpack.c.l.b16 %v537
        %v1010 = vunpack.c.l.b16 %v538
        %v1011 = vunpack.c.l.b16 %v539
        %v1012 = vunpack.c.l.b16 %v540
        %v1013 = vunpack.c.l.b16 %v541
        %v1014 = vunpack.c.l.b16 %v542
        %v1015 = vunpack.c.l.b16 %v543
        %v1016 = vunpack.c.l.b16 %v544
        %v1017 = vunpack.c.l.b16 %v545
        %v1018 = vunpack.c.l.b16 %v546
        %v1019 = vunpack.c.l.b16 %v547
        %v1020 = vunpack.c.l.b16 %v548
        %v1021 = vunpack.c.l.b16 %v549
        %v1022 = vunpack.c.l.b16 %v550
        %v1023 = vunpack.c.l.b16 %v551
        %v1024 = vunpack.c.l.b16 %v552
        %v1025 = vunpack.c.l.b16 %v553
        %v1026 = vunpack.c.l.b16 %v554
        %v1027 = vunpack.c.l.b16 %v555
        %v1028 = vunpack.c.l.b16 %v556
        %v1029 = vunpack.c.l.b16 %v557
        %v1030 = vunpack.c.l.b16 %v558
        %v1031 = vunpack.c.l.b16 %v559
        %v1032 = vunpack.c.l.b16 %v560
        %v1033 = vunpack.c.l.b16 %v561
        %v1034 = vunpack.c.l.b16 %v562
        %v1035 = vunpack.c.l.b16 %v563
        %v1036 = vunpack.c.l.b16 %v564
        %v1037 = vunpack.c.l.b16 %v565
        %v1038 = vunpack.c.l.b16 %v566
        %v1039 = vunpack.c.l.b16 %v567
        %v1040 = vunpack.c.l.b16 %v568
        %v1041 = vunpack.c.l.b16 %v569
        %v1042 = vunpack.c.l.b16 %v570
        %v1043 = vunpack.c.l.b16 %v571
        %v1044 = vunpack.c.l.b16 %v572
        %v1045 = vunpack.c.l.b16 %v573
        %v1046 = vunpack.c.l.b16 %v574
        %v1047 = vunpack.c.l.b16 %v575
        %v1048 = vunpack.c.l.b16 %v576
        %v1049 = vunpack.c.l.b16 %v577
        %v1050 = vunpack.c.l.b16 %v578
        %v1051 = vunpack.c.l.b16 %v579
        %v1052 = vunpack.c.l.b16 %v580
        %v1053 = vunpack.c.l.b16 %v581
        %v1054 = vunpack.c.l.b16 %v582
        %v1055 = vunpack.c.l.b16 %v583
        %v1056 = vunpack.c.l.b16 %v584
        %v1057 = vunpack.c.l.b16 %v585
        %v1058 = vunpack.c.l.b16 %v586
        %v1059 = vunpack.c.l.b16 %v587
        %v1060 = vunpack.c.l.b16 %v588
        %v1061 = vunpack.c.l.b16 %v589
        %v1062 = vunpack.c.l.b16 %v590
        %v1063 = vunpack.c.l.b16 %v591
        %v1064 = vunpack.c.l.b16 %v592
        %v1065 = vunpack.c.l.b16 %v593
        %v1066 = vunpack.c.l.b16 %v594
        %v1067 = vunpack.c.l.b16 %v595
        %v1068 = vunpack.c.l.b16 %v596
        %v1069 = vunpack.c.l.b16 %v597
        %v1070 = vpack.c.b16 %v927, %v926
        %v1071 = vpack.c.b16 %v929, %v928
        %v1072 = vpack.c.b16 %v931, %v930
        %v1073 = vpack.c.b16 %v933, %v932
        %v1074 = vpack.c.b16 %v935, %v934
        %v1075 = vpack.c.b16 %v937, %v936
        %v1076 = vpack.c.b16 %v939, %v938
        %v1077 = vpack.c.b16 %v941, %v940
        %v1078 = vpack.c.b16 %v943, %v942
        %v1079 = vpack.c.b16 %v945, %v944
        %v1080 = vpack.c.b16 %v947, %v946
        %v1081 = vpack.c.b16 %v949, %v948
        %v1082 = vpack.c.b16 %v951, %v950
        %v1083 = vpack.c.b16 %v953, %v952
        %v1084 = vpack.c.b16 %v955, %v954
        %v1085 = vpack.c.b16 %v957, %v956
        %v1086 = vpack.c.b16 %v959, %v958
        %v1087 = vpack.c.b16 %v961, %v960
        %v1088 = vpack.c.b16 %v963, %v962
        %v1089 = vpack.c.b16 %v965, %v964
        %v1090 = vpack.c.b16 %v967, %v966
        %v1091 = vpack.c.b16 %v969, %v968
        %v1092 = vpack.c.b16 %v971, %v970
        %v1093 = vpack.c.b16 %v973, %v972
        %v1094 = vpack.c.b16 %v975, %v974
        %v1095 = vpack.c.b16 %v977, %v976
        %v1096 = vpack.c.b16 %v979, %v978
        %v1097 = vpack.c.b16 %v981, %v980
        %v1098 = vpack.c.b16 %v983, %v982
        %v1099 = vpack.c.b16 %v985, %v984
        %v1100 = vpack.c.b16 %v987, %v986
        %v1101 = vpack.c.b16 %v989, %v988
        %v1102 = vpack.c.b16 %v991, %v990
        %v1103 = vpack.c.b16 %v993, %v992
        %v1104 = vpack.c.b16 %v995, %v994
        %v1105 = vpack.c.b16 %v997, %v996
        %v1106 = vpack.c.b16 %v999, %v998
        %v1107 = vpack.c.b16 %v1001, %v1000
        %v1108 = vpack.c.b16 %v1003, %v1002
        %v1109 = vpack.c.b16 %v1005, %v1004
        %v1110 = vpack.c.b16 %v1007, %v1006
        %v1111 = vpack.c.b16 %v1009, %v1008
        %v1112 = vpack.c.b16 %v1011, %v1010
        %v1113 = vpack.c.b16 %v1013, %v1012
        %v1114 = vpack.c.b16 %v1015, %v1014
        %v1115 = vpack.c.b16 %v1017, %v1016
        %v1116 = vpack.c.b16 %v1019, %v1018
        %v1117 = vpack.c.b16 %v1021, %v1020
        %v1118 = vpack.c.b16 %v1023, %v1022
        %v1119 = vpack.c.b16 %v1025, %v1024
        %v1120 = vpack.c.b16 %v1027, %v1026
        %v1121 = vpack.c.b16 %v1029, %v1028
        %v1122 = vpack.c.b16 %v1031, %v1030
        %v1123 = vpack.c.b16 %v1033, %v1032
        %v1124 = vpack.c.b16 %v1035, %v1034
        %v1125 = vpack.c.b16 %v1037, %v1036
        %v1126 = vpack.c.b16 %v1039, %v1038
        %v1127 = vpack.c.b16 %v1041, %v1040
        %v1128 = vpack.c.b16 %v1043, %v1042
        %v1129 = vpack.c.b16 %v1045, %v1044
        %v1130 = vpack.c.b16 %v1047, %v1046
        %v1131 = vpack.c.b16 %v1049, %v1048
        %v1132 = vpack.c.b16 %v1051, %v1050
        %v1133 = vpack.c.b16 %v1053, %v1052
        %v1134 = vpack.c.b16 %v1055, %v1054
        %v1135 = vpack.c.b16 %v1057, %v1056
        %v1136 = vpack.c.b16 %v1059, %v1058
        %v1137 = vpack.c.b16 %v1061, %v1060
        %v1138 = vpack.c.b16 %v1063, %v1062
        %v1139 = vpack.c.b16 %v1065, %v1064
        %v1140 = vpack.c.b16 %v1067, %v1066
        %v1141 = vpack.c.b16 %v1069, %v1068
        %1214 = vmatprep.subr.bf16.mxu0 0
        %1215 = vmatpush1.bf16.msra.mxu0 %v1077
        %1216 = vmatprep.subr.bf16.mxu0 0
        %1217 = vmatpush1.bf16.msra.mxu0 %v1076
        %1218 = vmatprep.subr.bf16.mxu0 0
        %1219 = vmatpush1.bf16.msra.mxu0 %v1075
        %1220 = vmatprep.subr.bf16.mxu0 0
        %1221 = vmatpush1.bf16.msra.mxu0 %v1074
        %1222 = vmatprep.subr.bf16.mxu0 0
        %1223 = vmatpush1.bf16.msra.mxu0 %v1073
        %1224 = vmatprep.subr.bf16.mxu0 0
        %1225 = vmatpush1.bf16.msra.mxu0 %v1072
        %1226 = vmatprep.subr.bf16.mxu0 0
        %1227 = vmatpush1.bf16.msra.mxu0 %v1071
        %1228 = vmatprep.subr.bf16.mxu0 0
        %1229 = vmatpush1.bf16.msra.mxu0 %v1070
        %1230 = vmatprep.subr.bf16.mxu0 0
        %1231 = vmatpush2.bf16.msra.mxu0 %v1085
        %1232 = vmatprep.subr.bf16.mxu0 0
        %1233 = vmatpush2.bf16.msra.mxu0 %v1084
        %1234 = vmatprep.subr.bf16.mxu0 0
        %1235 = vmatpush2.bf16.msra.mxu0 %v1083
        %1236 = vmatprep.subr.bf16.mxu0 0
        %1237 = vmatpush2.bf16.msra.mxu0 %v1082
        %1238 = vmatprep.subr.bf16.mxu0 0
        %1239 = vmatpush2.bf16.msra.mxu0 %v1081
        %1240 = vmatprep.subr.bf16.mxu0 0
        %1241 = vmatpush2.bf16.msra.mxu0 %v1080
        %1242 = vmatprep.subr.bf16.mxu0 0
        %1243 = vmatpush2.bf16.msra.mxu0 %v1079
        %1244 = vmatprep.subr.bf16.mxu0 0
        %1245 = vmatpush2.bf16.msra.mxu0 %v1078
        %1246 = vmatprep.mubr.bf16.mxu0 %v711
        %1247 = vmatmul.mubr.bf16.gmra.mxu0 %v710
        %v1248 = vpop.f32.mrf.mxu0
        %v1249 = vadd.f32 0.0, %v1248
        %v1250 = vpop.f32.mrf.mxu0
        %v1251 = vpop.f32.mrf.mxu0
        %v1252 = vadd.f32 0.0, %v1251
        %v1253 = vpop.f32.mrf.mxu0
        %1254 = vmatprep.mubr.bf16.mxu0 %v720
        %1255 = vmatmul.mubr.bf16.gmra.mxu0 %v719
        %v1256 = vpop.f32.mrf.mxu0
        %v1257 = vadd.f32 0.0, %v1256
        %v1258 = vpop.f32.mrf.mxu0
        %v1259 = vpop.f32.mrf.mxu0
        %v1260 = vadd.f32 0.0, %v1259
        %v1261 = vpop.f32.mrf.mxu0
        %1262 = vmatprep.mubr.bf16.mxu0 %v729
        %1263 = vmatmul.mubr.bf16.gmra.mxu0 %v728
        %v1264 = vpop.f32.mrf.mxu0
        %v1265 = vadd.f32 0.0, %v1264
        %v1266 = vpop.f32.mrf.mxu0
        %v1267 = vpop.f32.mrf.mxu0
        %v1268 = vadd.f32 0.0, %v1267
        %v1269 = vpop.f32.mrf.mxu0
        %1270 = vmatprep.mubr.bf16.mxu0 %v738
        %1271 = vmatmul.mubr.bf16.gmra.mxu0 %v737
        %v1272 = vpop.f32.mrf.mxu0
        %v1273 = vadd.f32 0.0, %v1272
        %v1274 = vpop.f32.mrf.mxu0
        %v1275 = vpop.f32.mrf.mxu0
        %v1276 = vadd.f32 0.0, %v1275
        %v1277 = vpop.f32.mrf.mxu0
        %1278 = vdwg.mxu0
        %1279 = vmatprep.subr.bf16.mxu0 0
        %1280 = vmatpush1.bf16.msra.mxu0 %v1093
        %1281 = vmatprep.subr.bf16.mxu0 0
        %1282 = vmatpush1.bf16.msra.mxu0 %v1092
        %1283 = vmatprep.subr.bf16.mxu0 0
        %1284 = vmatpush1.bf16.msra.mxu0 %v1091
        %1285 = vmatprep.subr.bf16.mxu0 0
        %1286 = vmatpush1.bf16.msra.mxu0 %v1090
        %1287 = vmatprep.subr.bf16.mxu0 0
        %1288 = vmatpush1.bf16.msra.mxu0 %v1089
        %1289 = vmatprep.subr.bf16.mxu0 0
        %1290 = vmatpush1.bf16.msra.mxu0 %v1088
        %1291 = vmatprep.subr.bf16.mxu0 0
        %1292 = vmatpush1.bf16.msra.mxu0 %v1087
        %1293 = vmatprep.subr.bf16.mxu0 0
        %1294 = vmatpush1.bf16.msra.mxu0 %v1086
        %1295 = vmatprep.subr.bf16.mxu0 0
        %1296 = vmatpush2.bf16.msra.mxu0 %v1101
        %1297 = vmatprep.subr.bf16.mxu0 0
        %1298 = vmatpush2.bf16.msra.mxu0 %v1100
        %1299 = vmatprep.subr.bf16.mxu0 0
        %1300 = vmatpush2.bf16.msra.mxu0 %v1099
        %1301 = vmatprep.subr.bf16.mxu0 0
        %1302 = vmatpush2.bf16.msra.mxu0 %v1098
        %1303 = vmatprep.subr.bf16.mxu0 0
        %1304 = vmatpush2.bf16.msra.mxu0 %v1097
        %1305 = vmatprep.subr.bf16.mxu0 0
        %1306 = vmatpush2.bf16.msra.mxu0 %v1096
        %1307 = vmatprep.subr.bf16.mxu0 0
        %1308 = vmatpush2.bf16.msra.mxu0 %v1095
        %1309 = vmatprep.subr.bf16.mxu0 0
        %1310 = vmatpush2.bf16.msra.mxu0 %v1094
        %1311 = vmatprep.mubr.bf16.mxu0 %v713
        %1312 = vmatmul.mubr.bf16.gmra.mxu0 %v712
        %v1313 = vpop.f32.mrf.mxu0
        %v1314 = vadd.f32 %v1249, %v1313
        %v1315 = vpop.f32.mrf.mxu0
        %v1316 = vpop.f32.mrf.mxu0
        %v1317 = vadd.f32 %v1252, %v1316
        %v1318 = vpop.f32.mrf.mxu0
        %1319 = vmatprep.mubr.bf16.mxu0 %v722
        %1320 = vmatmul.mubr.bf16.gmra.mxu0 %v721
        %v1321 = vpop.f32.mrf.mxu0
        %v1322 = vadd.f32 %v1257, %v1321
        %v1323 = vpop.f32.mrf.mxu0
        %v1324 = vpop.f32.mrf.mxu0
        %v1325 = vadd.f32 %v1260, %v1324
        %v1326 = vpop.f32.mrf.mxu0
        %1327 = vmatprep.mubr.bf16.mxu0 %v731
        %1328 = vmatmul.mubr.bf16.gmra.mxu0 %v730
        %v1329 = vpop.f32.mrf.mxu0
        %v1330 = vadd.f32 %v1265, %v1329
        %v1331 = vpop.f32.mrf.mxu0
        %v1332 = vpop.f32.mrf.mxu0
        %v1333 = vadd.f32 %v1268, %v1332
        %v1334 = vpop.f32.mrf.mxu0
        %1335 = vmatprep.mubr.bf16.mxu0 %v740
        %1336 = vmatmul.mubr.bf16.gmra.mxu0 %v739
        %v1337 = vpop.f32.mrf.mxu0
        %v1338 = vadd.f32 %v1273, %v1337
        %v1339 = vpop.f32.mrf.mxu0
        %v1340 = vpop.f32.mrf.mxu0
        %v1341 = vadd.f32 %v1276, %v1340
        %v1342 = vpop.f32.mrf.mxu0
        %1343 = vdwg.mxu0
        %1344 = vmatprep.subr.bf16.mxu0 0
        %1345 = vmatpush1.bf16.msra.mxu0 %v1109
        %1346 = vmatprep.subr.bf16.mxu0 0
        %1347 = vmatpush1.bf16.msra.mxu0 %v1108
        %1348 = vmatprep.subr.bf16.mxu0 0
        %1349 = vmatpush1.bf16.msra.mxu0 %v1107
        %1350 = vmatprep.subr.bf16.mxu0 0
        %1351 = vmatpush1.bf16.msra.mxu0 %v1106
        %1352 = vmatprep.subr.bf16.mxu0 0
        %1353 = vmatpush1.bf16.msra.mxu0 %v1105
        %1354 = vmatprep.subr.bf16.mxu0 0
        %1355 = vmatpush1.bf16.msra.mxu0 %v1104
        %1356 = vmatprep.subr.bf16.mxu0 0
        %1357 = vmatpush1.bf16.msra.mxu0 %v1103
        %1358 = vmatprep.subr.bf16.mxu0 0
        %1359 = vmatpush1.bf16.msra.mxu0 %v1102
        %1360 = vmatprep.subr.bf16.mxu0 0
        %1361 = vmatpush2.bf16.msra.mxu0 %v1117
        %1362 = vmatprep.subr.bf16.mxu0 0
        %1363 = vmatpush2.bf16.msra.mxu0 %v1116
        %1364 = vmatprep.subr.bf16.mxu0 0
        %1365 = vmatpush2.bf16.msra.mxu0 %v1115
        %1366 = vmatprep.subr.bf16.mxu0 0
        %1367 = vmatpush2.bf16.msra.mxu0 %v1114
        %1368 = vmatprep.subr.bf16.mxu0 0
        %1369 = vmatpush2.bf16.msra.mxu0 %v1113
        %1370 = vmatprep.subr.bf16.mxu0 0
        %1371 = vmatpush2.bf16.msra.mxu0 %v1112
        %1372 = vmatprep.subr.bf16.mxu0 0
        %1373 = vmatpush2.bf16.msra.mxu0 %v1111
        %1374 = vmatprep.subr.bf16.mxu0 0
        %1375 = vmatpush2.bf16.msra.mxu0 %v1110
        %1376 = vmatprep.mubr.bf16.mxu0 %v715
        %1377 = vmatmul.mubr.bf16.gmra.mxu0 %v714
        %v1378 = vpop.f32.mrf.mxu0
        %v1379 = vadd.f32 %v1314, %v1378
        %v1380 = vpop.f32.mrf.mxu0
        %v1381 = vpop.f32.mrf.mxu0
        %v1382 = vadd.f32 %v1317, %v1381
        %v1383 = vpop.f32.mrf.mxu0
        %1384 = vmatprep.mubr.bf16.mxu0 %v724
        %1385 = vmatmul.mubr.bf16.gmra.mxu0 %v723
        %v1386 = vpop.f32.mrf.mxu0
        %v1387 = vadd.f32 %v1322, %v1386
        %v1388 = vpop.f32.mrf.mxu0
        %v1389 = vpop.f32.mrf.mxu0
        %v1390 = vadd.f32 %v1325, %v1389
        %v1391 = vpop.f32.mrf.mxu0
        %1392 = vmatprep.mubr.bf16.mxu0 %v733
        %1393 = vmatmul.mubr.bf16.gmra.mxu0 %v732
        %v1394 = vpop.f32.mrf.mxu0
        %v1395 = vadd.f32 %v1330, %v1394
        %v1396 = vpop.f32.mrf.mxu0
        %v1397 = vpop.f32.mrf.mxu0
        %v1398 = vadd.f32 %v1333, %v1397
        %v1399 = vpop.f32.mrf.mxu0
        %1400 = vmatprep.mubr.bf16.mxu0 %v742
        %1401 = vmatmul.mubr.bf16.gmra.mxu0 %v741
        %v1402 = vpop.f32.mrf.mxu0
        %v1403 = vadd.f32 %v1338, %v1402
        %v1404 = vpop.f32.mrf.mxu0
        %v1405 = vpop.f32.mrf.mxu0
        %v1406 = vadd.f32 %v1341, %v1405
        %v1407 = vpop.f32.mrf.mxu0
        %1408 = vdwg.mxu0
        %1409 = vmatprep.subr.bf16.mxu0 0
        %1410 = vmatpush1.bf16.msra.mxu0 %v1125
        %1411 = vmatprep.subr.bf16.mxu0 0
        %1412 = vmatpush1.bf16.msra.mxu0 %v1124
        %1413 = vmatprep.subr.bf16.mxu0 0
        %1414 = vmatpush1.bf16.msra.mxu0 %v1123
        %1415 = vmatprep.subr.bf16.mxu0 0
        %1416 = vmatpush1.bf16.msra.mxu0 %v1122
        %1417 = vmatprep.subr.bf16.mxu0 0
        %1418 = vmatpush1.bf16.msra.mxu0 %v1121
        %1419 = vmatprep.subr.bf16.mxu0 0
        %1420 = vmatpush1.bf16.msra.mxu0 %v1120
        %1421 = vmatprep.subr.bf16.mxu0 0
        %1422 = vmatpush1.bf16.msra.mxu0 %v1119
        %1423 = vmatprep.subr.bf16.mxu0 0
        %1424 = vmatpush1.bf16.msra.mxu0 %v1118
        %1425 = vmatprep.subr.bf16.mxu0 0
        %1426 = vmatpush2.bf16.msra.mxu0 %v1133
        %1427 = vmatprep.subr.bf16.mxu0 0
        %1428 = vmatpush2.bf16.msra.mxu0 %v1132
        %1429 = vmatprep.subr.bf16.mxu0 0
        %1430 = vmatpush2.bf16.msra.mxu0 %v1131
        %1431 = vmatprep.subr.bf16.mxu0 0
        %1432 = vmatpush2.bf16.msra.mxu0 %v1130
        %1433 = vmatprep.subr.bf16.mxu0 0
        %1434 = vmatpush2.bf16.msra.mxu0 %v1129
        %1435 = vmatprep.subr.bf16.mxu0 0
        %1436 = vmatpush2.bf16.msra.mxu0 %v1128
        %1437 = vmatprep.subr.bf16.mxu0 0
        %1438 = vmatpush2.bf16.msra.mxu0 %v1127
        %1439 = vmatprep.subr.bf16.mxu0 0
        %1440 = vmatpush2.bf16.msra.mxu0 %v1126
        %1441 = vmatprep.mubr.bf16.mxu0 %v717
        %1442 = vmatmul.mubr.bf16.gmra.mxu0 %v716
        %v1443 = vpop.f32.mrf.mxu0
        %v1444 = vadd.f32 %v1379, %v1443
        %v1445 = vpop.f32.mrf.mxu0
        %v1446 = vpop.f32.mrf.mxu0
        %v1447 = vadd.f32 %v1382, %v1446
        %v1448 = vpop.f32.mrf.mxu0
        %1449 = vmatprep.mubr.bf16.mxu0 %v726
        %1450 = vmatmul.mubr.bf16.gmra.mxu0 %v725
        %v1451 = vpop.f32.mrf.mxu0
        %v1452 = vadd.f32 %v1387, %v1451
        %v1453 = vpop.f32.mrf.mxu0
        %v1454 = vpop.f32.mrf.mxu0
        %v1455 = vadd.f32 %v1390, %v1454
        %v1456 = vpop.f32.mrf.mxu0
        %1457 = vmatprep.mubr.bf16.mxu0 %v735
        %1458 = vmatmul.mubr.bf16.gmra.mxu0 %v734
        %v1459 = vpop.f32.mrf.mxu0
        %v1460 = vadd.f32 %v1395, %v1459
        %v1461 = vpop.f32.mrf.mxu0
        %v1462 = vpop.f32.mrf.mxu0
        %v1463 = vadd.f32 %v1398, %v1462
        %v1464 = vpop.f32.mrf.mxu0
        %1465 = vmatprep.mubr.bf16.mxu0 %v744
        %1466 = vmatmul.mubr.bf16.gmra.mxu0 %v743
        %v1467 = vpop.f32.mrf.mxu0
        %v1468 = vadd.f32 %v1403, %v1467
        %v1469 = vpop.f32.mrf.mxu0
        %v1470 = vpop.f32.mrf.mxu0
        %v1471 = vadd.f32 %v1406, %v1470
        %v1472 = vpop.f32.mrf.mxu0
        %1473 = vdwg.mxu0
        %1474 = vmatprep.subr.bf16.mxu0 0
        %1475 = vmatpush1.bf16.msra.mxu0 %v1141
        %1476 = vmatprep.subr.bf16.mxu0 0
        %1477 = vmatpush1.bf16.msra.mxu0 %v1140
        %1478 = vmatprep.subr.bf16.mxu0 0
        %1479 = vmatpush1.bf16.msra.mxu0 %v1139
        %1480 = vmatprep.subr.bf16.mxu0 0
        %1481 = vmatpush1.bf16.msra.mxu0 %v1138
        %1482 = vmatprep.subr.bf16.mxu0 0
        %1483 = vmatpush1.bf16.msra.mxu0 %v1137
        %1484 = vmatprep.subr.bf16.mxu0 0
        %1485 = vmatpush1.bf16.msra.mxu0 %v1136
        %1486 = vmatprep.subr.bf16.mxu0 0
        %1487 = vmatpush1.bf16.msra.mxu0 %v1135
        %1488 = vmatprep.subr.bf16.mxu0 0
        %1489 = vmatpush1.bf16.msra.mxu0 %v1134
        %1490 = vmatprep.subr.bf16.mxu0 0
        %1491 = vmatpush2.bf16.msra.mxu0 0
        %1492 = vmatprep.subr.bf16.mxu0 0
        %1493 = vmatpush2.bf16.msra.mxu0 0
        %1494 = vmatprep.subr.bf16.mxu0 0
        %1495 = vmatpush2.bf16.msra.mxu0 0
        %1496 = vmatprep.subr.bf16.mxu0 0
        %1497 = vmatpush2.bf16.msra.mxu0 0
        %1498 = vmatprep.subr.bf16.mxu0 0
        %1499 = vmatpush2.bf16.msra.mxu0 0
        %1500 = vmatprep.subr.bf16.mxu0 0
        %1501 = vmatpush2.bf16.msra.mxu0 0
        %1502 = vmatprep.subr.bf16.mxu0 0
        %1503 = vmatpush2.bf16.msra.mxu0 0
        %1504 = vmatprep.subr.bf16.mxu0 0
        %1505 = vmatpush2.bf16.msra.mxu0 0
        %1506 = vmatprep.mubr.bf16.mxu0 0
        %1507 = vmatmul.mubr.bf16.gmra.mxu0 %v718
        %v1508 = vpop.f32.mrf.mxu0
        %v1509 = vadd.f32 %v1444, %v1508
        %v1510 = vpop.f32.mrf.mxu0
        %v1511 = vpop.f32.mrf.mxu0
        %v1512 = vadd.f32 %v1447, %v1511
        %v1513 = vpop.f32.mrf.mxu0
        %1514 = vmatprep.mubr.bf16.mxu0 0
        %1515 = vmatmul.mubr.bf16.gmra.mxu0 %v727
        %v1516 = vpop.f32.mrf.mxu0
        %v1517 = vadd.f32 %v1452, %v1516
        %v1518 = vpop.f32.mrf.mxu0
        %v1519 = vpop.f32.mrf.mxu0
        %v1520 = vadd.f32 %v1455, %v1519
        %v1521 = vpop.f32.mrf.mxu0
        %1522 = vmatprep.mubr.bf16.mxu0 0
        %1523 = vmatmul.mubr.bf16.gmra.mxu0 %v736
        %v1524 = vpop.f32.mrf.mxu0
        %v1525 = vadd.f32 %v1460, %v1524
        %v1526 = vpop.f32.mrf.mxu0
        %v1527 = vpop.f32.mrf.mxu0
        %v1528 = vadd.f32 %v1463, %v1527
        %v1529 = vpop.f32.mrf.mxu0
        %1530 = vmatprep.mubr.bf16.mxu0 0
        %1531 = vmatmul.mubr.bf16.gmra.mxu0 %v745
        %v1532 = vpop.f32.mrf.mxu0
        %v1533 = vadd.f32 %v1468, %v1532
        %v1534 = vpop.f32.mrf.mxu0
        %v1535 = vpop.f32.mrf.mxu0
        %v1536 = vadd.f32 %v1471, %v1535
        %v1537 = vpop.f32.mrf.mxu0
        %1538 = vdwg.mxu0
        %v1539 = vld [vmem:[%s2] sm:$0x1]
        %v1541 = vlaneseq
        %v1542 = vshrl.u32 %v1541, 7
        %v1543 = vsub.s32 0, %v1542
        %v1544 = vrot.slane %v1539, %v1543
        %v1546 = vmul.f32 %v1509, %v1544
        %v1547 = vmul.f32 %v1512, %v1544
        %v1548 = vmul.f32 %v1517, %v1544
        %v1549 = vmul.f32 %v1520, %v1544
        %v1550 = vmul.f32 %v1525, %v1544
        %v1551 = vmul.f32 %v1528, %v1544
        %v1552 = vmul.f32 %v1533, %v1544
        %v1553 = vmul.f32 %v1536, %v1544
        %v1554 = vld [vmem:[%s3] sm:$0x1]
        %v1556 = vlaneseq
        %v1557 = vshrl.u32 %v1556, 7
        %v1558 = vsub.s32 0, %v1557
        %v1559 = vrot.slane %v1554, %v1558
        %v1561 = vadd.f32 %v1546, %v1559
        %v1562 = vadd.f32 %v1547, %v1559
        %v1563 = vadd.f32 %v1548, %v1559
        %v1564 = vadd.f32 %v1549, %v1559
        %v1565 = vadd.f32 %v1550, %v1559
        %v1566 = vadd.f32 %v1551, %v1559
        %v1567 = vadd.f32 %v1552, %v1559
        %v1568 = vadd.f32 %v1553, %v1559
        %v1569 = vmax.f32 %v1561, 0.0
        %v1570 = vmax.f32 %v1562, 0.0
        %v1571 = vmax.f32 %v1563, 0.0
        %v1572 = vmax.f32 %v1564, 0.0
        %v1573 = vmax.f32 %v1565, 0.0
        %v1574 = vmax.f32 %v1566, 0.0
        %v1575 = vmax.f32 %v1567, 0.0
        %v1576 = vmax.f32 %v1568, 0.0
        %v1577 = vpack.c.bf16 %v1570, %v1569
        %v1578 = vpack.c.bf16 %v1572, %v1571
        %v1579 = vpack.c.bf16 %v1574, %v1573
        %v1580 = vpack.c.bf16 %v1576, %v1575
        %v1581 = vld [vmem:[%s4] sm:$0xf]
        %v1582 = vld [vmem:[%s4 + $0x4] sm:$0xf]
        %v1583 = vld [vmem:[%s4 + $0x8] sm:$0xf]
        %v1584 = vld [vmem:[%s4 + $0xc] sm:$0xf]
        %v1585 = vld [vmem:[%s4 + $0x10] sm:$0xf]
        %v1586 = vld [vmem:[%s4 + $0x14] sm:$0xf]
        %v1587 = vld [vmem:[%s4 + $0x18] sm:$0xf]
        %v1588 = vld [vmem:[%s4 + $0x1c] sm:$0xf]
        %v1589 = vld [vmem:[%s4 + $0x20] sm:$0xf]
        %v1590 = vld [vmem:[%s4 + $0x24] sm:$0xf]
        %v1591 = vld [vmem:[%s4 + $0x28] sm:$0xf]
        %v1592 = vld [vmem:[%s4 + $0x2c] sm:$0xf]
        %v1593 = vld [vmem:[%s4 + $0x30] sm:$0xf]
        %v1594 = vld [vmem:[%s4 + $0x34] sm:$0xf]
        %v1595 = vld [vmem:[%s4 + $0x38] sm:$0xf]
        %v1596 = vld [vmem:[%s4 + $0x3c] sm:$0xf]
        %v1613 = vunpack.c.l.b16 %v1581
        %v1614 = vunpack.c.l.b16 %v1582
        %v1615 = vunpack.c.l.b16 %v1583
        %v1616 = vunpack.c.l.b16 %v1584
        %v1617 = vunpack.c.l.b16 %v1585
        %v1618 = vunpack.c.l.b16 %v1586
        %v1619 = vunpack.c.l.b16 %v1587
        %v1620 = vunpack.c.l.b16 %v1588
        %v1621 = vunpack.c.l.b16 %v1589
        %v1622 = vunpack.c.l.b16 %v1590
        %v1623 = vunpack.c.l.b16 %v1591
        %v1624 = vunpack.c.l.b16 %v1592
        %v1625 = vunpack.c.l.b16 %v1593
        %v1626 = vunpack.c.l.b16 %v1594
        %v1627 = vunpack.c.l.b16 %v1595
        %v1628 = vunpack.c.l.b16 %v1596
        %v1629 = vpack.c.b16 %v1614, %v1613
        %v1630 = vpack.c.b16 %v1616, %v1615
        %v1631 = vpack.c.b16 %v1618, %v1617
        %v1632 = vpack.c.b16 %v1620, %v1619
        %v1633 = vpack.c.b16 %v1622, %v1621
        %v1634 = vpack.c.b16 %v1624, %v1623
        %v1635 = vpack.c.b16 %v1626, %v1625
        %v1636 = vpack.c.b16 %v1628, %v1627
        %1645 = vmatprep.subr.bf16.mxu0 0
        %1646 = vmatpush1.bf16.msra.mxu0 %v1636
        %1647 = vmatprep.subr.bf16.mxu0 0
        %1648 = vmatpush1.bf16.msra.mxu0 %v1635
        %1649 = vmatprep.subr.bf16.mxu0 0
        %1650 = vmatpush1.bf16.msra.mxu0 %v1634
        %1651 = vmatprep.subr.bf16.mxu0 0
        %1652 = vmatpush1.bf16.msra.mxu0 %v1633
        %1653 = vmatprep.subr.bf16.mxu0 0
        %1654 = vmatpush1.bf16.msra.mxu0 %v1632
        %1655 = vmatprep.subr.bf16.mxu0 0
        %1656 = vmatpush1.bf16.msra.mxu0 %v1631
        %1657 = vmatprep.subr.bf16.mxu0 0
        %1658 = vmatpush1.bf16.msra.mxu0 %v1630
        %1659 = vmatprep.subr.bf16.mxu0 0
        %1660 = vmatpush1.bf16.msra.mxu0 %v1629
        %1661 = vmatprep.subr.bf16.mxu0 0
        %1662 = vmatpush2.bf16.msra.mxu0 0
        %1663 = vmatprep.subr.bf16.mxu0 0
        %1664 = vmatpush2.bf16.msra.mxu0 0
        %1665 = vmatprep.subr.bf16.mxu0 0
        %1666 = vmatpush2.bf16.msra.mxu0 0
        %1667 = vmatprep.subr.bf16.mxu0 0
        %1668 = vmatpush2.bf16.msra.mxu0 0
        %1669 = vmatprep.subr.bf16.mxu0 0
        %1670 = vmatpush2.bf16.msra.mxu0 0
        %1671 = vmatprep.subr.bf16.mxu0 0
        %1672 = vmatpush2.bf16.msra.mxu0 0
        %1673 = vmatprep.subr.bf16.mxu0 0
        %1674 = vmatpush2.bf16.msra.mxu0 0
        %1675 = vmatprep.subr.bf16.mxu0 0
        %1676 = vmatpush2.bf16.msra.mxu0 0
        %1677 = vmatprep.mubr.bf16.mxu0 0
        %1678 = vmatmul.mubr.bf16.gmra.mxu0 %v1577
        %v1679 = vpop.f32.mrf.mxu0
        %v1680 = vadd.f32 0.0, %v1679
        %v1681 = vpop.f32.mrf.mxu0
        %v1682 = vpop.f32.mrf.mxu0
        %v1683 = vadd.f32 0.0, %v1682
        %v1684 = vpop.f32.mrf.mxu0
        %1685 = vmatprep.mubr.bf16.mxu0 0
        %1686 = vmatmul.mubr.bf16.gmra.mxu0 %v1578
        %v1687 = vpop.f32.mrf.mxu0
        %v1688 = vadd.f32 0.0, %v1687
        %v1689 = vpop.f32.mrf.mxu0
        %v1690 = vpop.f32.mrf.mxu0
        %v1691 = vadd.f32 0.0, %v1690
        %v1692 = vpop.f32.mrf.mxu0
        %1693 = vmatprep.mubr.bf16.mxu0 0
        %1694 = vmatmul.mubr.bf16.gmra.mxu0 %v1579
        %v1695 = vpop.f32.mrf.mxu0
        %v1696 = vadd.f32 0.0, %v1695
        %v1697 = vpop.f32.mrf.mxu0
        %v1698 = vpop.f32.mrf.mxu0
        %v1699 = vadd.f32 0.0, %v1698
        %v1700 = vpop.f32.mrf.mxu0
        %1701 = vmatprep.mubr.bf16.mxu0 0
        %1702 = vmatmul.mubr.bf16.gmra.mxu0 %v1580
        %v1703 = vpop.f32.mrf.mxu0
        %v1704 = vadd.f32 0.0, %v1703
        %v1705 = vpop.f32.mrf.mxu0
        %v1706 = vpop.f32.mrf.mxu0
        %v1707 = vadd.f32 0.0, %v1706
        %v1708 = vpop.f32.mrf.mxu0
        %1709 = vdwg.mxu0
        %v1710 = vld [vmem:[%s5] sm:$0x1]
        %v1712 = vlaneseq
        %v1713 = vshrl.u32 %v1712, 7
        %v1714 = vsub.s32 0, %v1713
        %v1715 = vrot.slane %v1710, %v1714
        %v1717 = vmul.f32 %v1680, %v1715
        %v1718 = vmul.f32 %v1683, %v1715
        %v1719 = vmul.f32 %v1688, %v1715
        %v1720 = vmul.f32 %v1691, %v1715
        %v1721 = vmul.f32 %v1696, %v1715
        %v1722 = vmul.f32 %v1699, %v1715
        %v1723 = vmul.f32 %v1704, %v1715
        %v1724 = vmul.f32 %v1707, %v1715
        %v1725 = vld [vmem:[%s6] sm:$0x1]
        %v1727 = vlaneseq
        %v1728 = vshrl.u32 %v1727, 7
        %v1729 = vsub.s32 0, %v1728
        %v1730 = vrot.slane %v1725, %v1729
        %v1732 = vadd.f32 %v1717, %v1730
        %v1733 = vadd.f32 %v1718, %v1730
        %v1734 = vadd.f32 %v1719, %v1730
        %v1735 = vadd.f32 %v1720, %v1730
        %v1736 = vadd.f32 %v1721, %v1730
        %v1737 = vadd.f32 %v1722, %v1730
        %v1738 = vadd.f32 %v1723, %v1730
        %v1739 = vadd.f32 %v1724, %v1730
        %v1740 = vld [vmem:[%s410] sm:$0xf]
        %v1741 = vld [vmem:[%s410 + $0x4] sm:$0xf]
        %v1742 = vld [vmem:[%s410 + $0x8] sm:$0xf]
        %v1743 = vld [vmem:[%s410 + $0xc] sm:$0xf]
        %v1744 = vld [vmem:[%s410 + $0x10] sm:$0xf]
        %v1745 = vld [vmem:[%s410 + $0x14] sm:$0xf]
        %v1746 = vld [vmem:[%s410 + $0x18] sm:$0xf]
        %v1747 = vld [vmem:[%s410 + $0x1c] sm:$0xf]
        %v1748 = vld [vmem:[%s8] sm:$0xf]
        %v1749 = vld [vmem:[%s8 + $0x4] sm:$0xf]
        %v1750 = vld [vmem:[%s8 + $0x8] sm:$0xf]
        %v1751 = vld [vmem:[%s8 + $0xc] sm:$0xf]
        %v1752 = vld [vmem:[%s8 + $0x10] sm:$0xf]
        %v1753 = vld [vmem:[%s8 + $0x14] sm:$0xf]
        %v1754 = vld [vmem:[%s8 + $0x18] sm:$0xf]
        %v1755 = vld [vmem:[%s8 + $0x1c] sm:$0xf]
        %v1756 = vld [vmem:[%s8 + $0x20] sm:$0xf]
        %v1757 = vld [vmem:[%s8 + $0x24] sm:$0xf]
        %v1758 = vld [vmem:[%s8 + $0x28] sm:$0xf]
        %v1759 = vld [vmem:[%s8 + $0x2c] sm:$0xf]
        %v1760 = vld [vmem:[%s8 + $0x30] sm:$0xf]
        %v1761 = vld [vmem:[%s8 + $0x34] sm:$0xf]
        %v1762 = vld [vmem:[%s8 + $0x38] sm:$0xf]
        %v1763 = vld [vmem:[%s8 + $0x3c] sm:$0xf]
        %v1772 = vunpack.c.l.b16 %v1740
        %v1773 = vunpack.c.l.b16 %v1741
        %v1774 = vunpack.c.l.b16 %v1742
        %v1775 = vunpack.c.l.b16 %v1743
        %v1776 = vunpack.c.l.b16 %v1744
        %v1777 = vunpack.c.l.b16 %v1745
        %v1778 = vunpack.c.l.b16 %v1746
        %v1779 = vunpack.c.l.b16 %v1747
        %v1780 = vpack.c.b16 %v1773, %v1772
        %v1781 = vpack.c.b16 %v1775, %v1774
        %v1782 = vpack.c.b16 %v1777, %v1776
        %v1783 = vpack.c.b16 %v1779, %v1778
        %v1804 = vunpack.c.l.b16 %v1748
        %v1805 = vunpack.c.l.b16 %v1749
        %v1806 = vunpack.c.l.b16 %v1750
        %v1807 = vunpack.c.l.b16 %v1751
        %v1808 = vunpack.c.l.b16 %v1752
        %v1809 = vunpack.c.l.b16 %v1753
        %v1810 = vunpack.c.l.b16 %v1754
        %v1811 = vunpack.c.l.b16 %v1755
        %v1812 = vunpack.c.l.b16 %v1756
        %v1813 = vunpack.c.l.b16 %v1757
        %v1814 = vunpack.c.l.b16 %v1758
        %v1815 = vunpack.c.l.b16 %v1759
        %v1816 = vunpack.c.l.b16 %v1760
        %v1817 = vunpack.c.l.b16 %v1761
        %v1818 = vunpack.c.l.b16 %v1762
        %v1819 = vunpack.c.l.b16 %v1763
        %v1820 = vpack.c.b16 %v1805, %v1804
        %v1821 = vpack.c.b16 %v1807, %v1806
        %v1822 = vpack.c.b16 %v1809, %v1808
        %v1823 = vpack.c.b16 %v1811, %v1810
        %v1824 = vpack.c.b16 %v1813, %v1812
        %v1825 = vpack.c.b16 %v1815, %v1814
        %v1826 = vpack.c.b16 %v1817, %v1816
        %v1827 = vpack.c.b16 %v1819, %v1818
        %1836 = vmatprep.subr.bf16.mxu0 0
        %1837 = vmatpush1.bf16.msra.mxu0 %v1827
        %1838 = vmatprep.subr.bf16.mxu0 0
        %1839 = vmatpush1.bf16.msra.mxu0 %v1826
        %1840 = vmatprep.subr.bf16.mxu0 0
        %1841 = vmatpush1.bf16.msra.mxu0 %v1825
        %1842 = vmatprep.subr.bf16.mxu0 0
        %1843 = vmatpush1.bf16.msra.mxu0 %v1824
        %1844 = vmatprep.subr.bf16.mxu0 0
        %1845 = vmatpush1.bf16.msra.mxu0 %v1823
        %1846 = vmatprep.subr.bf16.mxu0 0
        %1847 = vmatpush1.bf16.msra.mxu0 %v1822
        %1848 = vmatprep.subr.bf16.mxu0 0
        %1849 = vmatpush1.bf16.msra.mxu0 %v1821
        %1850 = vmatprep.subr.bf16.mxu0 0
        %1851 = vmatpush1.bf16.msra.mxu0 %v1820
        %1852 = vmatprep.subr.bf16.mxu0 0
        %1853 = vmatpush2.bf16.msra.mxu0 0
        %1854 = vmatprep.subr.bf16.mxu0 0
        %1855 = vmatpush2.bf16.msra.mxu0 0
        %1856 = vmatprep.subr.bf16.mxu0 0
        %1857 = vmatpush2.bf16.msra.mxu0 0
        %1858 = vmatprep.subr.bf16.mxu0 0
        %1859 = vmatpush2.bf16.msra.mxu0 0
        %1860 = vmatprep.subr.bf16.mxu0 0
        %1861 = vmatpush2.bf16.msra.mxu0 0
        %1862 = vmatprep.subr.bf16.mxu0 0
        %1863 = vmatpush2.bf16.msra.mxu0 0
        %1864 = vmatprep.subr.bf16.mxu0 0
        %1865 = vmatpush2.bf16.msra.mxu0 0
        %1866 = vmatprep.subr.bf16.mxu0 0
        %1867 = vmatpush2.bf16.msra.mxu0 0
        %1868 = vmatprep.mubr.bf16.mxu0 0
        %1869 = vmatmul.mubr.bf16.gmra.mxu0 %v1780
        %v1870 = vpop.f32.mrf.mxu0
        %v1871 = vadd.f32 0.0, %v1870
        %v1872 = vpop.f32.mrf.mxu0
        %v1873 = vpop.f32.mrf.mxu0
        %v1874 = vadd.f32 0.0, %v1873
        %v1875 = vpop.f32.mrf.mxu0
        %1876 = vmatprep.mubr.bf16.mxu0 0
        %1877 = vmatmul.mubr.bf16.gmra.mxu0 %v1781
        %v1878 = vpop.f32.mrf.mxu0
        %v1879 = vadd.f32 0.0, %v1878
        %v1880 = vpop.f32.mrf.mxu0
        %v1881 = vpop.f32.mrf.mxu0
        %v1882 = vadd.f32 0.0, %v1881
        %v1883 = vpop.f32.mrf.mxu0
        %1884 = vmatprep.mubr.bf16.mxu0 0
        %1885 = vmatmul.mubr.bf16.gmra.mxu0 %v1782
        %v1886 = vpop.f32.mrf.mxu0
        %v1887 = vadd.f32 0.0, %v1886
        %v1888 = vpop.f32.mrf.mxu0
        %v1889 = vpop.f32.mrf.mxu0
        %v1890 = vadd.f32 0.0, %v1889
        %v1891 = vpop.f32.mrf.mxu0
        %1892 = vmatprep.mubr.bf16.mxu0 0
        %1893 = vmatmul.mubr.bf16.gmra.mxu0 %v1783
        %v1894 = vpop.f32.mrf.mxu0
        %v1895 = vadd.f32 0.0, %v1894
        %v1896 = vpop.f32.mrf.mxu0
        %v1897 = vpop.f32.mrf.mxu0
        %v1898 = vadd.f32 0.0, %v1897
        %v1899 = vpop.f32.mrf.mxu0
        %1900 = vdwg.mxu0
        %v1901 = vld [vmem:[%s9] sm:$0x1]
        %v1903 = vlaneseq
        %v1904 = vshrl.u32 %v1903, 7
        %v1905 = vsub.s32 0, %v1904
        %v1906 = vrot.slane %v1901, %v1905
        %v1908 = vmul.f32 %v1871, %v1906
        %v1909 = vmul.f32 %v1874, %v1906
        %v1910 = vmul.f32 %v1879, %v1906
        %v1911 = vmul.f32 %v1882, %v1906
        %v1912 = vmul.f32 %v1887, %v1906
        %v1913 = vmul.f32 %v1890, %v1906
        %v1914 = vmul.f32 %v1895, %v1906
        %v1915 = vmul.f32 %v1898, %v1906
        %v1916 = vld [vmem:[%s10] sm:$0x1]
        %v1918 = vlaneseq
        %v1919 = vshrl.u32 %v1918, 7
        %v1920 = vsub.s32 0, %v1919
        %v1921 = vrot.slane %v1916, %v1920
        %v1923 = vadd.f32 %v1908, %v1921
        %v1924 = vadd.f32 %v1909, %v1921
        %v1925 = vadd.f32 %v1910, %v1921
        %v1926 = vadd.f32 %v1911, %v1921
        %v1927 = vadd.f32 %v1912, %v1921
        %v1928 = vadd.f32 %v1913, %v1921
        %v1929 = vadd.f32 %v1914, %v1921
        %v1930 = vadd.f32 %v1915, %v1921
        %v1931 = vadd.f32 %v1732, %v1923
        %v1932 = vadd.f32 %v1733, %v1924
        %v1933 = vadd.f32 %v1734, %v1925
        %v1934 = vadd.f32 %v1735, %v1926
        %v1935 = vadd.f32 %v1736, %v1927
        %v1936 = vadd.f32 %v1737, %v1928
        %v1937 = vadd.f32 %v1738, %v1929
        %v1938 = vadd.f32 %v1739, %v1930
        %v1939 = vmax.f32 %v1931, 0.0
        %v1940 = vmax.f32 %v1932, 0.0
        %v1941 = vmax.f32 %v1933, 0.0
        %v1942 = vmax.f32 %v1934, 0.0
        %v1943 = vmax.f32 %v1935, 0.0
        %v1944 = vmax.f32 %v1936, 0.0
        %v1945 = vmax.f32 %v1937, 0.0
        %v1946 = vmax.f32 %v1938, 0.0
        %1947 = vst [vmem:[%s398] sm:$0xff] %v1939
        %1948 = vst [vmem:[%s398 + $0x8] sm:$0xff] %v1940
        %1949 = vst [vmem:[%s398 + $0x10] sm:$0xff] %v1941
        %1950 = vst [vmem:[%s398 + $0x18] sm:$0xff] %v1942
        %1951 = vst [vmem:[%s398 + $0x20] sm:$0xff] %v1943
        %1952 = vst [vmem:[%s398 + $0x28] sm:$0xff] %v1944
        %1953 = vst [vmem:[%s398 + $0x30] sm:$0xff] %v1945
        %1954 = vst [vmem:[%s398 + $0x38] sm:$0xff] %v1946
        %s1955 = sand.u32 %s274, 1
        %s1956 = scalar_lea.sflag [#allocation3], %s1955
        %s1957 = sand.u32 %s274, 1
        %s1958 = smul.addr %s1957, 64
        %s1959 = scalar_lea.vmem [#allocation2], %s1958
        // Predicated region
        $region65: #{res50_block_forward.3} parent=63 // pred_check
          %p1960 = pneg %p284
        $region66: #{res50_block_forward.3} parent=63 // pred_check_branch
          %1962 = sbr.rel (%p1960) target = $region68
        $region67: #{res50_block_forward.3} parent=63 // pred_region
          %s1963 = smul.u32 8, %s25
          %s1965 = ssub.s32 1024, 1024
          %1966 = vsyncadd %s1956, %s1965
          %s1967 = smul.addr %s1963, 128
          %s1968 = scalar_lea.hbm %s11, %s1967
          %s1969 = sshll.u32 %s1959, 4
          %s1970 = int_to_ptr.vmem [resolvable:$true] %s1969
          %1975 = dma.vmem_to_hbm [thread:$0]  %s1970, 1024, %s1968, %s1956, 128, 128, 8
        $region68: #{res50_block_forward.3} parent=63 // pred_fallthru
          _
      $region64: #{res50_block_forward.3} parent=5 // pred_fallthru
        _
      %p1976 = scmp.le.s32.totalorder 2, %s20
      // Predicated region
      $region69: #{res50_block_forward.3} parent=5 // pred_check
        %p1977 = pneg %p1976
      $region70: #{res50_block_forward.3} parent=5 // pred_check_branch
        %1979 = sbr.rel (%p1977) target = $region72
      $region71: #{res50_block_forward.3} parent=5 // pred_region
        %s1980 = ssub.s32 %s20, 2
        // Predicated region
        $region73: #{res50_block_forward.3} parent=71 // pred_check
          %p1981 = pneg %p290
        $region74: #{res50_block_forward.3} parent=71 // pred_check_branch
          %1983 = sbr.rel (%p1981) target = $region76
        $region75: #{res50_block_forward.3} parent=71 // pred_region
          %s1984 = sand.u32 %s275, 1
          %s1985 = scalar_lea.sflag [#allocation3], %s1984
          %s1986 = sand.u32 %s275, 1
          %s1987 = smul.addr %s1986, 64
          %s1988 = scalar_lea.vmem [#allocation2], %s1987
          %1989 = dma.done %s1985, 1024
        $region76: #{res50_block_forward.3} parent=71 // pred_fallthru
          _
      $region72: #{res50_block_forward.3} parent=5 // pred_fallthru
        _
    $region6: #{res50_block_forward.3} parent=1 // loop_footer
      %s24 = sadd.s32 1, %s20
    $region7: #{res50_block_forward.3} parent=1 // loop_footer_branch
      %19 = sbr.rel target = $region3
    $region8: #{res50_block_forward.3} parent=1 // loop_exit
      _
    %1990 = vsyncpa [#allocation3], 1
    %s1991 = scalar_lea.sflag [#allocation3], 1
    %1992 = vsyncpa %s1991, 1

</llo_original>
